<compile_context>
chip_gen: v7x
topology: tpu7x:2x2x1
jax: 0.10.0
libtpu: 0.0.40
codegen_flags: <defaults>
</compile_context>

<pallas_src>
import functools
import math

import jax
import jax.numpy as jnp
from jax import lax
from jax.experimental import pallas as pl
from jax.experimental.pallas import tpu as pltpu

EPS = 1e-6
NEG_INF = -1e9


# ---------------------------------------------------------------------------
# LayerNorm exactly as in the PyTorch module: unbiased std (ddof=1), eps on std.
# ---------------------------------------------------------------------------
def _torch_layernorm(v, a, b):
    d = v.shape[-1]
    mean = jnp.mean(v, axis=-1, keepdims=True)
    var = jnp.sum((v - mean) ** 2, axis=-1, keepdims=True) / (d - 1)
    std = jnp.sqrt(var)
    return a * (v - mean) / (std + EPS) + b


# ---------------------------------------------------------------------------
# Fused encoder kernel: one grid step == one EncoderLayer; final norm on last step.
# ---------------------------------------------------------------------------
def _encoder_kernel(x_ref, maskb_ref,
                    wqkv_ref, bqkv_ref, wo_ref, bo_ref,
                    ln1a_ref, ln1b_ref,
                    w1_ref, b1_ref, w2_ref, b2_ref,
                    ln2a_ref, ln2b_ref,
                    fa_ref, fb_ref,
                    out_ref, x_scr,
                    *, B, S, D, H):
    DH = D // H
    scale = 1.0 / math.sqrt(DH)
    layer = pl.program_id(0)

    # Load the activation slab into resident VMEM scratch once (layer 0 only).
    @pl.when(layer == 0)
    def _():
        x_scr[...] = x_ref[...]

    x = x_scr[...]                    # (B*S, D) f32
    mask_bias = maskb_ref[...]        # (B, S) additive bias: 0 or -1e9

    # ---- sublayer 0: pre-norm multi-head self-attention + residual ----------
    xn = _torch_layernorm(x, ln1a_ref[0], ln1b_ref[0])
    qkv = jnp.dot(xn, wqkv_ref[0], preferred_element_type=jnp.float32) + bqkv_ref[0]
    q = qkv[:, 0:D]
    k = qkv[:, D:2 * D]
    v = qkv[:, 2 * D:3 * D]

    batch_ctx = []
    for b in range(B):                # static, B small; attention is per-batch
        r0 = b * S
        qb = q[r0:r0 + S, :]
        kb = k[r0:r0 + S, :]
        vb = v[r0:r0 + S, :]
        mb = mask_bias[b:b + 1, :]    # (1, S) -> broadcast over query rows
        head_ctx = []
        for h in range(H):            # static unrolled loop over heads
            c0 = h * DH
            qs = qb[:, c0:c0 + DH]    # (S, DH)
            ks = kb[:, c0:c0 + DH]
            vs = vb[:, c0:c0 + DH]
            # q @ k^T without materializing a transpose (contract last dims).
            scores = lax.dot_general(
                qs, ks, dimension_numbers=(((1,), (1,)), ((), ())),
                preferred_element_type=jnp.float32) * scale + mb
            # NOTE: additive -1e9 bias matches masked_fill except for fully
            # masked rows (none exist here).
            scores = scores - jnp.max(scores, axis=-1, keepdims=True)
            p = jnp.exp(scores)
            p = p * pl.reciprocal(jnp.sum(p, axis=-1, keepdims=True), approx=True)
            head_ctx.append(jnp.dot(p, vs, preferred_element_type=jnp.float32))
        batch_ctx.append(jnp.concatenate(head_ctx, axis=1))   # (S, D), heads in lanes
    ctx = jnp.concatenate(batch_ctx, axis=0)                  # (B*S, D)

    attn = jnp.dot(ctx, wo_ref[0], preferred_element_type=jnp.float32) + bo_ref[0]
    x2 = x + attn                     # residual (dropout == identity)

    # ---- sublayer 1: pre-norm position-wise FFN + residual -------------------
    xn2 = _torch_layernorm(x2, ln2a_ref[0], ln2b_ref[0])
    hmid = jnp.dot(xn2, w1_ref[0], preferred_element_type=jnp.float32) + b1_ref[0]
    hmid = jnp.maximum(hmid, 0.0)
    x3 = x2 + jnp.dot(hmid, w2_ref[0], preferred_element_type=jnp.float32) + b2_ref[0]

    x_scr[...] = x3                   # carry to next layer

    # ---- final Encoder LayerNorm, written once on the last layer -------------
    @pl.when(layer == pl.num_programs(0) - 1)
    def _():
        out_ref[...] = _torch_layernorm(x3, fa_ref[...], fb_ref[...])


def build_encoder_call(B, S, D, FF, H, L):
    BS = B * S
    kernel = functools.partial(_encoder_kernel, B=B, S=S, D=D, H=H)

    def fixed(shape):
        return pl.BlockSpec(shape, lambda l, _n=len(shape): (0,) * _n)

    def per_layer(shape):  # `shape` excludes the leading layer axis
        return pl.BlockSpec((1,) + shape,
                            lambda l, _n=len(shape): (l,) + (0,) * _n)

    in_specs = [
        fixed((BS, D)),                                   # x (flattened slab)
        fixed((B, S)),                                    # additive mask bias
        per_layer((D, 3 * D)), per_layer((1, 3 * D)),     # Wqkv, bqkv
        per_layer((D, D)), per_layer((1, D)),             # Wo, bo
        per_layer((1, D)), per_layer((1, D)),             # ln1 a, b
        per_layer((D, FF)), per_layer((1, FF)),           # W1, b1
        per_layer((FF, D)), per_layer((1, D)),            # W2, b2
        per_layer((1, D)), per_layer((1, D)),             # ln2 a, b
        fixed((1, D)), fixed((1, D)),                     # final norm a, b
    ]

    return pl.pallas_call(
        kernel,
        out_shape=jax.ShapeDtypeStruct((BS, D), jnp.float32),
        grid=(L,),
        in_specs=in_specs,
        out_specs=fixed((BS, D)),
        scratch_shapes=[pltpu.VMEM((BS, D), jnp.float32)],   # resident activation
        compiler_params=pltpu.CompilerParams(
            dimension_semantics=("arbitrary",)),             # layer axis is sequential
    )


# ---------------------------------------------------------------------------
# Parameter construction (deterministic synthetic init)
# ---------------------------------------------------------------------------
def init_layer_params(key, D, FF):
    ks = jax.random.split(key, 6)
    return {
        "wq": jax.random.normal(ks[0], (D, D), jnp.float32) * 0.05,
        "bq": jnp.zeros((1, D), jnp.float32),
        "wk": jax.random.normal(ks[1], (D, D), jnp.float32) * 0.05,
        "bk": jnp.zeros((1, D), jnp.float32),
        "wv": jax.random.normal(ks[2], (D, D), jnp.float32) * 0.05,
        "bv": jnp.zeros((1, D), jnp.float32),
        "wo": jax.random.normal(ks[3], (D, D), jnp.float32) * 0.05,
        "bo": jnp.zeros((1, D), jnp.float32),
        "ln1_a": jnp.ones((1, D), jnp.float32),
        "ln1_b": jnp.zeros((1, D), jnp.float32),
        "w1": jax.random.normal(ks[4], (D, FF), jnp.float32) * 0.05,
        "b1": jnp.zeros((1, FF), jnp.float32),
        "w2": jax.random.normal(ks[5], (FF, D), jnp.float32) * 0.05,
        "b2": jnp.zeros((1, D), jnp.float32),
        "ln2_a": jnp.ones((1, D), jnp.float32),
        "ln2_b": jnp.zeros((1, D), jnp.float32),
    }


# ---------------------------------------------------------------------------
# Encoder forward (Pallas) + pure-JAX reference
# ---------------------------------------------------------------------------
def encoder_forward_pallas(x, mask, layer_params, final_a, final_b, H, FF):
    B, S, D = x.shape
    L = len(layer_params)
    call = build_encoder_call(B, S, D, FF, H, L)

    def stack(name):
        return jnp.stack([p[name] for p in layer_params], axis=0)

    wqkv = jnp.stack([jnp.concatenate([p["wq"], p["wk"], p["wv"]], axis=1)
                      for p in layer_params], axis=0)          # (L, D, 3D)
    bqkv = jnp.stack([jnp.concatenate([p["bq"], p["bk"], p["bv"]], axis=1)
                      for p in layer_params], axis=0)          # (L, 1, 3D)

    x_flat = x.reshape(B * S, D)
    mask_bias = jnp.where(mask == 0.0, NEG_INF, 0.0).astype(jnp.float32).reshape(B, S)

    out = call(x_flat, mask_bias,
               wqkv, bqkv, stack("wo"), stack("bo"),
               stack("ln1_a"), stack("ln1_b"),
               stack("w1"), stack("b1"), stack("w2"), stack("b2"),
               stack("ln2_a"), stack("ln2_b"),
               final_a, final_b)
    return out.reshape(B, S, D)


def _ln_ref(v, a, b):
    d = v.shape[-1]
    mean = jnp.mean(v, axis=-1, keepdims=True)
    std = jnp.sqrt(jnp.sum((v - mean) ** 2, axis=-1, keepdims=True) / (d - 1))
    return a * (v - mean) / (std + EPS) + b


def encoder_forward_ref(x, mask, layer_params, final_a, final_b, H, FF):
    B, S, D = x.shape
    DH = D // H
    for p in layer_params:
        xn = _ln_ref(x, p["ln1_a"], p["ln1_b"])
        q = xn @ p["wq"] + p["bq"]
        k = xn @ p["wk"] + p["bk"]
        v = xn @ p["wv"] + p["bv"]
        q = q.reshape(B, S, H, DH).transpose(0, 2, 1, 3)
        k = k.reshape(B, S, H, DH).transpose(0, 2, 1, 3)
        v = v.reshape(B, S, H, DH).transpose(0, 2, 1, 3)
        scores = jnp.einsum("bhqd,bhkd->bhqk", q, k) / math.sqrt(DH)
        scores = jnp.where(mask[:, None, :, :] == 0.0, -1e9, scores)
        p_attn = jax.nn.softmax(scores, axis=-1)
        ctx = jnp.einsum("bhqk,bhkd->bhqd", p_attn, v)
        ctx = ctx.transpose(0, 2, 1, 3).reshape(B, S, D)
        x = x + (ctx @ p["wo"] + p["bo"])
        xn2 = _ln_ref(x, p["ln2_a"], p["ln2_b"])
        x = x + (jnp.maximum(xn2 @ p["w1"] + p["b1"], 0.0) @ p["w2"] + p["b2"])
    return _ln_ref(x, final_a, final_b)


# ---------------------------------------------------------------------------
if __name__ == "__main__":
    B, S, D, H, FF, N_LAYERS = 2, 8, 32, 4, 64, 2

    key = jax.random.PRNGKey(0)
    kx, *kls = jax.random.split(key, 1 + N_LAYERS)
    x = jax.random.normal(kx, (B, S, D), jnp.float32)

    # mask: (B, 1, S); 1.0 = attend, 0.0 = masked out (last position of batch 1 masked)
    mask = jnp.ones((B, 1, S), jnp.float32).at[1, 0, S - 1].set(0.0)

    layer_params = [init_layer_params(kls[i], D, FF) for i in range(N_LAYERS)]
    final_a = jnp.ones((1, D), jnp.float32)
    final_b = jnp.zeros((1, D), jnp.float32)

    out = encoder_forward_pallas(x, mask, layer_params, final_a, final_b, H, FF)
    out = jax.block_until_ready(out)

    ref = encoder_forward_ref(x, mask, layer_params, final_a, final_b, H, FF)
    ref = jax.block_until_ready(ref)

    assert out.shape == (B, S, D)
    # tolerance accommodates the approx (EUP) reciprocal in the softmax denominator
    assert jnp.allclose(out, ref, atol=2e-3, rtol=2e-3), "Pallas output mismatch vs reference"
    print("KERNEL_OK")
</pallas_src>

<mosaic_0001>
module attributes {stable_mosaic.version = 11 : i64} {
  func.func @_encoder_kernel(%arg0: i32, %arg1: memref<16x32xf32, #tpu.memory_space<vmem>>, %arg2: memref<2x8xf32, #tpu.memory_space<vmem>>, %arg3: memref<1x32x96xf32, #tpu.memory_space<vmem>>, %arg4: memref<1x1x96xf32, #tpu.memory_space<vmem>>, %arg5: memref<1x32x32xf32, #tpu.memory_space<vmem>>, %arg6: memref<1x1x32xf32, #tpu.memory_space<vmem>>, %arg7: memref<1x1x32xf32, #tpu.memory_space<vmem>>, %arg8: memref<1x1x32xf32, #tpu.memory_space<vmem>>, %arg9: memref<1x32x64xf32, #tpu.memory_space<vmem>>, %arg10: memref<1x1x64xf32, #tpu.memory_space<vmem>>, %arg11: memref<1x64x32xf32, #tpu.memory_space<vmem>>, %arg12: memref<1x1x32xf32, #tpu.memory_space<vmem>>, %arg13: memref<1x1x32xf32, #tpu.memory_space<vmem>>, %arg14: memref<1x1x32xf32, #tpu.memory_space<vmem>>, %arg15: memref<1x32xf32, #tpu.memory_space<vmem>>, %arg16: memref<1x32xf32, #tpu.memory_space<vmem>>, %arg17: memref<16x32xf32, #tpu.memory_space<vmem>>, %arg18: memref<16x32xf32, #tpu.memory_space<vmem>>) attributes {dimension_semantics = [#tpu.dimension_semantics<arbitrary>], iteration_bounds = array<i64: 2>, scalar_prefetch = 0 : i64, scratch_operands = 1 : i64, tpu.core_type = #tpu.core_type<tc>, window_params = [{pipeline_mode = #tpu.pipeline_mode<synchronous>, transform_indices = @transform_0, window_bounds = array<i64: 16, 32>}, {pipeline_mode = #tpu.pipeline_mode<synchronous>, transform_indices = @transform_1, window_bounds = array<i64: 2, 8>}, {transform_indices = @transform_2, window_bounds = array<i64: 1, 32, 96>}, {transform_indices = @transform_3, window_bounds = array<i64: 1, 1, 96>}, {transform_indices = @transform_4, window_bounds = array<i64: 1, 32, 32>}, {transform_indices = @transform_5, window_bounds = array<i64: 1, 1, 32>}, {transform_indices = @transform_6, window_bounds = array<i64: 1, 1, 32>}, {transform_indices = @transform_7, window_bounds = array<i64: 1, 1, 32>}, {transform_indices = @transform_8, window_bounds = array<i64: 1, 32, 64>}, {transform_indices = @transform_9, window_bounds = array<i64: 1, 1, 64>}, {transform_indices = @transform_10, window_bounds = array<i64: 1, 64, 32>}, {transform_indices = @transform_11, window_bounds = array<i64: 1, 1, 32>}, {transform_indices = @transform_12, window_bounds = array<i64: 1, 1, 32>}, {transform_indices = @transform_13, window_bounds = array<i64: 1, 1, 32>}, {pipeline_mode = #tpu.pipeline_mode<synchronous>, transform_indices = @transform_14, window_bounds = array<i64: 1, 32>}, {pipeline_mode = #tpu.pipeline_mode<synchronous>, transform_indices = @transform_15, window_bounds = array<i64: 1, 32>}, {pipeline_mode = #tpu.pipeline_mode<synchronous>, transform_indices = @transform_16, window_bounds = array<i64: 16, 32>}]} {
    %c0_i32 = arith.constant 0 : i32
    %0 = arith.cmpi eq, %arg0, %c0_i32 : i32
    %1 = arith.extui %0 : i1 to i32
    %c0_i32_0 = arith.constant 0 : i32
    %2 = arith.cmpi ne, %1, %c0_i32_0 : i32
    scf.if %2 {
      %c0_97 = arith.constant 0 : index
      %c0_98 = arith.constant 0 : index
      %259 = vector.load %arg1[%c0_97, %c0_98] : memref<16x32xf32, #tpu.memory_space<vmem>>, vector<16x32xf32>
      %c0_99 = arith.constant 0 : index
      %c0_100 = arith.constant 0 : index
      %260 = vector.load %arg18[%c0_99, %c0_100] : memref<16x32xf32, #tpu.memory_space<vmem>>, vector<16x32xf32>
      tpu.vector_store %arg18[%c0_99, %c0_100], %259 {strides = array<i32>} : memref<16x32xf32, #tpu.memory_space<vmem>>, vector<16x32xf32>,
    } else {
    }
    %c0 = arith.constant 0 : index
    %c0_1 = arith.constant 0 : index
    %3 = vector.load %arg18[%c0, %c0_1] : memref<16x32xf32, #tpu.memory_space<vmem>>, vector<16x32xf32>
    %c0_2 = arith.constant 0 : index
    %c0_3 = arith.constant 0 : index
    %4 = vector.load %arg2[%c0_2, %c0_3] : memref<2x8xf32, #tpu.memory_space<vmem>>, vector<2x8xf32>
    %c0_4 = arith.constant 0 : index
    %c0_5 = arith.constant 0 : index
    %c0_6 = arith.constant 0 : index
    %5 = vector.load %arg7[%c0_4, %c0_5, %c0_6] : memref<1x1x32xf32, #tpu.memory_space<vmem>>, vector<1x1x32xf32>
    %6 = vector.shape_cast %5 : vector<1x1x32xf32> to vector<1x32xf32>
    %c0_7 = arith.constant 0 : index
    %c0_8 = arith.constant 0 : index
    %c0_9 = arith.constant 0 : index
    %7 = vector.load %arg8[%c0_7, %c0_8, %c0_9] : memref<1x1x32xf32, #tpu.memory_space<vmem>>, vector<1x1x32xf32>
    %8 = vector.shape_cast %7 : vector<1x1x32xf32> to vector<1x32xf32>
    %cst = arith.constant dense<0.000000e+00> : vector<16xf32>
    %9 = vector.multi_reduction <add>, %3, %cst [1] : vector<16x32xf32> to vector<16xf32>
    %10 = vector.shape_cast %9 : vector<16xf32> to vector<16x1xf32>
    %cst_10 = arith.constant 3.200000e+01 : f32
    %11 = vector.broadcast %cst_10 : f32 to vector<16x1xf32>
    %12 = arith.divf %10, %11 : vector<16x1xf32>
    %13 = vector.broadcast %12 : vector<16x1xf32> to vector<16x32xf32>
    %14 = arith.subf %3, %13 : vector<16x32xf32>
    %15 = arith.mulf %14, %14 : vector<16x32xf32>
    %cst_11 = arith.constant dense<0.000000e+00> : vector<16xf32>
    %16 = vector.multi_reduction <add>, %15, %cst_11 [1] : vector<16x32xf32> to vector<16xf32>
    %17 = vector.shape_cast %16 : vector<16xf32> to vector<16x1xf32>
    %cst_12 = arith.constant 3.100000e+01 : f32
    %18 = vector.broadcast %cst_12 : f32 to vector<16x1xf32>
    %19 = arith.divf %17, %18 : vector<16x1xf32>
    %20 = math.sqrt %19 : vector<16x1xf32>
    %21 = vector.broadcast %12 : vector<16x1xf32> to vector<16x32xf32>
    %22 = arith.subf %3, %21 : vector<16x32xf32>
    %23 = vector.broadcast %6 : vector<1x32xf32> to vector<16x32xf32>
    %24 = arith.mulf %23, %22 : vector<16x32xf32>
    %cst_13 = arith.constant 9.99999997E-7 : f32
    %25 = vector.broadcast %cst_13 : f32 to vector<16x1xf32>
    %26 = arith.addf %20, %25 : vector<16x1xf32>
    %27 = vector.broadcast %26 : vector<16x1xf32> to vector<16x32xf32>
    %28 = arith.divf %24, %27 : vector<16x32xf32>
    %29 = vector.broadcast %8 : vector<1x32xf32> to vector<16x32xf32>
    %30 = arith.addf %28, %29 : vector<16x32xf32>
    %c0_14 = arith.constant 0 : index
    %c0_15 = arith.constant 0 : index
    %c0_16 = arith.constant 0 : index
    %31 = vector.load %arg3[%c0_14, %c0_15, %c0_16] : memref<1x32x96xf32, #tpu.memory_space<vmem>>, vector<1x32x96xf32>
    %32 = vector.shape_cast %31 : vector<1x32x96xf32> to vector<32x96xf32>
    %cst_17 = arith.constant dense<0.000000e+00> : vector<16x96xf32>
    %33 = tpu.matmul %30, %32, %cst_17 {dimension_numbers = #tpu.dot_dimension_numbers<[1], [0], [0], [1], [0, 0, 1, 1], [], []>} : vector<16x32xf32>, vector<32x96xf32>, vector<16x96xf32> -> vector<16x96xf32>
    %c0_18 = arith.constant 0 : index
    %c0_19 = arith.constant 0 : index
    %c0_20 = arith.constant 0 : index
    %34 = vector.load %arg4[%c0_18, %c0_19, %c0_20] : memref<1x1x96xf32, #tpu.memory_space<vmem>>, vector<1x1x96xf32>
    %35 = vector.shape_cast %34 : vector<1x1x96xf32> to vector<1x96xf32>
    %36 = vector.broadcast %35 : vector<1x96xf32> to vector<16x96xf32>
    %37 = arith.addf %33, %36 : vector<16x96xf32>
    %38 = vector.extract_strided_slice %37 {offsets = [0, 0], sizes = [16, 32], strides = [1, 1]} : vector<16x96xf32> to vector<16x32xf32>
    %39 = vector.extract_strided_slice %37 {offsets = [0, 32], sizes = [16, 32], strides = [1, 1]} : vector<16x96xf32> to vector<16x32xf32>
    %40 = vector.extract_strided_slice %37 {offsets = [0, 64], sizes = [16, 32], strides = [1, 1]} : vector<16x96xf32> to vector<16x32xf32>
    %41 = vector.extract_strided_slice %38 {offsets = [0, 0], sizes = [8, 32], strides = [1, 1]} : vector<16x32xf32> to vector<8x32xf32>
    %42 = vector.extract_strided_slice %39 {offsets = [0, 0], sizes = [8, 32], strides = [1, 1]} : vector<16x32xf32> to vector<8x32xf32>
    %43 = vector.extract_strided_slice %40 {offsets = [0, 0], sizes = [8, 32], strides = [1, 1]} : vector<16x32xf32> to vector<8x32xf32>
    %44 = vector.extract_strided_slice %4 {offsets = [0, 0], sizes = [1, 8], strides = [1, 1]} : vector<2x8xf32> to vector<1x8xf32>
    %45 = vector.extract_strided_slice %41 {offsets = [0, 0], sizes = [8, 8], strides = [1, 1]} : vector<8x32xf32> to vector<8x8xf32>
    %46 = vector.extract_strided_slice %42 {offsets = [0, 0], sizes = [8, 8], strides = [1, 1]} : vector<8x32xf32> to vector<8x8xf32>
    %47 = vector.extract_strided_slice %43 {offsets = [0, 0], sizes = [8, 8], strides = [1, 1]} : vector<8x32xf32> to vector<8x8xf32>
    %cst_21 = arith.constant dense<0.000000e+00> : vector<8x8xf32>
    %48 = tpu.matmul %45, %46, %cst_21 {dimension_numbers = #tpu.dot_dimension_numbers<[1], [1], [0], [0], [0, 0, 1, 0], [], []>} : vector<8x8xf32>, vector<8x8xf32>, vector<8x8xf32> -> vector<8x8xf32>
    %cst_22 = arith.constant 0.353553385 : f32
    %49 = vector.broadcast %cst_22 : f32 to vector<8x8xf32>
    %50 = arith.mulf %48, %49 : vector<8x8xf32>
    %51 = vector.broadcast %44 : vector<1x8xf32> to vector<8x8xf32>
    %52 = arith.addf %50, %51 : vector<8x8xf32>
    %cst_23 = arith.constant dense<0xFF800000> : vector<8xf32>
    %53 = vector.multi_reduction <maximumf>, %52, %cst_23 [1] : vector<8x8xf32> to vector<8xf32>
    %54 = vector.shape_cast %53 : vector<8xf32> to vector<8x1xf32>
    %55 = vector.broadcast %54 : vector<8x1xf32> to vector<8x8xf32>
    %56 = arith.subf %52, %55 : vector<8x8xf32>
    %57 = math.exp %56 : vector<8x8xf32>
    %cst_24 = arith.constant dense<0.000000e+00> : vector<8xf32>
    %58 = vector.multi_reduction <add>, %57, %cst_24 [1] : vector<8x8xf32> to vector<8xf32>
    %59 = vector.shape_cast %58 : vector<8xf32> to vector<8x1xf32>
    %60 = tpu.reciprocal %59 {approx = true} : vector<8x1xf32> -> vector<8x1xf32>
    %61 = vector.broadcast %60 : vector<8x1xf32> to vector<8x8xf32>
    %62 = arith.mulf %57, %61 : vector<8x8xf32>
    %cst_25 = arith.constant dense<0.000000e+00> : vector<8x8xf32>
    %63 = tpu.matmul %62, %47, %cst_25 {dimension_numbers = #tpu.dot_dimension_numbers<[1], [0], [0], [1], [0, 0, 1, 1], [], []>} : vector<8x8xf32>, vector<8x8xf32>, vector<8x8xf32> -> vector<8x8xf32>
    %64 = vector.extract_strided_slice %41 {offsets = [0, 8], sizes = [8, 8], strides = [1, 1]} : vector<8x32xf32> to vector<8x8xf32>
    %65 = vector.extract_strided_slice %42 {offsets = [0, 8], sizes = [8, 8], strides = [1, 1]} : vector<8x32xf32> to vector<8x8xf32>
    %66 = vector.extract_strided_slice %43 {offsets = [0, 8], sizes = [8, 8], strides = [1, 1]} : vector<8x32xf32> to vector<8x8xf32>
    %cst_26 = arith.constant dense<0.000000e+00> : vector<8x8xf32>
    %67 = tpu.matmul %64, %65, %cst_26 {dimension_numbers = #tpu.dot_dimension_numbers<[1], [1], [0], [0], [0, 0, 1, 0], [], []>} : vector<8x8xf32>, vector<8x8xf32>, vector<8x8xf32> -> vector<8x8xf32>
    %cst_27 = arith.constant 0.353553385 : f32
    %68 = vector.broadcast %cst_27 : f32 to vector<8x8xf32>
    %69 = arith.mulf %67, %68 : vector<8x8xf32>
    %70 = vector.broadcast %44 : vector<1x8xf32> to vector<8x8xf32>
    %71 = arith.addf %69, %70 : vector<8x8xf32>
    %cst_28 = arith.constant dense<0xFF800000> : vector<8xf32>
    %72 = vector.multi_reduction <maximumf>, %71, %cst_28 [1] : vector<8x8xf32> to vector<8xf32>
    %73 = vector.shape_cast %72 : vector<8xf32> to vector<8x1xf32>
    %74 = vector.broadcast %73 : vector<8x1xf32> to vector<8x8xf32>
    %75 = arith.subf %71, %74 : vector<8x8xf32>
    %76 = math.exp %75 : vector<8x8xf32>
    %cst_29 = arith.constant dense<0.000000e+00> : vector<8xf32>
    %77 = vector.multi_reduction <add>, %76, %cst_29 [1] : vector<8x8xf32> to vector<8xf32>
    %78 = vector.shape_cast %77 : vector<8xf32> to vector<8x1xf32>
    %79 = tpu.reciprocal %78 {approx = true} : vector<8x1xf32> -> vector<8x1xf32>
    %80 = vector.broadcast %79 : vector<8x1xf32> to vector<8x8xf32>
    %81 = arith.mulf %76, %80 : vector<8x8xf32>
    %cst_30 = arith.constant dense<0.000000e+00> : vector<8x8xf32>
    %82 = tpu.matmul %81, %66, %cst_30 {dimension_numbers = #tpu.dot_dimension_numbers<[1], [0], [0], [1], [0, 0, 1, 1], [], []>} : vector<8x8xf32>, vector<8x8xf32>, vector<8x8xf32> -> vector<8x8xf32>
    %83 = vector.extract_strided_slice %41 {offsets = [0, 16], sizes = [8, 8], strides = [1, 1]} : vector<8x32xf32> to vector<8x8xf32>
    %84 = vector.extract_strided_slice %42 {offsets = [0, 16], sizes = [8, 8], strides = [1, 1]} : vector<8x32xf32> to vector<8x8xf32>
    %85 = vector.extract_strided_slice %43 {offsets = [0, 16], sizes = [8, 8], strides = [1, 1]} : vector<8x32xf32> to vector<8x8xf32>
    %cst_31 = arith.constant dense<0.000000e+00> : vector<8x8xf32>
    %86 = tpu.matmul %83, %84, %cst_31 {dimension_numbers = #tpu.dot_dimension_numbers<[1], [1], [0], [0], [0, 0, 1, 0], [], []>} : vector<8x8xf32>, vector<8x8xf32>, vector<8x8xf32> -> vector<8x8xf32>
    %cst_32 = arith.constant 0.353553385 : f32
    %87 = vector.broadcast %cst_32 : f32 to vector<8x8xf32>
    %88 = arith.mulf %86, %87 : vector<8x8xf32>
    %89 = vector.broadcast %44 : vector<1x8xf32> to vector<8x8xf32>
    %90 = arith.addf %88, %89 : vector<8x8xf32>
    %cst_33 = arith.constant dense<0xFF800000> : vector<8xf32>
    %91 = vector.multi_reduction <maximumf>, %90, %cst_33 [1] : vector<8x8xf32> to vector<8xf32>
    %92 = vector.shape_cast %91 : vector<8xf32> to vector<8x1xf32>
    %93 = vector.broadcast %92 : vector<8x1xf32> to vector<8x8xf32>
    %94 = arith.subf %90, %93 : vector<8x8xf32>
    %95 = math.exp %94 : vector<8x8xf32>
    %cst_34 = arith.constant dense<0.000000e+00> : vector<8xf32>
    %96 = vector.multi_reduction <add>, %95, %cst_34 [1] : vector<8x8xf32> to vector<8xf32>
    %97 = vector.shape_cast %96 : vector<8xf32> to vector<8x1xf32>
    %98 = tpu.reciprocal %97 {approx = true} : vector<8x1xf32> -> vector<8x1xf32>
    %99 = vector.broadcast %98 : vector<8x1xf32> to vector<8x8xf32>
    %100 = arith.mulf %95, %99 : vector<8x8xf32>
    %cst_35 = arith.constant dense<0.000000e+00> : vector<8x8xf32>
    %101 = tpu.matmul %100, %85, %cst_35 {dimension_numbers = #tpu.dot_dimension_numbers<[1], [0], [0], [1], [0, 0, 1, 1], [], []>} : vector<8x8xf32>, vector<8x8xf32>, vector<8x8xf32> -> vector<8x8xf32>
    %102 = vector.extract_strided_slice %41 {offsets = [0, 24], sizes = [8, 8], strides = [1, 1]} : vector<8x32xf32> to vector<8x8xf32>
    %103 = vector.extract_strided_slice %42 {offsets = [0, 24], sizes = [8, 8], strides = [1, 1]} : vector<8x32xf32> to vector<8x8xf32>
    %104 = vector.extract_strided_slice %43 {offsets = [0, 24], sizes = [8, 8], strides = [1, 1]} : vector<8x32xf32> to vector<8x8xf32>
    %cst_36 = arith.constant dense<0.000000e+00> : vector<8x8xf32>
    %105 = tpu.matmul %102, %103, %cst_36 {dimension_numbers = #tpu.dot_dimension_numbers<[1], [1], [0], [0], [0, 0, 1, 0], [], []>} : vector<8x8xf32>, vector<8x8xf32>, vector<8x8xf32> -> vector<8x8xf32>
    %cst_37 = arith.constant 0.353553385 : f32
    %106 = vector.broadcast %cst_37 : f32 to vector<8x8xf32>
    %107 = arith.mulf %105, %106 : vector<8x8xf32>
    %108 = vector.broadcast %44 : vector<1x8xf32> to vector<8x8xf32>
    %109 = arith.addf %107, %108 : vector<8x8xf32>
    %cst_38 = arith.constant dense<0xFF800000> : vector<8xf32>
    %110 = vector.multi_reduction <maximumf>, %109, %cst_38 [1] : vector<8x8xf32> to vector<8xf32>
    %111 = vector.shape_cast %110 : vector<8xf32> to vector<8x1xf32>
    %112 = vector.broadcast %111 : vector<8x1xf32> to vector<8x8xf32>
    %113 = arith.subf %109, %112 : vector<8x8xf32>
    %114 = math.exp %113 : vector<8x8xf32>
    %cst_39 = arith.constant dense<0.000000e+00> : vector<8xf32>
    %115 = vector.multi_reduction <add>, %114, %cst_39 [1] : vector<8x8xf32> to vector<8xf32>
    %116 = vector.shape_cast %115 : vector<8xf32> to vector<8x1xf32>
    %117 = tpu.reciprocal %116 {approx = true} : vector<8x1xf32> -> vector<8x1xf32>
    %118 = vector.broadcast %117 : vector<8x1xf32> to vector<8x8xf32>
    %119 = arith.mulf %114, %118 : vector<8x8xf32>
    %cst_40 = arith.constant dense<0.000000e+00> : vector<8x8xf32>
    %120 = tpu.matmul %119, %104, %cst_40 {dimension_numbers = #tpu.dot_dimension_numbers<[1], [0], [0], [1], [0, 0, 1, 1], [], []>} : vector<8x8xf32>, vector<8x8xf32>, vector<8x8xf32> -> vector<8x8xf32>
    %121 = tpu.concatenate %63, %82, %101, %120 in 1 : vector<8x8xf32>, vector<8x8xf32>, vector<8x8xf32>, vector<8x8xf32> -> vector<8x32xf32>
    %122 = vector.extract_strided_slice %38 {offsets = [8, 0], sizes = [8, 32], strides = [1, 1]} : vector<16x32xf32> to vector<8x32xf32>
    %123 = vector.extract_strided_slice %39 {offsets = [8, 0], sizes = [8, 32], strides = [1, 1]} : vector<16x32xf32> to vector<8x32xf32>
    %124 = vector.extract_strided_slice %40 {offsets = [8, 0], sizes = [8, 32], strides = [1, 1]} : vector<16x32xf32> to vector<8x32xf32>
    %125 = vector.extract_strided_slice %4 {offsets = [1, 0], sizes = [1, 8], strides = [1, 1]} : vector<2x8xf32> to vector<1x8xf32>
    %126 = vector.extract_strided_slice %122 {offsets = [0, 0], sizes = [8, 8], strides = [1, 1]} : vector<8x32xf32> to vector<8x8xf32>
    %127 = vector.extract_strided_slice %123 {offsets = [0, 0], sizes = [8, 8], strides = [1, 1]} : vector<8x32xf32> to vector<8x8xf32>
    %128 = vector.extract_strided_slice %124 {offsets = [0, 0], sizes = [8, 8], strides = [1, 1]} : vector<8x32xf32> to vector<8x8xf32>
    %cst_41 = arith.constant dense<0.000000e+00> : vector<8x8xf32>
    %129 = tpu.matmul %126, %127, %cst_41 {dimension_numbers = #tpu.dot_dimension_numbers<[1], [1], [0], [0], [0, 0, 1, 0], [], []>} : vector<8x8xf32>, vector<8x8xf32>, vector<8x8xf32> -> vector<8x8xf32>
    %cst_42 = arith.constant 0.353553385 : f32
    %130 = vector.broadcast %cst_42 : f32 to vector<8x8xf32>
    %131 = arith.mulf %129, %130 : vector<8x8xf32>
    %132 = vector.broadcast %125 : vector<1x8xf32> to vector<8x8xf32>
    %133 = arith.addf %131, %132 : vector<8x8xf32>
    %cst_43 = arith.constant dense<0xFF800000> : vector<8xf32>
    %134 = vector.multi_reduction <maximumf>, %133, %cst_43 [1] : vector<8x8xf32> to vector<8xf32>
    %135 = vector.shape_cast %134 : vector<8xf32> to vector<8x1xf32>
    %136 = vector.broadcast %135 : vector<8x1xf32> to vector<8x8xf32>
    %137 = arith.subf %133, %136 : vector<8x8xf32>
    %138 = math.exp %137 : vector<8x8xf32>
    %cst_44 = arith.constant dense<0.000000e+00> : vector<8xf32>
    %139 = vector.multi_reduction <add>, %138, %cst_44 [1] : vector<8x8xf32> to vector<8xf32>
    %140 = vector.shape_cast %139 : vector<8xf32> to vector<8x1xf32>
    %141 = tpu.reciprocal %140 {approx = true} : vector<8x1xf32> -> vector<8x1xf32>
    %142 = vector.broadcast %141 : vector<8x1xf32> to vector<8x8xf32>
    %143 = arith.mulf %138, %142 : vector<8x8xf32>
    %cst_45 = arith.constant dense<0.000000e+00> : vector<8x8xf32>
    %144 = tpu.matmul %143, %128, %cst_45 {dimension_numbers = #tpu.dot_dimension_numbers<[1], [0], [0], [1], [0, 0, 1, 1], [], []>} : vector<8x8xf32>, vector<8x8xf32>, vector<8x8xf32> -> vector<8x8xf32>
    %145 = vector.extract_strided_slice %122 {offsets = [0, 8], sizes = [8, 8], strides = [1, 1]} : vector<8x32xf32> to vector<8x8xf32>
    %146 = vector.extract_strided_slice %123 {offsets = [0, 8], sizes = [8, 8], strides = [1, 1]} : vector<8x32xf32> to vector<8x8xf32>
    %147 = vector.extract_strided_slice %124 {offsets = [0, 8], sizes = [8, 8], strides = [1, 1]} : vector<8x32xf32> to vector<8x8xf32>
    %cst_46 = arith.constant dense<0.000000e+00> : vector<8x8xf32>
    %148 = tpu.matmul %145, %146, %cst_46 {dimension_numbers = #tpu.dot_dimension_numbers<[1], [1], [0], [0], [0, 0, 1, 0], [], []>} : vector<8x8xf32>, vector<8x8xf32>, vector<8x8xf32> -> vector<8x8xf32>
    %cst_47 = arith.constant 0.353553385 : f32
    %149 = vector.broadcast %cst_47 : f32 to vector<8x8xf32>
    %150 = arith.mulf %148, %149 : vector<8x8xf32>
    %151 = vector.broadcast %125 : vector<1x8xf32> to vector<8x8xf32>
    %152 = arith.addf %150, %151 : vector<8x8xf32>
    %cst_48 = arith.constant dense<0xFF800000> : vector<8xf32>
    %153 = vector.multi_reduction <maximumf>, %152, %cst_48 [1] : vector<8x8xf32> to vector<8xf32>
    %154 = vector.shape_cast %153 : vector<8xf32> to vector<8x1xf32>
    %155 = vector.broadcast %154 : vector<8x1xf32> to vector<8x8xf32>
    %156 = arith.subf %152, %155 : vector<8x8xf32>
    %157 = math.exp %156 : vector<8x8xf32>
    %cst_49 = arith.constant dense<0.000000e+00> : vector<8xf32>
    %158 = vector.multi_reduction <add>, %157, %cst_49 [1] : vector<8x8xf32> to vector<8xf32>
    %159 = vector.shape_cast %158 : vector<8xf32> to vector<8x1xf32>
    %160 = tpu.reciprocal %159 {approx = true} : vector<8x1xf32> -> vector<8x1xf32>
    %161 = vector.broadcast %160 : vector<8x1xf32> to vector<8x8xf32>
    %162 = arith.mulf %157, %161 : vector<8x8xf32>
    %cst_50 = arith.constant dense<0.000000e+00> : vector<8x8xf32>
    %163 = tpu.matmul %162, %147, %cst_50 {dimension_numbers = #tpu.dot_dimension_numbers<[1], [0], [0], [1], [0, 0, 1, 1], [], []>} : vector<8x8xf32>, vector<8x8xf32>, vector<8x8xf32> -> vector<8x8xf32>
    %164 = vector.extract_strided_slice %122 {offsets = [0, 16], sizes = [8, 8], strides = [1, 1]} : vector<8x32xf32> to vector<8x8xf32>
    %165 = vector.extract_strided_slice %123 {offsets = [0, 16], sizes = [8, 8], strides = [1, 1]} : vector<8x32xf32> to vector<8x8xf32>
    %166 = vector.extract_strided_slice %124 {offsets = [0, 16], sizes = [8, 8], strides = [1, 1]} : vector<8x32xf32> to vector<8x8xf32>
    %cst_51 = arith.constant dense<0.000000e+00> : vector<8x8xf32>
    %167 = tpu.matmul %164, %165, %cst_51 {dimension_numbers = #tpu.dot_dimension_numbers<[1], [1], [0], [0], [0, 0, 1, 0], [], []>} : vector<8x8xf32>, vector<8x8xf32>, vector<8x8xf32> -> vector<8x8xf32>
    %cst_52 = arith.constant 0.353553385 : f32
    %168 = vector.broadcast %cst_52 : f32 to vector<8x8xf32>
    %169 = arith.mulf %167, %168 : vector<8x8xf32>
    %170 = vector.broadcast %125 : vector<1x8xf32> to vector<8x8xf32>
    %171 = arith.addf %169, %170 : vector<8x8xf32>
    %cst_53 = arith.constant dense<0xFF800000> : vector<8xf32>
    %172 = vector.multi_reduction <maximumf>, %171, %cst_53 [1] : vector<8x8xf32> to vector<8xf32>
    %173 = vector.shape_cast %172 : vector<8xf32> to vector<8x1xf32>
    %174 = vector.broadcast %173 : vector<8x1xf32> to vector<8x8xf32>
    %175 = arith.subf %171, %174 : vector<8x8xf32>
    %176 = math.exp %175 : vector<8x8xf32>
    %cst_54 = arith.constant dense<0.000000e+00> : vector<8xf32>
    %177 = vector.multi_reduction <add>, %176, %cst_54 [1] : vector<8x8xf32> to vector<8xf32>
    %178 = vector.shape_cast %177 : vector<8xf32> to vector<8x1xf32>
    %179 = tpu.reciprocal %178 {approx = true} : vector<8x1xf32> -> vector<8x1xf32>
    %180 = vector.broadcast %179 : vector<8x1xf32> to vector<8x8xf32>
    %181 = arith.mulf %176, %180 : vector<8x8xf32>
    %cst_55 = arith.constant dense<0.000000e+00> : vector<8x8xf32>
    %182 = tpu.matmul %181, %166, %cst_55 {dimension_numbers = #tpu.dot_dimension_numbers<[1], [0], [0], [1], [0, 0, 1, 1], [], []>} : vector<8x8xf32>, vector<8x8xf32>, vector<8x8xf32> -> vector<8x8xf32>
    %183 = vector.extract_strided_slice %122 {offsets = [0, 24], sizes = [8, 8], strides = [1, 1]} : vector<8x32xf32> to vector<8x8xf32>
    %184 = vector.extract_strided_slice %123 {offsets = [0, 24], sizes = [8, 8], strides = [1, 1]} : vector<8x32xf32> to vector<8x8xf32>
    %185 = vector.extract_strided_slice %124 {offsets = [0, 24], sizes = [8, 8], strides = [1, 1]} : vector<8x32xf32> to vector<8x8xf32>
    %cst_56 = arith.constant dense<0.000000e+00> : vector<8x8xf32>
    %186 = tpu.matmul %183, %184, %cst_56 {dimension_numbers = #tpu.dot_dimension_numbers<[1], [1], [0], [0], [0, 0, 1, 0], [], []>} : vector<8x8xf32>, vector<8x8xf32>, vector<8x8xf32> -> vector<8x8xf32>
    %cst_57 = arith.constant 0.353553385 : f32
    %187 = vector.broadcast %cst_57 : f32 to vector<8x8xf32>
    %188 = arith.mulf %186, %187 : vector<8x8xf32>
    %189 = vector.broadcast %125 : vector<1x8xf32> to vector<8x8xf32>
    %190 = arith.addf %188, %189 : vector<8x8xf32>
    %cst_58 = arith.constant dense<0xFF800000> : vector<8xf32>
    %191 = vector.multi_reduction <maximumf>, %190, %cst_58 [1] : vector<8x8xf32> to vector<8xf32>
    %192 = vector.shape_cast %191 : vector<8xf32> to vector<8x1xf32>
    %193 = vector.broadcast %192 : vector<8x1xf32> to vector<8x8xf32>
    %194 = arith.subf %190, %193 : vector<8x8xf32>
    %195 = math.exp %194 : vector<8x8xf32>
    %cst_59 = arith.constant dense<0.000000e+00> : vector<8xf32>
    %196 = vector.multi_reduction <add>, %195, %cst_59 [1] : vector<8x8xf32> to vector<8xf32>
    %197 = vector.shape_cast %196 : vector<8xf32> to vector<8x1xf32>
    %198 = tpu.reciprocal %197 {approx = true} : vector<8x1xf32> -> vector<8x1xf32>
    %199 = vector.broadcast %198 : vector<8x1xf32> to vector<8x8xf32>
    %200 = arith.mulf %195, %199 : vector<8x8xf32>
    %cst_60 = arith.constant dense<0.000000e+00> : vector<8x8xf32>
    %201 = tpu.matmul %200, %185, %cst_60 {dimension_numbers = #tpu.dot_dimension_numbers<[1], [0], [0], [1], [0, 0, 1, 1], [], []>} : vector<8x8xf32>, vector<8x8xf32>, vector<8x8xf32> -> vector<8x8xf32>
    %202 = tpu.concatenate %144, %163, %182, %201 in 1 : vector<8x8xf32>, vector<8x8xf32>, vector<8x8xf32>, vector<8x8xf32> -> vector<8x32xf32>
    %203 = tpu.concatenate %121, %202 in 0 : vector<8x32xf32>, vector<8x32xf32> -> vector<16x32xf32>
    %c0_61 = arith.constant 0 : index
    %c0_62 = arith.constant 0 : index
    %c0_63 = arith.constant 0 : index
    %204 = vector.load %arg5[%c0_61, %c0_62, %c0_63] : memref<1x32x32xf32, #tpu.memory_space<vmem>>, vector<1x32x32xf32>
    %205 = vector.shape_cast %204 : vector<1x32x32xf32> to vector<32x32xf32>
    %cst_64 = arith.constant dense<0.000000e+00> : vector<16x32xf32>
    %206 = tpu.matmul %203, %205, %cst_64 {dimension_numbers = #tpu.dot_dimension_numbers<[1], [0], [0], [1], [0, 0, 1, 1], [], []>} : vector<16x32xf32>, vector<32x32xf32>, vector<16x32xf32> -> vector<16x32xf32>
    %c0_65 = arith.constant 0 : index
    %c0_66 = arith.constant 0 : index
    %c0_67 = arith.constant 0 : index
    %207 = vector.load %arg6[%c0_65, %c0_66, %c0_67] : memref<1x1x32xf32, #tpu.memory_space<vmem>>, vector<1x1x32xf32>
    %208 = vector.shape_cast %207 : vector<1x1x32xf32> to vector<1x32xf32>
    %209 = vector.broadcast %208 : vector<1x32xf32> to vector<16x32xf32>
    %210 = arith.addf %206, %209 : vector<16x32xf32>
    %211 = arith.addf %3, %210 : vector<16x32xf32>
    %c0_68 = arith.constant 0 : index
    %c0_69 = arith.constant 0 : index
    %c0_70 = arith.constant 0 : index
    %212 = vector.load %arg13[%c0_68, %c0_69, %c0_70] : memref<1x1x32xf32, #tpu.memory_space<vmem>>, vector<1x1x32xf32>
    %213 = vector.shape_cast %212 : vector<1x1x32xf32> to vector<1x32xf32>
    %c0_71 = arith.constant 0 : index
    %c0_72 = arith.constant 0 : index
    %c0_73 = arith.constant 0 : index
    %214 = vector.load %arg14[%c0_71, %c0_72, %c0_73] : memref<1x1x32xf32, #tpu.memory_space<vmem>>, vector<1x1x32xf32>
    %215 = vector.shape_cast %214 : vector<1x1x32xf32> to vector<1x32xf32>
    %cst_74 = arith.constant dense<0.000000e+00> : vector<16xf32>
    %216 = vector.multi_reduction <add>, %211, %cst_74 [1] : vector<16x32xf32> to vector<16xf32>
    %217 = vector.shape_cast %216 : vector<16xf32> to vector<16x1xf32>
    %cst_75 = arith.constant 3.200000e+01 : f32
    %218 = vector.broadcast %cst_75 : f32 to vector<16x1xf32>
    %219 = arith.divf %217, %218 : vector<16x1xf32>
    %220 = vector.broadcast %219 : vector<16x1xf32> to vector<16x32xf32>
    %221 = arith.subf %211, %220 : vector<16x32xf32>
    %222 = arith.mulf %221, %221 : vector<16x32xf32>
    %cst_76 = arith.constant dense<0.000000e+00> : vector<16xf32>
    %223 = vector.multi_reduction <add>, %222, %cst_76 [1] : vector<16x32xf32> to vector<16xf32>
    %224 = vector.shape_cast %223 : vector<16xf32> to vector<16x1xf32>
    %cst_77 = arith.constant 3.100000e+01 : f32
    %225 = vector.broadcast %cst_77 : f32 to vector<16x1xf32>
    %226 = arith.divf %224, %225 : vector<16x1xf32>
    %227 = math.sqrt %226 : vector<16x1xf32>
    %228 = vector.broadcast %219 : vector<16x1xf32> to vector<16x32xf32>
    %229 = arith.subf %211, %228 : vector<16x32xf32>
    %230 = vector.broadcast %213 : vector<1x32xf32> to vector<16x32xf32>
    %231 = arith.mulf %230, %229 : vector<16x32xf32>
    %cst_78 = arith.constant 9.99999997E-7 : f32
    %232 = vector.broadcast %cst_78 : f32 to vector<16x1xf32>
    %233 = arith.addf %227, %232 : vector<16x1xf32>
    %234 = vector.broadcast %233 : vector<16x1xf32> to vector<16x32xf32>
    %235 = arith.divf %231, %234 : vector<16x32xf32>
    %236 = vector.broadcast %215 : vector<1x32xf32> to vector<16x32xf32>
    %237 = arith.addf %235, %236 : vector<16x32xf32>
    %c0_79 = arith.constant 0 : index
    %c0_80 = arith.constant 0 : index
    %c0_81 = arith.constant 0 : index
    %238 = vector.load %arg9[%c0_79, %c0_80, %c0_81] : memref<1x32x64xf32, #tpu.memory_space<vmem>>, vector<1x32x64xf32>
    %239 = vector.shape_cast %238 : vector<1x32x64xf32> to vector<32x64xf32>
    %cst_82 = arith.constant dense<0.000000e+00> : vector<16x64xf32>
    %240 = tpu.matmul %237, %239, %cst_82 {dimension_numbers = #tpu.dot_dimension_numbers<[1], [0], [0], [1], [0, 0, 1, 1], [], []>} : vector<16x32xf32>, vector<32x64xf32>, vector<16x64xf32> -> vector<16x64xf32>
    %c0_83 = arith.constant 0 : index
    %c0_84 = arith.constant 0 : index
    %c0_85 = arith.constant 0 : index
    %241 = vector.load %arg10[%c0_83, %c0_84, %c0_85] : memref<1x1x64xf32, #tpu.memory_space<vmem>>, vector<1x1x64xf32>
    %242 = vector.shape_cast %241 : vector<1x1x64xf32> to vector<1x64xf32>
    %243 = vector.broadcast %242 : vector<1x64xf32> to vector<16x64xf32>
    %244 = arith.addf %240, %243 : vector<16x64xf32>
    %cst_86 = arith.constant 0.000000e+00 : f32
    %245 = vector.broadcast %cst_86 : f32 to vector<16x64xf32>
    %246 = arith.maximumf %244, %245 : vector<16x64xf32>
    %c0_87 = arith.constant 0 : index
    %c0_88 = arith.constant 0 : index
    %c0_89 = arith.constant 0 : index
    %247 = vector.load %arg11[%c0_87, %c0_88, %c0_89] : memref<1x64x32xf32, #tpu.memory_space<vmem>>, vector<1x64x32xf32>
    %248 = vector.shape_cast %247 : vector<1x64x32xf32> to vector<64x32xf32>
    %cst_90 = arith.constant dense<0.000000e+00> : vector<16x32xf32>
    %249 = tpu.matmul %246, %248, %cst_90 {dimension_numbers = #tpu.dot_dimension_numbers<[1], [0], [0], [1], [0, 0, 1, 1], [], []>} : vector<16x64xf32>, vector<64x32xf32>, vector<16x32xf32> -> vector<16x32xf32>
    %250 = arith.addf %211, %249 : vector<16x32xf32>
    %c0_91 = arith.constant 0 : index
    %c0_92 = arith.constant 0 : index
    %c0_93 = arith.constant 0 : index
    %251 = vector.load %arg12[%c0_91, %c0_92, %c0_93] : memref<1x1x32xf32, #tpu.memory_space<vmem>>, vector<1x1x32xf32>
    %252 = vector.shape_cast %251 : vector<1x1x32xf32> to vector<1x32xf32>
    %253 = vector.broadcast %252 : vector<1x32xf32> to vector<16x32xf32>
    %254 = arith.addf %250, %253 : vector<16x32xf32>
    %c0_94 = arith.constant 0 : index
    %c0_95 = arith.constant 0 : index
    %255 = vector.load %arg18[%c0_94, %c0_95] : memref<16x32xf32, #tpu.memory_space<vmem>>, vector<16x32xf32>
    tpu.vector_store %arg18[%c0_94, %c0_95], %254 {strides = array<i32>} : memref<16x32xf32, #tpu.memory_space<vmem>>, vector<16x32xf32>,
    %c1_i32 = arith.constant 1 : i32
    %256 = arith.cmpi eq, %arg0, %c1_i32 : i32
    %257 = arith.extui %256 : i1 to i32
    %c0_i32_96 = arith.constant 0 : i32
    %258 = arith.cmpi ne, %257, %c0_i32_96 : i32
    scf.if %258 {
      %c0_97 = arith.constant 0 : index
      %c0_98 = arith.constant 0 : index
      %259 = vector.load %arg15[%c0_97, %c0_98] : memref<1x32xf32, #tpu.memory_space<vmem>>, vector<1x32xf32>
      %c0_99 = arith.constant 0 : index
      %c0_100 = arith.constant 0 : index
      %260 = vector.load %arg16[%c0_99, %c0_100] : memref<1x32xf32, #tpu.memory_space<vmem>>, vector<1x32xf32>
      %cst_101 = arith.constant dense<0.000000e+00> : vector<16xf32>
      %261 = vector.multi_reduction <add>, %254, %cst_101 [1] : vector<16x32xf32> to vector<16xf32>
      %262 = vector.shape_cast %261 : vector<16xf32> to vector<16x1xf32>
      %cst_102 = arith.constant 3.200000e+01 : f32
      %263 = vector.broadcast %cst_102 : f32 to vector<16x1xf32>
      %264 = arith.divf %262, %263 : vector<16x1xf32>
      %265 = vector.broadcast %264 : vector<16x1xf32> to vector<16x32xf32>
      %266 = arith.subf %254, %265 : vector<16x32xf32>
      %267 = arith.mulf %266, %266 : vector<16x32xf32>
      %cst_103 = arith.constant dense<0.000000e+00> : vector<16xf32>
      %268 = vector.multi_reduction <add>, %267, %cst_103 [1] : vector<16x32xf32> to vector<16xf32>
      %269 = vector.shape_cast %268 : vector<16xf32> to vector<16x1xf32>
      %cst_104 = arith.constant 3.100000e+01 : f32
      %270 = vector.broadcast %cst_104 : f32 to vector<16x1xf32>
      %271 = arith.divf %269, %270 : vector<16x1xf32>
      %272 = math.sqrt %271 : vector<16x1xf32>
      %273 = vector.broadcast %264 : vector<16x1xf32> to vector<16x32xf32>
      %274 = arith.subf %254, %273 : vector<16x32xf32>
      %275 = vector.broadcast %259 : vector<1x32xf32> to vector<16x32xf32>
      %276 = arith.mulf %275, %274 : vector<16x32xf32>
      %cst_105 = arith.constant 9.99999997E-7 : f32
      %277 = vector.broadcast %cst_105 : f32 to vector<16x1xf32>
      %278 = arith.addf %272, %277 : vector<16x1xf32>
      %279 = vector.broadcast %278 : vector<16x1xf32> to vector<16x32xf32>
      %280 = arith.divf %276, %279 : vector<16x32xf32>
      %281 = vector.broadcast %260 : vector<1x32xf32> to vector<16x32xf32>
      %282 = arith.addf %280, %281 : vector<16x32xf32>
      %c0_106 = arith.constant 0 : index
      %c0_107 = arith.constant 0 : index
      %283 = vector.load %arg17[%c0_106, %c0_107] : memref<16x32xf32, #tpu.memory_space<vmem>>, vector<16x32xf32>
      tpu.vector_store %arg17[%c0_106, %c0_107], %282 {strides = array<i32>} : memref<16x32xf32, #tpu.memory_space<vmem>>, vector<16x32xf32>,
    } else {
    }
    return
  }
  func.func @transform_0(%arg0: i32) -> (i32, i32) {
    %c0_i32 = arith.constant 0 : i32
    %c0_i32_0 = arith.constant 0 : i32
    %c0_i32_1 = arith.constant 0 : i32
    return %c0_i32, %c0_i32_0 : i32, i32
  }
  func.func @transform_1(%arg0: i32) -> (i32, i32) {
    %c0_i32 = arith.constant 0 : i32
    %c0_i32_0 = arith.constant 0 : i32
    %c0_i32_1 = arith.constant 0 : i32
    return %c0_i32, %c0_i32_0 : i32, i32
  }
  func.func @transform_2(%arg0: i32) -> (i32, i32, i32) {
    %c0_i32 = arith.constant 0 : i32
    %c0_i32_0 = arith.constant 0 : i32
    %c0_i32_1 = arith.constant 0 : i32
    return %arg0, %c0_i32, %c0_i32_0 : i32, i32, i32
  }
  func.func @transform_3(%arg0: i32) -> (i32, i32, i32) {
    %c0_i32 = arith.constant 0 : i32
    %c0_i32_0 = arith.constant 0 : i32
    %c0_i32_1 = arith.constant 0 : i32
    return %arg0, %c0_i32, %c0_i32_0 : i32, i32, i32
  }
  func.func @transform_4(%arg0: i32) -> (i32, i32, i32) {
    %c0_i32 = arith.constant 0 : i32
    %c0_i32_0 = arith.constant 0 : i32
    %c0_i32_1 = arith.constant 0 : i32
    return %arg0, %c0_i32, %c0_i32_0 : i32, i32, i32
  }
  func.func @transform_5(%arg0: i32) -> (i32, i32, i32) {
    %c0_i32 = arith.constant 0 : i32
    %c0_i32_0 = arith.constant 0 : i32
    %c0_i32_1 = arith.constant 0 : i32
    return %arg0, %c0_i32, %c0_i32_0 : i32, i32, i32
  }
  func.func @transform_6(%arg0: i32) -> (i32, i32, i32) {
    %c0_i32 = arith.constant 0 : i32
    %c0_i32_0 = arith.constant 0 : i32
    %c0_i32_1 = arith.constant 0 : i32
    return %arg0, %c0_i32, %c0_i32_0 : i32, i32, i32
  }
  func.func @transform_7(%arg0: i32) -> (i32, i32, i32) {
    %c0_i32 = arith.constant 0 : i32
    %c0_i32_0 = arith.constant 0 : i32
    %c0_i32_1 = arith.constant 0 : i32
    return %arg0, %c0_i32, %c0_i32_0 : i32, i32, i32
  }
  func.func @transform_8(%arg0: i32) -> (i32, i32, i32) {
    %c0_i32 = arith.constant 0 : i32
    %c0_i32_0 = arith.constant 0 : i32
    %c0_i32_1 = arith.constant 0 : i32
    return %arg0, %c0_i32, %c0_i32_0 : i32, i32, i32
  }
  func.func @transform_9(%arg0: i32) -> (i32, i32, i32) {
    %c0_i32 = arith.constant 0 : i32
    %c0_i32_0 = arith.constant 0 : i32
    %c0_i32_1 = arith.constant 0 : i32
    return %arg0, %c0_i32, %c0_i32_0 : i32, i32, i32
  }
  func.func @transform_10(%arg0: i32) -> (i32, i32, i32) {
    %c0_i32 = arith.constant 0 : i32
    %c0_i32_0 = arith.constant 0 : i32
    %c0_i32_1 = arith.constant 0 : i32
    return %arg0, %c0_i32, %c0_i32_0 : i32, i32, i32
  }
  func.func @transform_11(%arg0: i32) -> (i32, i32, i32) {
    %c0_i32 = arith.constant 0 : i32
    %c0_i32_0 = arith.constant 0 : i32
    %c0_i32_1 = arith.constant 0 : i32
    return %arg0, %c0_i32, %c0_i32_0 : i32, i32, i32
  }
  func.func @transform_12(%arg0: i32) -> (i32, i32, i32) {
    %c0_i32 = arith.constant 0 : i32
    %c0_i32_0 = arith.constant 0 : i32
    %c0_i32_1 = arith.constant 0 : i32
    return %arg0, %c0_i32, %c0_i32_0 : i32, i32, i32
  }
  func.func @transform_13(%arg0: i32) -> (i32, i32, i32) {
    %c0_i32 = arith.constant 0 : i32
    %c0_i32_0 = arith.constant 0 : i32
    %c0_i32_1 = arith.constant 0 : i32
    return %arg0, %c0_i32, %c0_i32_0 : i32, i32, i32
  }
  func.func @transform_14(%arg0: i32) -> (i32, i32) {
    %c0_i32 = arith.constant 0 : i32
    %c0_i32_0 = arith.constant 0 : i32
    %c0_i32_1 = arith.constant 0 : i32
    return %c0_i32, %c0_i32_0 : i32, i32
  }
  func.func @transform_15(%arg0: i32) -> (i32, i32) {
    %c0_i32 = arith.constant 0 : i32
    %c0_i32_0 = arith.constant 0 : i32
    %c0_i32_1 = arith.constant 0 : i32
    return %c0_i32, %c0_i32_0 : i32, i32
  }
  func.func @transform_16(%arg0: i32) -> (i32, i32) {
    %c0_i32 = arith.constant 0 : i32
    %c0_i32_0 = arith.constant 0 : i32
    %c0_i32_1 = arith.constant 0 : i32
    return %c0_i32, %c0_i32_0 : i32, i32
  }
}

</mosaic_0001>

<llo_original>
// kernel: tpu_custom_call.1
$region0: #{tpu_custom_call.1}
  #allocation0 [shape = 'u32[]', space=smem, size = 0x4, offset = 0x4, fixed_abs, tag = 'smem constant byte address 0x4 - core index']
  #allocation1 [shape = 'u32[144,128]{1,0:T(1,128)}', space=vmem, size = 0x12000, scoped, tag = 'internal scratch']
  #allocation2 [shape = 'f32[16,32]{1,0:T(8,128)}', space=vmem, size = 0x2000, scoped, tag = 'scratch operand']
  %s0 = inlined_call_operand.hbm [shape: f32[16,32], index: 0, kind: input, shape index: {}]
  %s1 = inlined_call_operand.vmem [shape: f32[2,8], index: 1, kind: input, shape index: {}]
  %s2 = inlined_call_operand.vmem [shape: f32[2,32,96], index: 2, kind: input, shape index: {}]
  %s3 = inlined_call_operand.vmem [shape: f32[2,1,96], index: 3, kind: input, shape index: {}]
  %s4 = inlined_call_operand.vmem [shape: f32[2,32,32], index: 4, kind: input, shape index: {}]
  %s5 = inlined_call_operand.vmem [shape: f32[2,1,32], index: 5, kind: input, shape index: {}]
  %s6 = inlined_call_operand.vmem [shape: f32[2,1,32], index: 6, kind: input, shape index: {}]
  %s7 = inlined_call_operand.vmem [shape: f32[2,1,32], index: 7, kind: input, shape index: {}]
  %s8 = inlined_call_operand.vmem [shape: f32[2,32,64], index: 8, kind: input, shape index: {}]
  %s9 = inlined_call_operand.vmem [shape: f32[2,1,64], index: 9, kind: input, shape index: {}]
  %s10 = inlined_call_operand.vmem [shape: f32[2,64,32], index: 10, kind: input, shape index: {}]
  %s11 = inlined_call_operand.vmem [shape: f32[2,1,32], index: 11, kind: input, shape index: {}]
  %s12 = inlined_call_operand.vmem [shape: f32[2,1,32], index: 12, kind: input, shape index: {}]
  %s13 = inlined_call_operand.vmem [shape: f32[2,1,32], index: 13, kind: input, shape index: {}]
  %s14 = inlined_call_operand.vmem [shape: f32[1,32], index: 14, kind: input, shape index: {}]
  %s15 = inlined_call_operand.vmem [shape: f32[1,32], index: 15, kind: input, shape index: {}]
  %s16 = inlined_call_operand.hbm [shape: f32[16,32], index: 16, kind: output, shape index: {}]
  %s17 = sld [smem:[#allocation0]]
  $region109: #{tpu_custom_call.1} parent=0
    _
  %s19 = ssub.s32 1, %s17
  %s20 = scalar_select 0, %s19, %s17
  $region1: #{tpu_custom_call.1} parent=0
    #allocation3 [shape = 'u8[8192]{0}', space=vmem, size = 0x2000, scoped, tag = 'input window, operand 0, single buffered']
    #allocation4 [shape = 's32[2]{0}', space=sflag, size = 0x8, scoped, tag = 'scoped memory for tpu_custom_call.1']
    #allocation5 [shape = 's32[2]{0}', space=sflag, size = 0x8, scoped, tag = 'scoped memory for tpu_custom_call.1']
    #allocation6 [shape = 'u8[8192]{0}', space=vmem, size = 0x2000, scoped, tag = 'output window, operand 0, single buffered']
    %21 = vsyncpa [#allocation4], 0
    %22 = vsyncpa [#allocation5], 0
    loop: start=0, step=1, limit=4
    $region2: #{tpu_custom_call.1} parent=1 // loop_pre_header
      _
    $region3: #{tpu_custom_call.1} parent=1 // loop_header
      %s24 = sphi 0, %s28
      %p25 = scmp.ge.s32.totalorder %s24, 4
      %s32 = sphi 0, %s32
      %s34 = sphi 0, %s32
      %s35 = sphi 0, %s34
      %s49 = sphi 0, %s35
      %s53 = sphi 0, %s53
      %s55 = sphi 0, %s53
      %s56 = sphi 0, %s55
      %s70 = sphi 0, %s56
      %s76 = sphi 0, %s78
      %s79 = sphi 0, %s76
      %s80 = sphi 0, %s79
      %s96 = sphi 0, %s80
      %s102 = sphi 0, %s104
      %s105 = sphi 0, %s102
      %s106 = sphi 0, %s105
      %s122 = sphi 0, %s106
      %s128 = sphi 0, %s130
      %s131 = sphi 0, %s128
      %s132 = sphi 0, %s131
      %s148 = sphi 0, %s132
      %s154 = sphi 0, %s156
      %s157 = sphi 0, %s154
      %s158 = sphi 0, %s157
      %s174 = sphi 0, %s158
      %s180 = sphi 0, %s182
      %s183 = sphi 0, %s180
      %s184 = sphi 0, %s183
      %s200 = sphi 0, %s184
      %s206 = sphi 0, %s208
      %s209 = sphi 0, %s206
      %s210 = sphi 0, %s209
      %s226 = sphi 0, %s210
      %s232 = sphi 0, %s234
      %s235 = sphi 0, %s232
      %s236 = sphi 0, %s235
      %s252 = sphi 0, %s236
      %s258 = sphi 0, %s260
      %s261 = sphi 0, %s258
      %s262 = sphi 0, %s261
      %s278 = sphi 0, %s262
      %s284 = sphi 0, %s286
      %s287 = sphi 0, %s284
      %s288 = sphi 0, %s287
      %s304 = sphi 0, %s288
      %s310 = sphi 0, %s312
      %s313 = sphi 0, %s310
      %s314 = sphi 0, %s313
      %s330 = sphi 0, %s314
      %s336 = sphi 0, %s338
      %s339 = sphi 0, %s336
      %s340 = sphi 0, %s339
      %s356 = sphi 0, %s340
      %s362 = sphi 0, %s364
      %s365 = sphi 0, %s362
      %s366 = sphi 0, %s365
      %s382 = sphi 0, %s366
      %s386 = sphi 0, %s386
      %s388 = sphi 0, %s386
      %s389 = sphi 0, %s388
      %s403 = sphi 0, %s389
      %s407 = sphi 0, %s407
      %s409 = sphi 0, %s407
      %s410 = sphi 0, %s409
      %s424 = sphi 0, %s410
      %s428 = sphi 0, %s428
      %s430 = sphi 0, %s428
      %s431 = sphi 0, %s430
      %s445 = sphi 0, %s431
    $region4: #{tpu_custom_call.1} parent=1 // loop_header_branch
      %27 = sbr.rel (%p25) target = $region8
    $region5: #{tpu_custom_call.1} parent=1 // loop_body
      %s29 = ssub.s32 %s24, 1
      %s30 = ssub.s32 %s24, 2
      %s31 = sadd.s32 %s24, 1
      %s33 = sadd.s32 %s32, 1
      %p36 = scmp.eq.s32.totalorder %s24, 1
      %p37 = scmp.ne.s32.totalorder %s32, %s34
      %p38 = scmp.eq.s32.totalorder %s24, 0
      %p39 = por %p37, %p38
      %p40 = scmp.ne.s32.totalorder %s32, %s34
      %p41 = scmp.eq.s32.totalorder %s29, 1
      %p42 = por %p40, %p41
      %p43 = scmp.ne.s32.totalorder %s34, %s35
      %p44 = scmp.eq.s32.totalorder %s29, 0
      %p45 = por %p43, %p44
      %p46 = scmp.ne.s32.totalorder %s34, %s35
      %p47 = scmp.eq.s32.totalorder %s30, 1
      %p48 = por %p46, %p47
      %p50 = scmp.ne.s32.totalorder %s35, %s49
      %p51 = scmp.eq.s32.totalorder %s30, 0
      %p52 = por %p50, %p51
      %s54 = sadd.s32 %s53, 1
      %p57 = scmp.eq.s32.totalorder %s24, 1
      %p58 = scmp.ne.s32.totalorder %s53, %s55
      %p59 = scmp.eq.s32.totalorder %s24, 0
      %p60 = por %p58, %p59
      %p61 = scmp.ne.s32.totalorder %s53, %s55
      %p62 = scmp.eq.s32.totalorder %s29, 1
      %p63 = por %p61, %p62
      %p64 = scmp.ne.s32.totalorder %s55, %s56
      %p65 = scmp.eq.s32.totalorder %s29, 0
      %p66 = por %p64, %p65
      %p67 = scmp.ne.s32.totalorder %s55, %s56
      %p68 = scmp.eq.s32.totalorder %s30, 1
      %p69 = por %p67, %p68
      %p71 = scmp.ne.s32.totalorder %s56, %s70
      %p72 = scmp.eq.s32.totalorder %s30, 0
      %p73 = por %p71, %p72
      %s74 = ssub.s32 %s24, %s31
      %p75 = scmp.eq.s32.totalorder %s74, 0
      %s77 = sadd.s32 %s76, 1
      %s78 = scalar_select %p75, %s76, %s77
      %p81 = pneg %p75
      %p82 = scmp.eq.s32.totalorder %s24, 1
      %p83 = por %p81, %p82
      %p84 = scmp.ne.s32.totalorder %s76, %s79
      %p85 = scmp.eq.s32.totalorder %s24, 0
      %p86 = por %p84, %p85
      %p87 = scmp.ne.s32.totalorder %s76, %s79
      %p88 = scmp.eq.s32.totalorder %s29, 1
      %p89 = por %p87, %p88
      %p90 = scmp.ne.s32.totalorder %s79, %s80
      %p91 = scmp.eq.s32.totalorder %s29, 0
      %p92 = por %p90, %p91
      %p93 = scmp.ne.s32.totalorder %s79, %s80
      %p94 = scmp.eq.s32.totalorder %s30, 1
      %p95 = por %p93, %p94
      %p97 = scmp.ne.s32.totalorder %s80, %s96
      %p98 = scmp.eq.s32.totalorder %s30, 0
      %p99 = por %p97, %p98
      %s100 = ssub.s32 %s24, %s31
      %p101 = scmp.eq.s32.totalorder %s100, 0
      %s103 = sadd.s32 %s102, 1
      %s104 = scalar_select %p101, %s102, %s103
      %p107 = pneg %p101
      %p108 = scmp.eq.s32.totalorder %s24, 1
      %p109 = por %p107, %p108
      %p110 = scmp.ne.s32.totalorder %s102, %s105
      %p111 = scmp.eq.s32.totalorder %s24, 0
      %p112 = por %p110, %p111
      %p113 = scmp.ne.s32.totalorder %s102, %s105
      %p114 = scmp.eq.s32.totalorder %s29, 1
      %p115 = por %p113, %p114
      %p116 = scmp.ne.s32.totalorder %s105, %s106
      %p117 = scmp.eq.s32.totalorder %s29, 0
      %p118 = por %p116, %p117
      %p119 = scmp.ne.s32.totalorder %s105, %s106
      %p120 = scmp.eq.s32.totalorder %s30, 1
      %p121 = por %p119, %p120
      %p123 = scmp.ne.s32.totalorder %s106, %s122
      %p124 = scmp.eq.s32.totalorder %s30, 0
      %p125 = por %p123, %p124
      %s126 = ssub.s32 %s24, %s31
      %p127 = scmp.eq.s32.totalorder %s126, 0
      %s129 = sadd.s32 %s128, 1
      %s130 = scalar_select %p127, %s128, %s129
      %p133 = pneg %p127
      %p134 = scmp.eq.s32.totalorder %s24, 1
      %p135 = por %p133, %p134
      %p136 = scmp.ne.s32.totalorder %s128, %s131
      %p137 = scmp.eq.s32.totalorder %s24, 0
      %p138 = por %p136, %p137
      %p139 = scmp.ne.s32.totalorder %s128, %s131
      %p140 = scmp.eq.s32.totalorder %s29, 1
      %p141 = por %p139, %p140
      %p142 = scmp.ne.s32.totalorder %s131, %s132
      %p143 = scmp.eq.s32.totalorder %s29, 0
      %p144 = por %p142, %p143
      %p145 = scmp.ne.s32.totalorder %s131, %s132
      %p146 = scmp.eq.s32.totalorder %s30, 1
      %p147 = por %p145, %p146
      %p149 = scmp.ne.s32.totalorder %s132, %s148
      %p150 = scmp.eq.s32.totalorder %s30, 0
      %p151 = por %p149, %p150
      %s152 = ssub.s32 %s24, %s31
      %p153 = scmp.eq.s32.totalorder %s152, 0
      %s155 = sadd.s32 %s154, 1
      %s156 = scalar_select %p153, %s154, %s155
      %p159 = pneg %p153
      %p160 = scmp.eq.s32.totalorder %s24, 1
      %p161 = por %p159, %p160
      %p162 = scmp.ne.s32.totalorder %s154, %s157
      %p163 = scmp.eq.s32.totalorder %s24, 0
      %p164 = por %p162, %p163
      %p165 = scmp.ne.s32.totalorder %s154, %s157
      %p166 = scmp.eq.s32.totalorder %s29, 1
      %p167 = por %p165, %p166
      %p168 = scmp.ne.s32.totalorder %s157, %s158
      %p169 = scmp.eq.s32.totalorder %s29, 0
      %p170 = por %p168, %p169
      %p171 = scmp.ne.s32.totalorder %s157, %s158
      %p172 = scmp.eq.s32.totalorder %s30, 1
      %p173 = por %p171, %p172
      %p175 = scmp.ne.s32.totalorder %s158, %s174
      %p176 = scmp.eq.s32.totalorder %s30, 0
      %p177 = por %p175, %p176
      %s178 = ssub.s32 %s24, %s31
      %p179 = scmp.eq.s32.totalorder %s178, 0
      %s181 = sadd.s32 %s180, 1
      %s182 = scalar_select %p179, %s180, %s181
      %p185 = pneg %p179
      %p186 = scmp.eq.s32.totalorder %s24, 1
      %p187 = por %p185, %p186
      %p188 = scmp.ne.s32.totalorder %s180, %s183
      %p189 = scmp.eq.s32.totalorder %s24, 0
      %p190 = por %p188, %p189
      %p191 = scmp.ne.s32.totalorder %s180, %s183
      %p192 = scmp.eq.s32.totalorder %s29, 1
      %p193 = por %p191, %p192
      %p194 = scmp.ne.s32.totalorder %s183, %s184
      %p195 = scmp.eq.s32.totalorder %s29, 0
      %p196 = por %p194, %p195
      %p197 = scmp.ne.s32.totalorder %s183, %s184
      %p198 = scmp.eq.s32.totalorder %s30, 1
      %p199 = por %p197, %p198
      %p201 = scmp.ne.s32.totalorder %s184, %s200
      %p202 = scmp.eq.s32.totalorder %s30, 0
      %p203 = por %p201, %p202
      %s204 = ssub.s32 %s24, %s31
      %p205 = scmp.eq.s32.totalorder %s204, 0
      %s207 = sadd.s32 %s206, 1
      %s208 = scalar_select %p205, %s206, %s207
      %p211 = pneg %p205
      %p212 = scmp.eq.s32.totalorder %s24, 1
      %p213 = por %p211, %p212
      %p214 = scmp.ne.s32.totalorder %s206, %s209
      %p215 = scmp.eq.s32.totalorder %s24, 0
      %p216 = por %p214, %p215
      %p217 = scmp.ne.s32.totalorder %s206, %s209
      %p218 = scmp.eq.s32.totalorder %s29, 1
      %p219 = por %p217, %p218
      %p220 = scmp.ne.s32.totalorder %s209, %s210
      %p221 = scmp.eq.s32.totalorder %s29, 0
      %p222 = por %p220, %p221
      %p223 = scmp.ne.s32.totalorder %s209, %s210
      %p224 = scmp.eq.s32.totalorder %s30, 1
      %p225 = por %p223, %p224
      %p227 = scmp.ne.s32.totalorder %s210, %s226
      %p228 = scmp.eq.s32.totalorder %s30, 0
      %p229 = por %p227, %p228
      %s230 = ssub.s32 %s24, %s31
      %p231 = scmp.eq.s32.totalorder %s230, 0
      %s233 = sadd.s32 %s232, 1
      %s234 = scalar_select %p231, %s232, %s233
      %p237 = pneg %p231
      %p238 = scmp.eq.s32.totalorder %s24, 1
      %p239 = por %p237, %p238
      %p240 = scmp.ne.s32.totalorder %s232, %s235
      %p241 = scmp.eq.s32.totalorder %s24, 0
      %p242 = por %p240, %p241
      %p243 = scmp.ne.s32.totalorder %s232, %s235
      %p244 = scmp.eq.s32.totalorder %s29, 1
      %p245 = por %p243, %p244
      %p246 = scmp.ne.s32.totalorder %s235, %s236
      %p247 = scmp.eq.s32.totalorder %s29, 0
      %p248 = por %p246, %p247
      %p249 = scmp.ne.s32.totalorder %s235, %s236
      %p250 = scmp.eq.s32.totalorder %s30, 1
      %p251 = por %p249, %p250
      %p253 = scmp.ne.s32.totalorder %s236, %s252
      %p254 = scmp.eq.s32.totalorder %s30, 0
      %p255 = por %p253, %p254
      %s256 = ssub.s32 %s24, %s31
      %p257 = scmp.eq.s32.totalorder %s256, 0
      %s259 = sadd.s32 %s258, 1
      %s260 = scalar_select %p257, %s258, %s259
      %p263 = pneg %p257
      %p264 = scmp.eq.s32.totalorder %s24, 1
      %p265 = por %p263, %p264
      %p266 = scmp.ne.s32.totalorder %s258, %s261
      %p267 = scmp.eq.s32.totalorder %s24, 0
      %p268 = por %p266, %p267
      %p269 = scmp.ne.s32.totalorder %s258, %s261
      %p270 = scmp.eq.s32.totalorder %s29, 1
      %p271 = por %p269, %p270
      %p272 = scmp.ne.s32.totalorder %s261, %s262
      %p273 = scmp.eq.s32.totalorder %s29, 0
      %p274 = por %p272, %p273
      %p275 = scmp.ne.s32.totalorder %s261, %s262
      %p276 = scmp.eq.s32.totalorder %s30, 1
      %p277 = por %p275, %p276
      %p279 = scmp.ne.s32.totalorder %s262, %s278
      %p280 = scmp.eq.s32.totalorder %s30, 0
      %p281 = por %p279, %p280
      %s282 = ssub.s32 %s24, %s31
      %p283 = scmp.eq.s32.totalorder %s282, 0
      %s285 = sadd.s32 %s284, 1
      %s286 = scalar_select %p283, %s284, %s285
      %p289 = pneg %p283
      %p290 = scmp.eq.s32.totalorder %s24, 1
      %p291 = por %p289, %p290
      %p292 = scmp.ne.s32.totalorder %s284, %s287
      %p293 = scmp.eq.s32.totalorder %s24, 0
      %p294 = por %p292, %p293
      %p295 = scmp.ne.s32.totalorder %s284, %s287
      %p296 = scmp.eq.s32.totalorder %s29, 1
      %p297 = por %p295, %p296
      %p298 = scmp.ne.s32.totalorder %s287, %s288
      %p299 = scmp.eq.s32.totalorder %s29, 0
      %p300 = por %p298, %p299
      %p301 = scmp.ne.s32.totalorder %s287, %s288
      %p302 = scmp.eq.s32.totalorder %s30, 1
      %p303 = por %p301, %p302
      %p305 = scmp.ne.s32.totalorder %s288, %s304
      %p306 = scmp.eq.s32.totalorder %s30, 0
      %p307 = por %p305, %p306
      %s308 = ssub.s32 %s24, %s31
      %p309 = scmp.eq.s32.totalorder %s308, 0
      %s311 = sadd.s32 %s310, 1
      %s312 = scalar_select %p309, %s310, %s311
      %p315 = pneg %p309
      %p316 = scmp.eq.s32.totalorder %s24, 1
      %p317 = por %p315, %p316
      %p318 = scmp.ne.s32.totalorder %s310, %s313
      %p319 = scmp.eq.s32.totalorder %s24, 0
      %p320 = por %p318, %p319
      %p321 = scmp.ne.s32.totalorder %s310, %s313
      %p322 = scmp.eq.s32.totalorder %s29, 1
      %p323 = por %p321, %p322
      %p324 = scmp.ne.s32.totalorder %s313, %s314
      %p325 = scmp.eq.s32.totalorder %s29, 0
      %p326 = por %p324, %p325
      %p327 = scmp.ne.s32.totalorder %s313, %s314
      %p328 = scmp.eq.s32.totalorder %s30, 1
      %p329 = por %p327, %p328
      %p331 = scmp.ne.s32.totalorder %s314, %s330
      %p332 = scmp.eq.s32.totalorder %s30, 0
      %p333 = por %p331, %p332
      %s334 = ssub.s32 %s24, %s31
      %p335 = scmp.eq.s32.totalorder %s334, 0
      %s337 = sadd.s32 %s336, 1
      %s338 = scalar_select %p335, %s336, %s337
      %p341 = pneg %p335
      %p342 = scmp.eq.s32.totalorder %s24, 1
      %p343 = por %p341, %p342
      %p344 = scmp.ne.s32.totalorder %s336, %s339
      %p345 = scmp.eq.s32.totalorder %s24, 0
      %p346 = por %p344, %p345
      %p347 = scmp.ne.s32.totalorder %s336, %s339
      %p348 = scmp.eq.s32.totalorder %s29, 1
      %p349 = por %p347, %p348
      %p350 = scmp.ne.s32.totalorder %s339, %s340
      %p351 = scmp.eq.s32.totalorder %s29, 0
      %p352 = por %p350, %p351
      %p353 = scmp.ne.s32.totalorder %s339, %s340
      %p354 = scmp.eq.s32.totalorder %s30, 1
      %p355 = por %p353, %p354
      %p357 = scmp.ne.s32.totalorder %s340, %s356
      %p358 = scmp.eq.s32.totalorder %s30, 0
      %p359 = por %p357, %p358
      %s360 = ssub.s32 %s24, %s31
      %p361 = scmp.eq.s32.totalorder %s360, 0
      %s363 = sadd.s32 %s362, 1
      %s364 = scalar_select %p361, %s362, %s363
      %p367 = pneg %p361
      %p368 = scmp.eq.s32.totalorder %s24, 1
      %p369 = por %p367, %p368
      %p370 = scmp.ne.s32.totalorder %s362, %s365
      %p371 = scmp.eq.s32.totalorder %s24, 0
      %p372 = por %p370, %p371
      %p373 = scmp.ne.s32.totalorder %s362, %s365
      %p374 = scmp.eq.s32.totalorder %s29, 1
      %p375 = por %p373, %p374
      %p376 = scmp.ne.s32.totalorder %s365, %s366
      %p377 = scmp.eq.s32.totalorder %s29, 0
      %p378 = por %p376, %p377
      %p379 = scmp.ne.s32.totalorder %s365, %s366
      %p380 = scmp.eq.s32.totalorder %s30, 1
      %p381 = por %p379, %p380
      %p383 = scmp.ne.s32.totalorder %s366, %s382
      %p384 = scmp.eq.s32.totalorder %s30, 0
      %p385 = por %p383, %p384
      %s387 = sadd.s32 %s386, 1
      %p390 = scmp.eq.s32.totalorder %s24, 1
      %p391 = scmp.ne.s32.totalorder %s386, %s388
      %p392 = scmp.eq.s32.totalorder %s24, 0
      %p393 = por %p391, %p392
      %p394 = scmp.ne.s32.totalorder %s386, %s388
      %p395 = scmp.eq.s32.totalorder %s29, 1
      %p396 = por %p394, %p395
      %p397 = scmp.ne.s32.totalorder %s388, %s389
      %p398 = scmp.eq.s32.totalorder %s29, 0
      %p399 = por %p397, %p398
      %p400 = scmp.ne.s32.totalorder %s388, %s389
      %p401 = scmp.eq.s32.totalorder %s30, 1
      %p402 = por %p400, %p401
      %p404 = scmp.ne.s32.totalorder %s389, %s403
      %p405 = scmp.eq.s32.totalorder %s30, 0
      %p406 = por %p404, %p405
      %s408 = sadd.s32 %s407, 1
      %p411 = scmp.eq.s32.totalorder %s24, 1
      %p412 = scmp.ne.s32.totalorder %s407, %s409
      %p413 = scmp.eq.s32.totalorder %s24, 0
      %p414 = por %p412, %p413
      %p415 = scmp.ne.s32.totalorder %s407, %s409
      %p416 = scmp.eq.s32.totalorder %s29, 1
      %p417 = por %p415, %p416
      %p418 = scmp.ne.s32.totalorder %s409, %s410
      %p419 = scmp.eq.s32.totalorder %s29, 0
      %p420 = por %p418, %p419
      %p421 = scmp.ne.s32.totalorder %s409, %s410
      %p422 = scmp.eq.s32.totalorder %s30, 1
      %p423 = por %p421, %p422
      %p425 = scmp.ne.s32.totalorder %s410, %s424
      %p426 = scmp.eq.s32.totalorder %s30, 0
      %p427 = por %p425, %p426
      %s429 = sadd.s32 %s428, 1
      %p432 = scmp.eq.s32.totalorder %s24, 1
      %p433 = scmp.ne.s32.totalorder %s428, %s430
      %p434 = scmp.eq.s32.totalorder %s24, 0
      %p435 = por %p433, %p434
      %p436 = scmp.ne.s32.totalorder %s428, %s430
      %p437 = scmp.eq.s32.totalorder %s29, 1
      %p438 = por %p436, %p437
      %p439 = scmp.ne.s32.totalorder %s430, %s431
      %p440 = scmp.eq.s32.totalorder %s29, 0
      %p441 = por %p439, %p440
      %p442 = scmp.ne.s32.totalorder %s430, %s431
      %p443 = scmp.eq.s32.totalorder %s30, 1
      %p444 = por %p442, %p443
      %p446 = scmp.ne.s32.totalorder %s431, %s445
      %p447 = scmp.eq.s32.totalorder %s30, 0
      %p448 = por %p446, %p447
      %p449 = scmp.le.s32.totalorder 1, %s24
      %p450 = scmp.lt.s32.totalorder %s24, 3
      %p451 = pnand %p449, %p450
      %p452 = pneg %p451
      // Predicated region
      $region9: #{tpu_custom_call.1} parent=5 // pred_check
        _
      $region10: #{tpu_custom_call.1} parent=5 // pred_check_branch
        %454 = sbr.rel (%p451) target = $region12
      $region11: #{tpu_custom_call.1} parent=5 // pred_region
        %s455 = ssub.s32 %s24, 1
        // Predicated region
        $region13: #{tpu_custom_call.1} parent=11 // pred_check
          %p456 = pneg %p45
        $region14: #{tpu_custom_call.1} parent=11 // pred_check_branch
          %458 = sbr.rel (%p456) target = $region16
        $region15: #{tpu_custom_call.1} parent=11 // pred_region
          %s460 = ssub.s32 256, 256
          %461 = vsyncadd [#allocation4], %s460
          %s462 = sshll.u32 [#allocation3], 4
          %s463 = int_to_ptr.vmem [resolvable:$true] %s462
          %468 = dma.hbm_to_vmem [thread:$0]  %s0, 256, %s463, [#allocation4], 128, 128, 8
        $region16: #{tpu_custom_call.1} parent=11 // pred_fallthru
          _
        // Predicated region
        $region17: #{tpu_custom_call.1} parent=11 // pred_check
          %p469 = pneg %p66
        $region18: #{tpu_custom_call.1} parent=11 // pred_check_branch
          %471 = sbr.rel (%p469) target = $region20
        $region19: #{tpu_custom_call.1} parent=11 // pred_region
          _
        $region20: #{tpu_custom_call.1} parent=11 // pred_fallthru
          _
        // Predicated region
        $region21: #{tpu_custom_call.1} parent=11 // pred_check
          %p472 = pneg %p399
        $region22: #{tpu_custom_call.1} parent=11 // pred_check_branch
          %474 = sbr.rel (%p472) target = $region24
        $region23: #{tpu_custom_call.1} parent=11 // pred_region
          _
        $region24: #{tpu_custom_call.1} parent=11 // pred_fallthru
          _
        // Predicated region
        $region25: #{tpu_custom_call.1} parent=11 // pred_check
          %p475 = pneg %p420
        $region26: #{tpu_custom_call.1} parent=11 // pred_check_branch
          %477 = sbr.rel (%p475) target = $region28
        $region27: #{tpu_custom_call.1} parent=11 // pred_region
          _
        $region28: #{tpu_custom_call.1} parent=11 // pred_fallthru
          _
      $region12: #{tpu_custom_call.1} parent=5 // pred_fallthru
        _
      %p478 = scmp.lt.s32.totalorder %s24, 2
      // Predicated region
      $region29: #{tpu_custom_call.1} parent=5 // pred_check
        %p479 = pneg %p478
      $region30: #{tpu_custom_call.1} parent=5 // pred_check_branch
        %481 = sbr.rel (%p479) target = $region32
      $region31: #{tpu_custom_call.1} parent=5 // pred_region
        // Predicated region
        $region33: #{tpu_custom_call.1} parent=31 // pred_check
          %p482 = pneg %p86
        $region34: #{tpu_custom_call.1} parent=31 // pred_check_branch
          %484 = sbr.rel (%p482) target = $region36
        $region35: #{tpu_custom_call.1} parent=31 // pred_region
          %p485 = scmp.lt.s32.totalorder %s24, 1
          %s486 = scalar_select %p485, %s24, 1
          %s487 = smul.addr %s486, 4
          %s488 = smul.addr %s487, 8
          %s489 = scalar_lea.vmem %s2, %s488
        $region36: #{tpu_custom_call.1} parent=31 // pred_fallthru
          _
        // Predicated region
        $region37: #{tpu_custom_call.1} parent=31 // pred_check
          %p490 = pneg %p112
        $region38: #{tpu_custom_call.1} parent=31 // pred_check_branch
          %492 = sbr.rel (%p490) target = $region40
        $region39: #{tpu_custom_call.1} parent=31 // pred_region
          %p493 = scmp.lt.s32.totalorder %s24, 1
          %s494 = scalar_select %p493, %s24, 1
          %s495 = scalar_lea.vmem %s3, %s494
        $region40: #{tpu_custom_call.1} parent=31 // pred_fallthru
          _
        // Predicated region
        $region41: #{tpu_custom_call.1} parent=31 // pred_check
          %p496 = pneg %p138
        $region42: #{tpu_custom_call.1} parent=31 // pred_check_branch
          %498 = sbr.rel (%p496) target = $region44
        $region43: #{tpu_custom_call.1} parent=31 // pred_region
          %p499 = scmp.lt.s32.totalorder %s24, 1
          %s500 = scalar_select %p499, %s24, 1
          %s501 = smul.addr %s500, 4
          %s502 = smul.addr %s501, 8
          %s503 = scalar_lea.vmem %s4, %s502
        $region44: #{tpu_custom_call.1} parent=31 // pred_fallthru
          _
        // Predicated region
        $region45: #{tpu_custom_call.1} parent=31 // pred_check
          %p504 = pneg %p164
        $region46: #{tpu_custom_call.1} parent=31 // pred_check_branch
          %506 = sbr.rel (%p504) target = $region48
        $region47: #{tpu_custom_call.1} parent=31 // pred_region
          %p507 = scmp.lt.s32.totalorder %s24, 1
          %s508 = scalar_select %p507, %s24, 1
          %s509 = scalar_lea.vmem %s5, %s508
        $region48: #{tpu_custom_call.1} parent=31 // pred_fallthru
          _
        // Predicated region
        $region49: #{tpu_custom_call.1} parent=31 // pred_check
          %p510 = pneg %p190
        $region50: #{tpu_custom_call.1} parent=31 // pred_check_branch
          %512 = sbr.rel (%p510) target = $region52
        $region51: #{tpu_custom_call.1} parent=31 // pred_region
          %p513 = scmp.lt.s32.totalorder %s24, 1
          %s514 = scalar_select %p513, %s24, 1
          %s515 = scalar_lea.vmem %s6, %s514
        $region52: #{tpu_custom_call.1} parent=31 // pred_fallthru
          _
        // Predicated region
        $region53: #{tpu_custom_call.1} parent=31 // pred_check
          %p516 = pneg %p216
        $region54: #{tpu_custom_call.1} parent=31 // pred_check_branch
          %518 = sbr.rel (%p516) target = $region56
        $region55: #{tpu_custom_call.1} parent=31 // pred_region
          %p519 = scmp.lt.s32.totalorder %s24, 1
          %s520 = scalar_select %p519, %s24, 1
          %s521 = scalar_lea.vmem %s7, %s520
        $region56: #{tpu_custom_call.1} parent=31 // pred_fallthru
          _
        // Predicated region
        $region57: #{tpu_custom_call.1} parent=31 // pred_check
          %p522 = pneg %p242
        $region58: #{tpu_custom_call.1} parent=31 // pred_check_branch
          %524 = sbr.rel (%p522) target = $region60
        $region59: #{tpu_custom_call.1} parent=31 // pred_region
          %p525 = scmp.lt.s32.totalorder %s24, 1
          %s526 = scalar_select %p525, %s24, 1
          %s527 = smul.addr %s526, 4
          %s528 = smul.addr %s527, 8
          %s529 = scalar_lea.vmem %s8, %s528
        $region60: #{tpu_custom_call.1} parent=31 // pred_fallthru
          _
        // Predicated region
        $region61: #{tpu_custom_call.1} parent=31 // pred_check
          %p530 = pneg %p268
        $region62: #{tpu_custom_call.1} parent=31 // pred_check_branch
          %532 = sbr.rel (%p530) target = $region64
        $region63: #{tpu_custom_call.1} parent=31 // pred_region
          %p533 = scmp.lt.s32.totalorder %s24, 1
          %s534 = scalar_select %p533, %s24, 1
          %s535 = scalar_lea.vmem %s9, %s534
        $region64: #{tpu_custom_call.1} parent=31 // pred_fallthru
          _
        // Predicated region
        $region65: #{tpu_custom_call.1} parent=31 // pred_check
          %p536 = pneg %p294
        $region66: #{tpu_custom_call.1} parent=31 // pred_check_branch
          %538 = sbr.rel (%p536) target = $region68
        $region67: #{tpu_custom_call.1} parent=31 // pred_region
          %p539 = scmp.lt.s32.totalorder %s24, 1
          %s540 = scalar_select %p539, %s24, 1
          %s541 = smul.addr %s540, 8
          %s542 = smul.addr %s541, 8
          %s543 = scalar_lea.vmem %s10, %s542
        $region68: #{tpu_custom_call.1} parent=31 // pred_fallthru
          _
        // Predicated region
        $region69: #{tpu_custom_call.1} parent=31 // pred_check
          %p544 = pneg %p320
        $region70: #{tpu_custom_call.1} parent=31 // pred_check_branch
          %546 = sbr.rel (%p544) target = $region72
        $region71: #{tpu_custom_call.1} parent=31 // pred_region
          %p547 = scmp.lt.s32.totalorder %s24, 1
          %s548 = scalar_select %p547, %s24, 1
          %s549 = scalar_lea.vmem %s11, %s548
        $region72: #{tpu_custom_call.1} parent=31 // pred_fallthru
          _
        // Predicated region
        $region73: #{tpu_custom_call.1} parent=31 // pred_check
          %p550 = pneg %p346
        $region74: #{tpu_custom_call.1} parent=31 // pred_check_branch
          %552 = sbr.rel (%p550) target = $region76
        $region75: #{tpu_custom_call.1} parent=31 // pred_region
          %p553 = scmp.lt.s32.totalorder %s24, 1
          %s554 = scalar_select %p553, %s24, 1
          %s555 = scalar_lea.vmem %s12, %s554
        $region76: #{tpu_custom_call.1} parent=31 // pred_fallthru
          _
        // Predicated region
        $region77: #{tpu_custom_call.1} parent=31 // pred_check
          %p556 = pneg %p372
        $region78: #{tpu_custom_call.1} parent=31 // pred_check_branch
          %558 = sbr.rel (%p556) target = $region80
        $region79: #{tpu_custom_call.1} parent=31 // pred_region
          %p559 = scmp.lt.s32.totalorder %s24, 1
          %s560 = scalar_select %p559, %s24, 1
          %s561 = scalar_lea.vmem %s13, %s560
        $region80: #{tpu_custom_call.1} parent=31 // pred_fallthru
          _
      $region32: #{tpu_custom_call.1} parent=5 // pred_fallthru
        _
      %p562 = scmp.le.s32.totalorder 1, %s24
      %p563 = scmp.lt.s32.totalorder %s24, 3
      %p564 = pnand %p562, %p563
      %p565 = pneg %p564
      // Predicated region
      $region81: #{tpu_custom_call.1} parent=5 // pred_check
        _
      $region82: #{tpu_custom_call.1} parent=5 // pred_check_branch
        %567 = sbr.rel (%p564) target = $region84
      $region83: #{tpu_custom_call.1} parent=5 // pred_region
        %s568 = ssub.s32 %s24, 1
        // Predicated region
        $region85: #{tpu_custom_call.1} parent=83 // pred_check
          %p569 = pneg %p45
        $region86: #{tpu_custom_call.1} parent=83 // pred_check_branch
          %571 = sbr.rel (%p569) target = $region88
        $region87: #{tpu_custom_call.1} parent=83 // pred_region
          %572 = dma.done [#allocation4], 256
        $region88: #{tpu_custom_call.1} parent=83 // pred_fallthru
          _
        %p573 = pneg %p45
        %p574 = pneg %p42
        %p575 = pneg %p66
        %p576 = pneg %p63
        %p577 = scmp.lt.s32.totalorder %s29, 1
        %s578 = scalar_select %p577, %s29, 1
        %s579 = smul.addr %s578, 4
        %s580 = smul.addr %s579, 8
        %s581 = scalar_lea.vmem %s2, %s580
        %p582 = pneg %p92
        %p583 = pneg %p89
        %p584 = scmp.lt.s32.totalorder %s29, 1
        %s585 = scalar_select %p584, %s29, 1
        %s586 = scalar_lea.vmem %s3, %s585
        %p587 = pneg %p118
        %p588 = pneg %p115
        %p589 = scmp.lt.s32.totalorder %s29, 1
        %s590 = scalar_select %p589, %s29, 1
        %s591 = smul.addr %s590, 4
        %s592 = smul.addr %s591, 8
        %s593 = scalar_lea.vmem %s4, %s592
        %p594 = pneg %p144
        %p595 = pneg %p141
        %p596 = scmp.lt.s32.totalorder %s29, 1
        %s597 = scalar_select %p596, %s29, 1
        %s598 = scalar_lea.vmem %s5, %s597
        %p599 = pneg %p170
        %p600 = pneg %p167
        %p601 = scmp.lt.s32.totalorder %s29, 1
        %s602 = scalar_select %p601, %s29, 1
        %s603 = scalar_lea.vmem %s6, %s602
        %p604 = pneg %p196
        %p605 = pneg %p193
        %p606 = scmp.lt.s32.totalorder %s29, 1
        %s607 = scalar_select %p606, %s29, 1
        %s608 = scalar_lea.vmem %s7, %s607
        %p609 = pneg %p222
        %p610 = pneg %p219
        %p611 = scmp.lt.s32.totalorder %s29, 1
        %s612 = scalar_select %p611, %s29, 1
        %s613 = smul.addr %s612, 4
        %s614 = smul.addr %s613, 8
        %s615 = scalar_lea.vmem %s8, %s614
        %p616 = pneg %p248
        %p617 = pneg %p245
        %p618 = scmp.lt.s32.totalorder %s29, 1
        %s619 = scalar_select %p618, %s29, 1
        %s620 = scalar_lea.vmem %s9, %s619
        %p621 = pneg %p274
        %p622 = pneg %p271
        %p623 = scmp.lt.s32.totalorder %s29, 1
        %s624 = scalar_select %p623, %s29, 1
        %s625 = smul.addr %s624, 8
        %s626 = smul.addr %s625, 8
        %s627 = scalar_lea.vmem %s10, %s626
        %p628 = pneg %p300
        %p629 = pneg %p297
        %p630 = scmp.lt.s32.totalorder %s29, 1
        %s631 = scalar_select %p630, %s29, 1
        %s632 = scalar_lea.vmem %s11, %s631
        %p633 = pneg %p326
        %p634 = pneg %p323
        %p635 = scmp.lt.s32.totalorder %s29, 1
        %s636 = scalar_select %p635, %s29, 1
        %s637 = scalar_lea.vmem %s12, %s636
        %p638 = pneg %p352
        %p639 = pneg %p349
        %p640 = scmp.lt.s32.totalorder %s29, 1
        %s641 = scalar_select %p640, %s29, 1
        %s642 = scalar_lea.vmem %s13, %s641
        %p643 = pneg %p378
        %p644 = pneg %p375
        %p645 = pneg %p399
        %p646 = pneg %p396
        %p647 = pneg %p420
        %p648 = pneg %p417
        %p649 = pneg %p441
        %p650 = pneg %p438
        %p651 = scmp.lt.s32.totalorder %s29, 1
        %s652 = scalar_select %p651, %s29, 1
        %s653 = smul.addr %s652, 4
        %s654 = smul.addr %s653, 8
        %s655 = scalar_lea.vmem %s2, %s654
        %p656 = scmp.lt.s32.totalorder %s29, 1
        %s657 = scalar_select %p656, %s29, 1
        %s658 = scalar_lea.vmem %s3, %s657
        %p659 = scmp.lt.s32.totalorder %s29, 1
        %s660 = scalar_select %p659, %s29, 1
        %s661 = smul.addr %s660, 4
        %s662 = smul.addr %s661, 8
        %s663 = scalar_lea.vmem %s4, %s662
        %p664 = scmp.lt.s32.totalorder %s29, 1
        %s665 = scalar_select %p664, %s29, 1
        %s666 = scalar_lea.vmem %s5, %s665
        %p667 = scmp.lt.s32.totalorder %s29, 1
        %s668 = scalar_select %p667, %s29, 1
        %s669 = scalar_lea.vmem %s6, %s668
        %p670 = scmp.lt.s32.totalorder %s29, 1
        %s671 = scalar_select %p670, %s29, 1
        %s672 = scalar_lea.vmem %s7, %s671
        %p673 = scmp.lt.s32.totalorder %s29, 1
        %s674 = scalar_select %p673, %s29, 1
        %s675 = smul.addr %s674, 4
        %s676 = smul.addr %s675, 8
        %s677 = scalar_lea.vmem %s8, %s676
        %p678 = scmp.lt.s32.totalorder %s29, 1
        %s679 = scalar_select %p678, %s29, 1
        %s680 = scalar_lea.vmem %s9, %s679
        %p681 = scmp.lt.s32.totalorder %s29, 1
        %s682 = scalar_select %p681, %s29, 1
        %s683 = smul.addr %s682, 8
        %s684 = smul.addr %s683, 8
        %s685 = scalar_lea.vmem %s10, %s684
        %p686 = scmp.lt.s32.totalorder %s29, 1
        %s687 = scalar_select %p686, %s29, 1
        %s688 = scalar_lea.vmem %s11, %s687
        %p689 = scmp.lt.s32.totalorder %s29, 1
        %s690 = scalar_select %p689, %s29, 1
        %s691 = scalar_lea.vmem %s12, %s690
        %p692 = scmp.lt.s32.totalorder %s29, 1
        %s693 = scalar_select %p692, %s29, 1
        %s694 = scalar_lea.vmem %s13, %s693
        %p695 = scmp.eq.s32.totalorder %s29, 0
        // Predicated region
        $region89: #{tpu_custom_call.1} parent=83 // pred_check
          %p696 = pneg %p695
        $region90: #{tpu_custom_call.1} parent=83 // pred_check_branch
          %698 = sbr.rel (%p696) target = $region92
        $region91: #{tpu_custom_call.1} parent=83 // pred_region
          %v699 = vld [vmem:[#allocation3] sm:$0xff]
          %v700 = vld [vmem:[#allocation3 + $0x8] sm:$0xff]
          %vm701 = vcmask 261120
          %702 = vst.msk [vmem:[#allocation2] sm:$0xff] %vm701, %v699
          %703 = vst.msk [vmem:[#allocation2 + $0x8] sm:$0xff] %vm701, %v700
        $region92: #{tpu_custom_call.1} parent=83 // pred_fallthru
          _
        %v704 = vld [vmem:[#allocation2] sm:$0xff]
        %v705 = vld [vmem:[#allocation2 + $0x8] sm:$0xff]
        %v706 = vld [vmem:[%s1] sm:$0x3]
        %v707 = vld [vmem:[%s669] sm:$0x1]
        %v708 = vld [vmem:[%s672] sm:$0x1]
        %vm709 = vcmask 261120
        %v710 = vsel %vm709, %v704, 0.0
        %711 = vadd.xlane.f32.xlu0 %v710
        %v712 = vpop.xlane.xlu0 %711
        %v713 = vsel %vm709, %v705, 0.0
        %714 = vadd.xlane.f32.xlu0 %v713
        %v715 = vpop.xlane.xlu0 %714
        %v716 = vrcp.pop 32.0
        %v717 = vmul.f32 %v712, %v716
        %v718 = vmul.f32 %v715, %v716
        %v719 = vsub.f32 %v704, %v717
        %v720 = vsub.f32 %v705, %v718
        %v721 = vmul.f32 %v719, %v719
        %v722 = vmul.f32 %v720, %v720
        %v723 = vsel %vm709, %v721, 0.0
        %724 = vadd.xlane.f32.xlu0 %v723
        %v725 = vpop.xlane.xlu0 %724
        %v726 = vsel %vm709, %v722, 0.0
        %727 = vadd.xlane.f32.xlu0 %v726
        %v728 = vpop.xlane.xlu0 %727
        %v729 = vrcp.pop 31.0
        %v730 = vmul.f32 %v725, %v729
        %v731 = vmul.f32 %v728, %v729
        %v732 = vrsqrt.pop %v730
        %v733 = vmul.f32 %v730, %v732
        %vm734 = vcmp.eq.f32.partialorder %v730, inf
        %v735 = vsel %vm734, %v730, %v733
        %vm736 = vcmp.eq.f32.partialorder %v730, 0.0
        %v737 = vand.u32 %v730, 2147483648
        %v738 = vsel %vm736, %v737, %v735
        %v739 = vrsqrt.pop %v731
        %v740 = vmul.f32 %v731, %v739
        %vm741 = vcmp.eq.f32.partialorder %v731, inf
        %v742 = vsel %vm741, %v731, %v740
        %vm743 = vcmp.eq.f32.partialorder %v731, 0.0
        %v744 = vand.u32 %v731, 2147483648
        %v745 = vsel %vm743, %v744, %v742
        %v747 = vlaneseq
        %v748 = vshrl.u32 %v747, 7
        %v749 = vsub.s32 0, %v748
        %v750 = vrot.slane %v707, %v749
        %v752 = vmul.f32 %v750, %v719
        %v753 = vmul.f32 %v750, %v720
        %v754 = vadd.f32 %v738, 1e-06
        %v755 = vadd.f32 %v745, 1e-06
        %v756 = vrcp.pop %v754
        %v757 = vmul.f32 %v752, %v756
        %v758 = vrcp.pop %v755
        %v759 = vmul.f32 %v753, %v758
        %v761 = vlaneseq
        %v762 = vshrl.u32 %v761, 7
        %v763 = vsub.s32 0, %v762
        %v764 = vrot.slane %v708, %v763
        %v766 = vadd.f32 %v757, %v764
        %v767 = vadd.f32 %v759, %v764
        %v768 = vld [vmem:[%s655] sm:$0xff]
        %v769 = vld [vmem:[%s655 + $0x8] sm:$0xff]
        %v770 = vld [vmem:[%s655 + $0x10] sm:$0xff]
        %v771 = vld [vmem:[%s655 + $0x18] sm:$0xff]
        %v772 = vld [vmem:[%s658] sm:$0x1]
        %v774 = vlaneseq
        %v775 = vshrl.u32 %v774, 7
        %v776 = vsub.s32 0, %v775
        %v777 = vrot.slane %v772, %v776
        %v780 = vsel %vm709, %v766, 0
        %v783 = vsel %vm709, %v767, 0
        %785 = vmatprep.subr.mxu0 0.0
        %786 = vmatpush1.msra.mxu0 %v768
        %787 = vmatprep.subr.mxu0 0.0
        %788 = vmatpush1.msra.mxu0 %v769
        %789 = vmatprep.subr.mxu0 0.0
        %790 = vmatpush1.msra.mxu0 %v770
        %791 = vmatprep.subr.mxu0 0.0
        %792 = vmatpush1.msra.mxu0 %v771
        %793 = vmatprep.subr.mxu0 0.0
        %794 = vmatpush1.msra.mxu0 0.0
        %795 = vmatprep.subr.mxu0 0.0
        %796 = vmatpush1.msra.mxu0 0.0
        %797 = vmatprep.subr.mxu0 0.0
        %798 = vmatpush1.msra.mxu0 0.0
        %799 = vmatprep.subr.mxu0 0.0
        %800 = vmatpush1.msra.mxu0 0.0
        %801 = vmatprep.subr.mxu0 0.0
        %802 = vmatpush1.msra.mxu0 0.0
        %803 = vmatprep.subr.mxu0 0.0
        %804 = vmatpush1.msra.mxu0 0.0
        %805 = vmatprep.subr.mxu0 0.0
        %806 = vmatpush1.msra.mxu0 0.0
        %807 = vmatprep.subr.mxu0 0.0
        %808 = vmatpush1.msra.mxu0 0.0
        %809 = vmatprep.subr.mxu0 0.0
        %810 = vmatpush1.msra.mxu0 0.0
        %811 = vmatprep.subr.mxu0 0.0
        %812 = vmatpush1.msra.mxu0 0.0
        %813 = vmatprep.subr.mxu0 0.0
        %814 = vmatpush1.msra.mxu0 0.0
        %815 = vmatprep.subr.mxu0 0.0
        %816 = vmatpush1.msra.mxu0 0.0
        %817 = vmatprep.subr.mxu0 0.0
        %818 = vmatpush1.msra.mxu0 0.0
        %819 = vmatprep.subr.mxu0 0.0
        %820 = vmatpush1.msra.mxu0 0.0
        %821 = vmatprep.subr.mxu0 0.0
        %822 = vmatpush1.msra.mxu0 0.0
        %823 = vmatprep.subr.mxu0 0.0
        %824 = vmatpush1.msra.mxu0 0.0
        %825 = vmatprep.subr.mxu0 0.0
        %826 = vmatpush1.msra.mxu0 0.0
        %827 = vmatprep.subr.mxu0 0.0
        %828 = vmatpush1.msra.mxu0 0.0
        %829 = vmatprep.subr.mxu0 0.0
        %830 = vmatpush1.msra.mxu0 0.0
        %831 = vmatprep.subr.mxu0 0.0
        %832 = vmatpush1.msra.mxu0 0.0
        %833 = vmatprep.subr.mxu0 0.0
        %834 = vmatpush1.msra.mxu0 0.0
        %835 = vmatprep.subr.mxu0 0.0
        %836 = vmatpush1.msra.mxu0 0.0
        %837 = vmatprep.subr.mxu0 0.0
        %838 = vmatpush1.msra.mxu0 0.0
        %839 = vmatprep.subr.mxu0 0.0
        %840 = vmatpush1.msra.mxu0 0.0
        %841 = vmatprep.subr.mxu0 0.0
        %842 = vmatpush1.msra.mxu0 0.0
        %843 = vmatprep.subr.mxu0 0.0
        %844 = vmatpush1.msra.mxu0 0.0
        %845 = vmatprep.subr.mxu0 0.0
        %846 = vmatpush1.msra.mxu0 0.0
        %847 = vmatprep.subr.mxu0 0.0
        %848 = vmatpush1.msra.mxu0 0.0
        %849 = vmatprep.mubr.f32.mxu0 0.0
        %850 = vmatmul.mubr.f32.gmra.mrb[0].mxu0 %v780
        %v851 = vpop.f32.mrb[0].mxu0
        %v852 = vadd.f32 %v777, %v851
        %v853 = vpop.f32.mrb[0].mxu0
        %854 = vmatprep.mubr.f32.mxu0 0.0
        %855 = vmatmul.mubr.f32.gmra.mrb[0].mxu0 %v783
        %v856 = vpop.f32.mrb[0].mxu0
        %v857 = vadd.f32 %v777, %v856
        %v858 = vpop.f32.mrb[0].mxu0
        %859 = vdwg.mxu0
        %861 = vrot.lane.b32.xlu0 %v852, 96
        %v862 = vpop.permute.xlu0 %861
        %vm863 = vcmask 64512
        %v864 = vsel %vm863, %v852, 0
        %v866 = vsel %vm863, %v862, 0
        %868 = vmatprep.subr.mxu0 0.0
        %869 = vmatpush1.xpose.msra.mxu0 %v866
        %870 = vmatprep.subr.mxu0 0.0
        %871 = vmatpush1.xpose.msra.mxu0 0.0
        %872 = vmatprep.subr.mxu0 0.0
        %873 = vmatpush1.xpose.msra.mxu0 0.0
        %874 = vmatprep.subr.mxu0 0.0
        %875 = vmatpush1.xpose.msra.mxu0 0.0
        %876 = vmatprep.subr.mxu0 0.0
        %877 = vmatpush1.xpose.msra.mxu0 0.0
        %878 = vmatprep.subr.mxu0 0.0
        %879 = vmatpush1.xpose.msra.mxu0 0.0
        %880 = vmatprep.subr.mxu0 0.0
        %881 = vmatpush1.xpose.msra.mxu0 0.0
        %882 = vmatprep.subr.mxu0 0.0
        %883 = vmatpush1.xpose.msra.mxu0 0.0
        %884 = vmatprep.subr.mxu0 0.0
        %885 = vmatpush1.xpose.msra.mxu0 0.0
        %886 = vmatprep.subr.mxu0 0.0
        %887 = vmatpush1.xpose.msra.mxu0 0.0
        %888 = vmatprep.subr.mxu0 0.0
        %889 = vmatpush1.xpose.msra.mxu0 0.0
        %890 = vmatprep.subr.mxu0 0.0
        %891 = vmatpush1.xpose.msra.mxu0 0.0
        %892 = vmatprep.subr.mxu0 0.0
        %893 = vmatpush1.xpose.msra.mxu0 0.0
        %894 = vmatprep.subr.mxu0 0.0
        %895 = vmatpush1.xpose.msra.mxu0 0.0
        %896 = vmatprep.subr.mxu0 0.0
        %897 = vmatpush1.xpose.msra.mxu0 0.0
        %898 = vmatprep.subr.mxu0 0.0
        %899 = vmatpush1.xpose.msra.mxu0 0.0
        %900 = vmatprep.subr.mxu0 0.0
        %901 = vmatpush1.xpose.msra.mxu0 0.0
        %902 = vmatprep.subr.mxu0 0.0
        %903 = vmatpush1.xpose.msra.mxu0 0.0
        %904 = vmatprep.subr.mxu0 0.0
        %905 = vmatpush1.xpose.msra.mxu0 0.0
        %906 = vmatprep.subr.mxu0 0.0
        %907 = vmatpush1.xpose.msra.mxu0 0.0
        %908 = vmatprep.subr.mxu0 0.0
        %909 = vmatpush1.xpose.msra.mxu0 0.0
        %910 = vmatprep.subr.mxu0 0.0
        %911 = vmatpush1.xpose.msra.mxu0 0.0
        %912 = vmatprep.subr.mxu0 0.0
        %913 = vmatpush1.xpose.msra.mxu0 0.0
        %914 = vmatprep.subr.mxu0 0.0
        %915 = vmatpush1.xpose.msra.mxu0 0.0
        %916 = vmatprep.subr.mxu0 0.0
        %917 = vmatpush1.xpose.msra.mxu0 0.0
        %918 = vmatprep.subr.mxu0 0.0
        %919 = vmatpush1.xpose.msra.mxu0 0.0
        %920 = vmatprep.subr.mxu0 0.0
        %921 = vmatpush1.xpose.msra.mxu0 0.0
        %922 = vmatprep.subr.mxu0 0.0
        %923 = vmatpush1.xpose.msra.mxu0 0.0
        %924 = vmatprep.subr.mxu0 0.0
        %925 = vmatpush1.xpose.msra.mxu0 0.0
        %926 = vmatprep.subr.mxu0 0.0
        %927 = vmatpush1.xpose.msra.mxu0 0.0
        %928 = vmatprep.subr.mxu0 0.0
        %929 = vmatpush1.xpose.msra.mxu0 0.0
        %930 = vmatprep.subr.mxu0 0.0
        %931 = vmatpush1.xpose.msra.mxu0 0.0
        %932 = vmatprep.mubr.f32.mxu0 0.0
        %933 = vmatmul.mubr.f32.gmra.mrb[0].mxu0 %v864
        %v934 = vpop.f32.mrb[0].mxu0
        %v935 = vadd.f32 0.0, %v934
        %v936 = vpop.f32.mrb[0].mxu0
        %937 = vdwg.mxu0
        %v938 = vmul.f32 %v935, 0.35355338
        %v939 = vlaneseq
        %v940 = vshrl.u32 %v939, 7
        %v941 = vsub.s32 0, %v940
        %v942 = vrot.slane %v706, %v941
        %v943 = vadd.f32 %v938, %v942
        %v944 = vsel %vm863, %v943, -inf
        %945 = vmax.xlane.f32.xlu0 %v944
        %v946 = vpop.xlane.xlu0 %945
        %v947 = vsub.f32 %v943, %v946
        %v948 = vmul.f32 %v947, 1.442695
        %v949 = vpow.pop %v948
        %v950 = vsel %vm863, %v949, 0.0
        %951 = vadd.xlane.f32.xlu0 %v950
        %v952 = vpop.xlane.xlu0 %951
        %v953 = vrcp.pop %v952
        %v954 = vmul.f32 %v949, %v953
        %955 = vrot.lane.b32.xlu0 %v852, 64
        %v956 = vpop.permute.xlu0 %955
        %v959 = vsel %vm863, %v954, 0
        %961 = vmatprep.subr.mxu0 0.0
        %962 = vmatpush1.msra.mxu0 %v956
        %963 = vmatprep.subr.mxu0 0.0
        %964 = vmatpush1.msra.mxu0 0.0
        %965 = vmatprep.subr.mxu0 0.0
        %966 = vmatpush1.msra.mxu0 0.0
        %967 = vmatprep.subr.mxu0 0.0
        %968 = vmatpush1.msra.mxu0 0.0
        %969 = vmatprep.subr.mxu0 0.0
        %970 = vmatpush1.msra.mxu0 0.0
        %971 = vmatprep.subr.mxu0 0.0
        %972 = vmatpush1.msra.mxu0 0.0
        %973 = vmatprep.subr.mxu0 0.0
        %974 = vmatpush1.msra.mxu0 0.0
        %975 = vmatprep.subr.mxu0 0.0
        %976 = vmatpush1.msra.mxu0 0.0
        %977 = vmatprep.subr.mxu0 0.0
        %978 = vmatpush1.msra.mxu0 0.0
        %979 = vmatprep.subr.mxu0 0.0
        %980 = vmatpush1.msra.mxu0 0.0
        %981 = vmatprep.subr.mxu0 0.0
        %982 = vmatpush1.msra.mxu0 0.0
        %983 = vmatprep.subr.mxu0 0.0
        %984 = vmatpush1.msra.mxu0 0.0
        %985 = vmatprep.subr.mxu0 0.0
        %986 = vmatpush1.msra.mxu0 0.0
        %987 = vmatprep.subr.mxu0 0.0
        %988 = vmatpush1.msra.mxu0 0.0
        %989 = vmatprep.subr.mxu0 0.0
        %990 = vmatpush1.msra.mxu0 0.0
        %991 = vmatprep.subr.mxu0 0.0
        %992 = vmatpush1.msra.mxu0 0.0
        %993 = vmatprep.subr.mxu0 0.0
        %994 = vmatpush1.msra.mxu0 0.0
        %995 = vmatprep.subr.mxu0 0.0
        %996 = vmatpush1.msra.mxu0 0.0
        %997 = vmatprep.subr.mxu0 0.0
        %998 = vmatpush1.msra.mxu0 0.0
        %999 = vmatprep.subr.mxu0 0.0
        %1000 = vmatpush1.msra.mxu0 0.0
        %1001 = vmatprep.subr.mxu0 0.0
        %1002 = vmatpush1.msra.mxu0 0.0
        %1003 = vmatprep.subr.mxu0 0.0
        %1004 = vmatpush1.msra.mxu0 0.0
        %1005 = vmatprep.subr.mxu0 0.0
        %1006 = vmatpush1.msra.mxu0 0.0
        %1007 = vmatprep.subr.mxu0 0.0
        %1008 = vmatpush1.msra.mxu0 0.0
        %1009 = vmatprep.subr.mxu0 0.0
        %1010 = vmatpush1.msra.mxu0 0.0
        %1011 = vmatprep.subr.mxu0 0.0
        %1012 = vmatpush1.msra.mxu0 0.0
        %1013 = vmatprep.subr.mxu0 0.0
        %1014 = vmatpush1.msra.mxu0 0.0
        %1015 = vmatprep.subr.mxu0 0.0
        %1016 = vmatpush1.msra.mxu0 0.0
        %1017 = vmatprep.subr.mxu0 0.0
        %1018 = vmatpush1.msra.mxu0 0.0
        %1019 = vmatprep.subr.mxu0 0.0
        %1020 = vmatpush1.msra.mxu0 0.0
        %1021 = vmatprep.subr.mxu0 0.0
        %1022 = vmatpush1.msra.mxu0 0.0
        %1023 = vmatprep.subr.mxu0 0.0
        %1024 = vmatpush1.msra.mxu0 0.0
        %1025 = vmatprep.mubr.f32.mxu0 0.0
        %1026 = vmatmul.mubr.f32.gmra.mrb[0].mxu0 %v959
        %v1027 = vpop.f32.mrb[0].mxu0
        %v1028 = vadd.f32 0.0, %v1027
        %v1029 = vpop.f32.mrb[0].mxu0
        %1030 = vdwg.mxu0
        %1031 = vrot.lane.b32.xlu0 %v852, 120
        %v1032 = vpop.permute.xlu0 %1031
        %1033 = vrot.lane.b32.xlu0 %v852, 88
        %v1034 = vpop.permute.xlu0 %1033
        %v1035 = vsel %vm863, %v1032, 0
        %v1037 = vsel %vm863, %v1034, 0
        %1039 = vmatprep.subr.mxu0 0.0
        %1040 = vmatpush1.xpose.msra.mxu0 %v1037
        %1041 = vmatprep.subr.mxu0 0.0
        %1042 = vmatpush1.xpose.msra.mxu0 0.0
        %1043 = vmatprep.subr.mxu0 0.0
        %1044 = vmatpush1.xpose.msra.mxu0 0.0
        %1045 = vmatprep.subr.mxu0 0.0
        %1046 = vmatpush1.xpose.msra.mxu0 0.0
        %1047 = vmatprep.subr.mxu0 0.0
        %1048 = vmatpush1.xpose.msra.mxu0 0.0
        %1049 = vmatprep.subr.mxu0 0.0
        %1050 = vmatpush1.xpose.msra.mxu0 0.0
        %1051 = vmatprep.subr.mxu0 0.0
        %1052 = vmatpush1.xpose.msra.mxu0 0.0
        %1053 = vmatprep.subr.mxu0 0.0
        %1054 = vmatpush1.xpose.msra.mxu0 0.0
        %1055 = vmatprep.subr.mxu0 0.0
        %1056 = vmatpush1.xpose.msra.mxu0 0.0
        %1057 = vmatprep.subr.mxu0 0.0
        %1058 = vmatpush1.xpose.msra.mxu0 0.0
        %1059 = vmatprep.subr.mxu0 0.0
        %1060 = vmatpush1.xpose.msra.mxu0 0.0
        %1061 = vmatprep.subr.mxu0 0.0
        %1062 = vmatpush1.xpose.msra.mxu0 0.0
        %1063 = vmatprep.subr.mxu0 0.0
        %1064 = vmatpush1.xpose.msra.mxu0 0.0
        %1065 = vmatprep.subr.mxu0 0.0
        %1066 = vmatpush1.xpose.msra.mxu0 0.0
        %1067 = vmatprep.subr.mxu0 0.0
        %1068 = vmatpush1.xpose.msra.mxu0 0.0
        %1069 = vmatprep.subr.mxu0 0.0
        %1070 = vmatpush1.xpose.msra.mxu0 0.0
        %1071 = vmatprep.subr.mxu0 0.0
        %1072 = vmatpush1.xpose.msra.mxu0 0.0
        %1073 = vmatprep.subr.mxu0 0.0
        %1074 = vmatpush1.xpose.msra.mxu0 0.0
        %1075 = vmatprep.subr.mxu0 0.0
        %1076 = vmatpush1.xpose.msra.mxu0 0.0
        %1077 = vmatprep.subr.mxu0 0.0
        %1078 = vmatpush1.xpose.msra.mxu0 0.0
        %1079 = vmatprep.subr.mxu0 0.0
        %1080 = vmatpush1.xpose.msra.mxu0 0.0
        %1081 = vmatprep.subr.mxu0 0.0
        %1082 = vmatpush1.xpose.msra.mxu0 0.0
        %1083 = vmatprep.subr.mxu0 0.0
        %1084 = vmatpush1.xpose.msra.mxu0 0.0
        %1085 = vmatprep.subr.mxu0 0.0
        %1086 = vmatpush1.xpose.msra.mxu0 0.0
        %1087 = vmatprep.subr.mxu0 0.0
        %1088 = vmatpush1.xpose.msra.mxu0 0.0
        %1089 = vmatprep.subr.mxu0 0.0
        %1090 = vmatpush1.xpose.msra.mxu0 0.0
        %1091 = vmatprep.subr.mxu0 0.0
        %1092 = vmatpush1.xpose.msra.mxu0 0.0
        %1093 = vmatprep.subr.mxu0 0.0
        %1094 = vmatpush1.xpose.msra.mxu0 0.0
        %1095 = vmatprep.subr.mxu0 0.0
        %1096 = vmatpush1.xpose.msra.mxu0 0.0
        %1097 = vmatprep.subr.mxu0 0.0
        %1098 = vmatpush1.xpose.msra.mxu0 0.0
        %1099 = vmatprep.subr.mxu0 0.0
        %1100 = vmatpush1.xpose.msra.mxu0 0.0
        %1101 = vmatprep.subr.mxu0 0.0
        %1102 = vmatpush1.xpose.msra.mxu0 0.0
        %1103 = vmatprep.mubr.f32.mxu0 0.0
        %1104 = vmatmul.mubr.f32.gmra.mrb[0].mxu0 %v1035
        %v1105 = vpop.f32.mrb[0].mxu0
        %v1106 = vadd.f32 0.0, %v1105
        %v1107 = vpop.f32.mrb[0].mxu0
        %1108 = vdwg.mxu0
        %v1109 = vmul.f32 %v1106, 0.35355338
        %v1110 = vadd.f32 %v1109, %v942
        %v1111 = vsel %vm863, %v1110, -inf
        %1112 = vmax.xlane.f32.xlu0 %v1111
        %v1113 = vpop.xlane.xlu0 %1112
        %v1114 = vsub.f32 %v1110, %v1113
        %v1115 = vmul.f32 %v1114, 1.442695
        %v1116 = vpow.pop %v1115
        %v1117 = vsel %vm863, %v1116, 0.0
        %1118 = vadd.xlane.f32.xlu0 %v1117
        %v1119 = vpop.xlane.xlu0 %1118
        %v1120 = vrcp.pop %v1119
        %v1121 = vmul.f32 %v1116, %v1120
        %1122 = vrot.lane.b32.xlu0 %v852, 56
        %v1123 = vpop.permute.xlu0 %1122
        %v1126 = vsel %vm863, %v1121, 0
        %1128 = vmatprep.subr.mxu0 0.0
        %1129 = vmatpush1.msra.mxu0 %v1123
        %1130 = vmatprep.subr.mxu0 0.0
        %1131 = vmatpush1.msra.mxu0 0.0
        %1132 = vmatprep.subr.mxu0 0.0
        %1133 = vmatpush1.msra.mxu0 0.0
        %1134 = vmatprep.subr.mxu0 0.0
        %1135 = vmatpush1.msra.mxu0 0.0
        %1136 = vmatprep.subr.mxu0 0.0
        %1137 = vmatpush1.msra.mxu0 0.0
        %1138 = vmatprep.subr.mxu0 0.0
        %1139 = vmatpush1.msra.mxu0 0.0
        %1140 = vmatprep.subr.mxu0 0.0
        %1141 = vmatpush1.msra.mxu0 0.0
        %1142 = vmatprep.subr.mxu0 0.0
        %1143 = vmatpush1.msra.mxu0 0.0
        %1144 = vmatprep.subr.mxu0 0.0
        %1145 = vmatpush1.msra.mxu0 0.0
        %1146 = vmatprep.subr.mxu0 0.0
        %1147 = vmatpush1.msra.mxu0 0.0
        %1148 = vmatprep.subr.mxu0 0.0
        %1149 = vmatpush1.msra.mxu0 0.0
        %1150 = vmatprep.subr.mxu0 0.0
        %1151 = vmatpush1.msra.mxu0 0.0
        %1152 = vmatprep.subr.mxu0 0.0
        %1153 = vmatpush1.msra.mxu0 0.0
        %1154 = vmatprep.subr.mxu0 0.0
        %1155 = vmatpush1.msra.mxu0 0.0
        %1156 = vmatprep.subr.mxu0 0.0
        %1157 = vmatpush1.msra.mxu0 0.0
        %1158 = vmatprep.subr.mxu0 0.0
        %1159 = vmatpush1.msra.mxu0 0.0
        %1160 = vmatprep.subr.mxu0 0.0
        %1161 = vmatpush1.msra.mxu0 0.0
        %1162 = vmatprep.subr.mxu0 0.0
        %1163 = vmatpush1.msra.mxu0 0.0
        %1164 = vmatprep.subr.mxu0 0.0
        %1165 = vmatpush1.msra.mxu0 0.0
        %1166 = vmatprep.subr.mxu0 0.0
        %1167 = vmatpush1.msra.mxu0 0.0
        %1168 = vmatprep.subr.mxu0 0.0
        %1169 = vmatpush1.msra.mxu0 0.0
        %1170 = vmatprep.subr.mxu0 0.0
        %1171 = vmatpush1.msra.mxu0 0.0
        %1172 = vmatprep.subr.mxu0 0.0
        %1173 = vmatpush1.msra.mxu0 0.0
        %1174 = vmatprep.subr.mxu0 0.0
        %1175 = vmatpush1.msra.mxu0 0.0
        %1176 = vmatprep.subr.mxu0 0.0
        %1177 = vmatpush1.msra.mxu0 0.0
        %1178 = vmatprep.subr.mxu0 0.0
        %1179 = vmatpush1.msra.mxu0 0.0
        %1180 = vmatprep.subr.mxu0 0.0
        %1181 = vmatpush1.msra.mxu0 0.0
        %1182 = vmatprep.subr.mxu0 0.0
        %1183 = vmatpush1.msra.mxu0 0.0
        %1184 = vmatprep.subr.mxu0 0.0
        %1185 = vmatpush1.msra.mxu0 0.0
        %1186 = vmatprep.subr.mxu0 0.0
        %1187 = vmatpush1.msra.mxu0 0.0
        %1188 = vmatprep.subr.mxu0 0.0
        %1189 = vmatpush1.msra.mxu0 0.0
        %1190 = vmatprep.subr.mxu0 0.0
        %1191 = vmatpush1.msra.mxu0 0.0
        %1192 = vmatprep.mubr.f32.mxu0 0.0
        %1193 = vmatmul.mubr.f32.gmra.mrb[0].mxu0 %v1126
        %v1194 = vpop.f32.mrb[0].mxu0
        %v1195 = vadd.f32 0.0, %v1194
        %v1196 = vpop.f32.mrb[0].mxu0
        %1197 = vdwg.mxu0
        %1198 = vrot.lane.b32.xlu0 %v852, 112
        %v1199 = vpop.permute.xlu0 %1198
        %1200 = vrot.lane.b32.xlu0 %v852, 80
        %v1201 = vpop.permute.xlu0 %1200
        %v1202 = vsel %vm863, %v1199, 0
        %v1204 = vsel %vm863, %v1201, 0
        %1206 = vmatprep.subr.mxu0 0.0
        %1207 = vmatpush1.xpose.msra.mxu0 %v1204
        %1208 = vmatprep.subr.mxu0 0.0
        %1209 = vmatpush1.xpose.msra.mxu0 0.0
        %1210 = vmatprep.subr.mxu0 0.0
        %1211 = vmatpush1.xpose.msra.mxu0 0.0
        %1212 = vmatprep.subr.mxu0 0.0
        %1213 = vmatpush1.xpose.msra.mxu0 0.0
        %1214 = vmatprep.subr.mxu0 0.0
        %1215 = vmatpush1.xpose.msra.mxu0 0.0
        %1216 = vmatprep.subr.mxu0 0.0
        %1217 = vmatpush1.xpose.msra.mxu0 0.0
        %1218 = vmatprep.subr.mxu0 0.0
        %1219 = vmatpush1.xpose.msra.mxu0 0.0
        %1220 = vmatprep.subr.mxu0 0.0
        %1221 = vmatpush1.xpose.msra.mxu0 0.0
        %1222 = vmatprep.subr.mxu0 0.0
        %1223 = vmatpush1.xpose.msra.mxu0 0.0
        %1224 = vmatprep.subr.mxu0 0.0
        %1225 = vmatpush1.xpose.msra.mxu0 0.0
        %1226 = vmatprep.subr.mxu0 0.0
        %1227 = vmatpush1.xpose.msra.mxu0 0.0
        %1228 = vmatprep.subr.mxu0 0.0
        %1229 = vmatpush1.xpose.msra.mxu0 0.0
        %1230 = vmatprep.subr.mxu0 0.0
        %1231 = vmatpush1.xpose.msra.mxu0 0.0
        %1232 = vmatprep.subr.mxu0 0.0
        %1233 = vmatpush1.xpose.msra.mxu0 0.0
        %1234 = vmatprep.subr.mxu0 0.0
        %1235 = vmatpush1.xpose.msra.mxu0 0.0
        %1236 = vmatprep.subr.mxu0 0.0
        %1237 = vmatpush1.xpose.msra.mxu0 0.0
        %1238 = vmatprep.subr.mxu0 0.0
        %1239 = vmatpush1.xpose.msra.mxu0 0.0
        %1240 = vmatprep.subr.mxu0 0.0
        %1241 = vmatpush1.xpose.msra.mxu0 0.0
        %1242 = vmatprep.subr.mxu0 0.0
        %1243 = vmatpush1.xpose.msra.mxu0 0.0
        %1244 = vmatprep.subr.mxu0 0.0
        %1245 = vmatpush1.xpose.msra.mxu0 0.0
        %1246 = vmatprep.subr.mxu0 0.0
        %1247 = vmatpush1.xpose.msra.mxu0 0.0
        %1248 = vmatprep.subr.mxu0 0.0
        %1249 = vmatpush1.xpose.msra.mxu0 0.0
        %1250 = vmatprep.subr.mxu0 0.0
        %1251 = vmatpush1.xpose.msra.mxu0 0.0
        %1252 = vmatprep.subr.mxu0 0.0
        %1253 = vmatpush1.xpose.msra.mxu0 0.0
        %1254 = vmatprep.subr.mxu0 0.0
        %1255 = vmatpush1.xpose.msra.mxu0 0.0
        %1256 = vmatprep.subr.mxu0 0.0
        %1257 = vmatpush1.xpose.msra.mxu0 0.0
        %1258 = vmatprep.subr.mxu0 0.0
        %1259 = vmatpush1.xpose.msra.mxu0 0.0
        %1260 = vmatprep.subr.mxu0 0.0
        %1261 = vmatpush1.xpose.msra.mxu0 0.0
        %1262 = vmatprep.subr.mxu0 0.0
        %1263 = vmatpush1.xpose.msra.mxu0 0.0
        %1264 = vmatprep.subr.mxu0 0.0
        %1265 = vmatpush1.xpose.msra.mxu0 0.0
        %1266 = vmatprep.subr.mxu0 0.0
        %1267 = vmatpush1.xpose.msra.mxu0 0.0
        %1268 = vmatprep.subr.mxu0 0.0
        %1269 = vmatpush1.xpose.msra.mxu0 0.0
        %1270 = vmatprep.mubr.f32.mxu0 0.0
        %1271 = vmatmul.mubr.f32.gmra.mrb[0].mxu0 %v1202
        %v1272 = vpop.f32.mrb[0].mxu0
        %v1273 = vadd.f32 0.0, %v1272
        %v1274 = vpop.f32.mrb[0].mxu0
        %1275 = vdwg.mxu0
        %v1276 = vmul.f32 %v1273, 0.35355338
        %v1277 = vadd.f32 %v1276, %v942
        %v1278 = vsel %vm863, %v1277, -inf
        %1279 = vmax.xlane.f32.xlu0 %v1278
        %v1280 = vpop.xlane.xlu0 %1279
        %v1281 = vsub.f32 %v1277, %v1280
        %v1282 = vmul.f32 %v1281, 1.442695
        %v1283 = vpow.pop %v1282
        %v1284 = vsel %vm863, %v1283, 0.0
        %1285 = vadd.xlane.f32.xlu0 %v1284
        %v1286 = vpop.xlane.xlu0 %1285
        %v1287 = vrcp.pop %v1286
        %v1288 = vmul.f32 %v1283, %v1287
        %1289 = vrot.lane.b32.xlu0 %v852, 48
        %v1290 = vpop.permute.xlu0 %1289
        %v1293 = vsel %vm863, %v1288, 0
        %1295 = vmatprep.subr.mxu0 0.0
        %1296 = vmatpush1.msra.mxu0 %v1290
        %1297 = vmatprep.subr.mxu0 0.0
        %1298 = vmatpush1.msra.mxu0 0.0
        %1299 = vmatprep.subr.mxu0 0.0
        %1300 = vmatpush1.msra.mxu0 0.0
        %1301 = vmatprep.subr.mxu0 0.0
        %1302 = vmatpush1.msra.mxu0 0.0
        %1303 = vmatprep.subr.mxu0 0.0
        %1304 = vmatpush1.msra.mxu0 0.0
        %1305 = vmatprep.subr.mxu0 0.0
        %1306 = vmatpush1.msra.mxu0 0.0
        %1307 = vmatprep.subr.mxu0 0.0
        %1308 = vmatpush1.msra.mxu0 0.0
        %1309 = vmatprep.subr.mxu0 0.0
        %1310 = vmatpush1.msra.mxu0 0.0
        %1311 = vmatprep.subr.mxu0 0.0
        %1312 = vmatpush1.msra.mxu0 0.0
        %1313 = vmatprep.subr.mxu0 0.0
        %1314 = vmatpush1.msra.mxu0 0.0
        %1315 = vmatprep.subr.mxu0 0.0
        %1316 = vmatpush1.msra.mxu0 0.0
        %1317 = vmatprep.subr.mxu0 0.0
        %1318 = vmatpush1.msra.mxu0 0.0
        %1319 = vmatprep.subr.mxu0 0.0
        %1320 = vmatpush1.msra.mxu0 0.0
        %1321 = vmatprep.subr.mxu0 0.0
        %1322 = vmatpush1.msra.mxu0 0.0
        %1323 = vmatprep.subr.mxu0 0.0
        %1324 = vmatpush1.msra.mxu0 0.0
        %1325 = vmatprep.subr.mxu0 0.0
        %1326 = vmatpush1.msra.mxu0 0.0
        %1327 = vmatprep.subr.mxu0 0.0
        %1328 = vmatpush1.msra.mxu0 0.0
        %1329 = vmatprep.subr.mxu0 0.0
        %1330 = vmatpush1.msra.mxu0 0.0
        %1331 = vmatprep.subr.mxu0 0.0
        %1332 = vmatpush1.msra.mxu0 0.0
        %1333 = vmatprep.subr.mxu0 0.0
        %1334 = vmatpush1.msra.mxu0 0.0
        %1335 = vmatprep.subr.mxu0 0.0
        %1336 = vmatpush1.msra.mxu0 0.0
        %1337 = vmatprep.subr.mxu0 0.0
        %1338 = vmatpush1.msra.mxu0 0.0
        %1339 = vmatprep.subr.mxu0 0.0
        %1340 = vmatpush1.msra.mxu0 0.0
        %1341 = vmatprep.subr.mxu0 0.0
        %1342 = vmatpush1.msra.mxu0 0.0
        %1343 = vmatprep.subr.mxu0 0.0
        %1344 = vmatpush1.msra.mxu0 0.0
        %1345 = vmatprep.subr.mxu0 0.0
        %1346 = vmatpush1.msra.mxu0 0.0
        %1347 = vmatprep.subr.mxu0 0.0
        %1348 = vmatpush1.msra.mxu0 0.0
        %1349 = vmatprep.subr.mxu0 0.0
        %1350 = vmatpush1.msra.mxu0 0.0
        %1351 = vmatprep.subr.mxu0 0.0
        %1352 = vmatpush1.msra.mxu0 0.0
        %1353 = vmatprep.subr.mxu0 0.0
        %1354 = vmatpush1.msra.mxu0 0.0
        %1355 = vmatprep.subr.mxu0 0.0
        %1356 = vmatpush1.msra.mxu0 0.0
        %1357 = vmatprep.subr.mxu0 0.0
        %1358 = vmatpush1.msra.mxu0 0.0
        %1359 = vmatprep.mubr.f32.mxu0 0.0
        %1360 = vmatmul.mubr.f32.gmra.mrb[0].mxu0 %v1293
        %v1361 = vpop.f32.mrb[0].mxu0
        %v1362 = vadd.f32 0.0, %v1361
        %v1363 = vpop.f32.mrb[0].mxu0
        %1364 = vdwg.mxu0
        %1365 = vrot.lane.b32.xlu0 %v852, 104
        %v1366 = vpop.permute.xlu0 %1365
        %1367 = vrot.lane.b32.xlu0 %v852, 72
        %v1368 = vpop.permute.xlu0 %1367
        %v1369 = vsel %vm863, %v1366, 0
        %v1371 = vsel %vm863, %v1368, 0
        %1373 = vmatprep.subr.mxu0 0.0
        %1374 = vmatpush1.xpose.msra.mxu0 %v1371
        %1375 = vmatprep.subr.mxu0 0.0
        %1376 = vmatpush1.xpose.msra.mxu0 0.0
        %1377 = vmatprep.subr.mxu0 0.0
        %1378 = vmatpush1.xpose.msra.mxu0 0.0
        %1379 = vmatprep.subr.mxu0 0.0
        %1380 = vmatpush1.xpose.msra.mxu0 0.0
        %1381 = vmatprep.subr.mxu0 0.0
        %1382 = vmatpush1.xpose.msra.mxu0 0.0
        %1383 = vmatprep.subr.mxu0 0.0
        %1384 = vmatpush1.xpose.msra.mxu0 0.0
        %1385 = vmatprep.subr.mxu0 0.0
        %1386 = vmatpush1.xpose.msra.mxu0 0.0
        %1387 = vmatprep.subr.mxu0 0.0
        %1388 = vmatpush1.xpose.msra.mxu0 0.0
        %1389 = vmatprep.subr.mxu0 0.0
        %1390 = vmatpush1.xpose.msra.mxu0 0.0
        %1391 = vmatprep.subr.mxu0 0.0
        %1392 = vmatpush1.xpose.msra.mxu0 0.0
        %1393 = vmatprep.subr.mxu0 0.0
        %1394 = vmatpush1.xpose.msra.mxu0 0.0
        %1395 = vmatprep.subr.mxu0 0.0
        %1396 = vmatpush1.xpose.msra.mxu0 0.0
        %1397 = vmatprep.subr.mxu0 0.0
        %1398 = vmatpush1.xpose.msra.mxu0 0.0
        %1399 = vmatprep.subr.mxu0 0.0
        %1400 = vmatpush1.xpose.msra.mxu0 0.0
        %1401 = vmatprep.subr.mxu0 0.0
        %1402 = vmatpush1.xpose.msra.mxu0 0.0
        %1403 = vmatprep.subr.mxu0 0.0
        %1404 = vmatpush1.xpose.msra.mxu0 0.0
        %1405 = vmatprep.subr.mxu0 0.0
        %1406 = vmatpush1.xpose.msra.mxu0 0.0
        %1407 = vmatprep.subr.mxu0 0.0
        %1408 = vmatpush1.xpose.msra.mxu0 0.0
        %1409 = vmatprep.subr.mxu0 0.0
        %1410 = vmatpush1.xpose.msra.mxu0 0.0
        %1411 = vmatprep.subr.mxu0 0.0
        %1412 = vmatpush1.xpose.msra.mxu0 0.0
        %1413 = vmatprep.subr.mxu0 0.0
        %1414 = vmatpush1.xpose.msra.mxu0 0.0
        %1415 = vmatprep.subr.mxu0 0.0
        %1416 = vmatpush1.xpose.msra.mxu0 0.0
        %1417 = vmatprep.subr.mxu0 0.0
        %1418 = vmatpush1.xpose.msra.mxu0 0.0
        %1419 = vmatprep.subr.mxu0 0.0
        %1420 = vmatpush1.xpose.msra.mxu0 0.0
        %1421 = vmatprep.subr.mxu0 0.0
        %1422 = vmatpush1.xpose.msra.mxu0 0.0
        %1423 = vmatprep.subr.mxu0 0.0
        %1424 = vmatpush1.xpose.msra.mxu0 0.0
        %1425 = vmatprep.subr.mxu0 0.0
        %1426 = vmatpush1.xpose.msra.mxu0 0.0
        %1427 = vmatprep.subr.mxu0 0.0
        %1428 = vmatpush1.xpose.msra.mxu0 0.0
        %1429 = vmatprep.subr.mxu0 0.0
        %1430 = vmatpush1.xpose.msra.mxu0 0.0
        %1431 = vmatprep.subr.mxu0 0.0
        %1432 = vmatpush1.xpose.msra.mxu0 0.0
        %1433 = vmatprep.subr.mxu0 0.0
        %1434 = vmatpush1.xpose.msra.mxu0 0.0
        %1435 = vmatprep.subr.mxu0 0.0
        %1436 = vmatpush1.xpose.msra.mxu0 0.0
        %1437 = vmatprep.mubr.f32.mxu0 0.0
        %1438 = vmatmul.mubr.f32.gmra.mrb[0].mxu0 %v1369
        %v1439 = vpop.f32.mrb[0].mxu0
        %v1440 = vadd.f32 0.0, %v1439
        %v1441 = vpop.f32.mrb[0].mxu0
        %1442 = vdwg.mxu0
        %v1443 = vmul.f32 %v1440, 0.35355338
        %v1444 = vadd.f32 %v1443, %v942
        %v1445 = vsel %vm863, %v1444, -inf
        %1446 = vmax.xlane.f32.xlu0 %v1445
        %v1447 = vpop.xlane.xlu0 %1446
        %v1448 = vsub.f32 %v1444, %v1447
        %v1449 = vmul.f32 %v1448, 1.442695
        %v1450 = vpow.pop %v1449
        %v1451 = vsel %vm863, %v1450, 0.0
        %1452 = vadd.xlane.f32.xlu0 %v1451
        %v1453 = vpop.xlane.xlu0 %1452
        %v1454 = vrcp.pop %v1453
        %v1455 = vmul.f32 %v1450, %v1454
        %1456 = vrot.lane.b32.xlu0 %v852, 40
        %v1457 = vpop.permute.xlu0 %1456
        %v1460 = vsel %vm863, %v1455, 0
        %1462 = vmatprep.subr.mxu0 0.0
        %1463 = vmatpush1.msra.mxu0 %v1457
        %1464 = vmatprep.subr.mxu0 0.0
        %1465 = vmatpush1.msra.mxu0 0.0
        %1466 = vmatprep.subr.mxu0 0.0
        %1467 = vmatpush1.msra.mxu0 0.0
        %1468 = vmatprep.subr.mxu0 0.0
        %1469 = vmatpush1.msra.mxu0 0.0
        %1470 = vmatprep.subr.mxu0 0.0
        %1471 = vmatpush1.msra.mxu0 0.0
        %1472 = vmatprep.subr.mxu0 0.0
        %1473 = vmatpush1.msra.mxu0 0.0
        %1474 = vmatprep.subr.mxu0 0.0
        %1475 = vmatpush1.msra.mxu0 0.0
        %1476 = vmatprep.subr.mxu0 0.0
        %1477 = vmatpush1.msra.mxu0 0.0
        %1478 = vmatprep.subr.mxu0 0.0
        %1479 = vmatpush1.msra.mxu0 0.0
        %1480 = vmatprep.subr.mxu0 0.0
        %1481 = vmatpush1.msra.mxu0 0.0
        %1482 = vmatprep.subr.mxu0 0.0
        %1483 = vmatpush1.msra.mxu0 0.0
        %1484 = vmatprep.subr.mxu0 0.0
        %1485 = vmatpush1.msra.mxu0 0.0
        %1486 = vmatprep.subr.mxu0 0.0
        %1487 = vmatpush1.msra.mxu0 0.0
        %1488 = vmatprep.subr.mxu0 0.0
        %1489 = vmatpush1.msra.mxu0 0.0
        %1490 = vmatprep.subr.mxu0 0.0
        %1491 = vmatpush1.msra.mxu0 0.0
        %1492 = vmatprep.subr.mxu0 0.0
        %1493 = vmatpush1.msra.mxu0 0.0
        %1494 = vmatprep.subr.mxu0 0.0
        %1495 = vmatpush1.msra.mxu0 0.0
        %1496 = vmatprep.subr.mxu0 0.0
        %1497 = vmatpush1.msra.mxu0 0.0
        %1498 = vmatprep.subr.mxu0 0.0
        %1499 = vmatpush1.msra.mxu0 0.0
        %1500 = vmatprep.subr.mxu0 0.0
        %1501 = vmatpush1.msra.mxu0 0.0
        %1502 = vmatprep.subr.mxu0 0.0
        %1503 = vmatpush1.msra.mxu0 0.0
        %1504 = vmatprep.subr.mxu0 0.0
        %1505 = vmatpush1.msra.mxu0 0.0
        %1506 = vmatprep.subr.mxu0 0.0
        %1507 = vmatpush1.msra.mxu0 0.0
        %1508 = vmatprep.subr.mxu0 0.0
        %1509 = vmatpush1.msra.mxu0 0.0
        %1510 = vmatprep.subr.mxu0 0.0
        %1511 = vmatpush1.msra.mxu0 0.0
        %1512 = vmatprep.subr.mxu0 0.0
        %1513 = vmatpush1.msra.mxu0 0.0
        %1514 = vmatprep.subr.mxu0 0.0
        %1515 = vmatpush1.msra.mxu0 0.0
        %1516 = vmatprep.subr.mxu0 0.0
        %1517 = vmatpush1.msra.mxu0 0.0
        %1518 = vmatprep.subr.mxu0 0.0
        %1519 = vmatpush1.msra.mxu0 0.0
        %1520 = vmatprep.subr.mxu0 0.0
        %1521 = vmatpush1.msra.mxu0 0.0
        %1522 = vmatprep.subr.mxu0 0.0
        %1523 = vmatpush1.msra.mxu0 0.0
        %1524 = vmatprep.subr.mxu0 0.0
        %1525 = vmatpush1.msra.mxu0 0.0
        %1526 = vmatprep.mubr.f32.mxu0 0.0
        %1527 = vmatmul.mubr.f32.gmra.mrb[0].mxu0 %v1460
        %v1528 = vpop.f32.mrb[0].mxu0
        %v1529 = vadd.f32 0.0, %v1528
        %v1530 = vpop.f32.mrb[0].mxu0
        %1531 = vdwg.mxu0
        %1533 = vrot.lane.b32.xlu0 %v1195, 8
        %v1534 = vpop.permute.xlu0 %1533
        %1537 = vrot.lane.b32.xlu0 %v1362, 16
        %v1538 = vpop.permute.xlu0 %1537
        %1541 = vrot.lane.b32.xlu0 %v1529, 24
        %v1542 = vpop.permute.xlu0 %1541
        %v1544 = vsel %vm863, %v1028, %v1534
        %vm1545 = vcmask 130048
        %v1546 = vsel %vm1545, %v1544, %v1538
        %vm1547 = vcmask 195584
        %v1548 = vsel %vm1547, %v1546, %v1542
        %1550 = vrot.lane.b32.xlu0 %v857, 96
        %v1551 = vpop.permute.xlu0 %1550
        %v1552 = vsel %vm863, %v857, 0
        %v1554 = vsel %vm863, %v1551, 0
        %1556 = vmatprep.subr.mxu0 0.0
        %1557 = vmatpush1.xpose.msra.mxu0 %v1554
        %1558 = vmatprep.subr.mxu0 0.0
        %1559 = vmatpush1.xpose.msra.mxu0 0.0
        %1560 = vmatprep.subr.mxu0 0.0
        %1561 = vmatpush1.xpose.msra.mxu0 0.0
        %1562 = vmatprep.subr.mxu0 0.0
        %1563 = vmatpush1.xpose.msra.mxu0 0.0
        %1564 = vmatprep.subr.mxu0 0.0
        %1565 = vmatpush1.xpose.msra.mxu0 0.0
        %1566 = vmatprep.subr.mxu0 0.0
        %1567 = vmatpush1.xpose.msra.mxu0 0.0
        %1568 = vmatprep.subr.mxu0 0.0
        %1569 = vmatpush1.xpose.msra.mxu0 0.0
        %1570 = vmatprep.subr.mxu0 0.0
        %1571 = vmatpush1.xpose.msra.mxu0 0.0
        %1572 = vmatprep.subr.mxu0 0.0
        %1573 = vmatpush1.xpose.msra.mxu0 0.0
        %1574 = vmatprep.subr.mxu0 0.0
        %1575 = vmatpush1.xpose.msra.mxu0 0.0
        %1576 = vmatprep.subr.mxu0 0.0
        %1577 = vmatpush1.xpose.msra.mxu0 0.0
        %1578 = vmatprep.subr.mxu0 0.0
        %1579 = vmatpush1.xpose.msra.mxu0 0.0
        %1580 = vmatprep.subr.mxu0 0.0
        %1581 = vmatpush1.xpose.msra.mxu0 0.0
        %1582 = vmatprep.subr.mxu0 0.0
        %1583 = vmatpush1.xpose.msra.mxu0 0.0
        %1584 = vmatprep.subr.mxu0 0.0
        %1585 = vmatpush1.xpose.msra.mxu0 0.0
        %1586 = vmatprep.subr.mxu0 0.0
        %1587 = vmatpush1.xpose.msra.mxu0 0.0
        %1588 = vmatprep.subr.mxu0 0.0
        %1589 = vmatpush1.xpose.msra.mxu0 0.0
        %1590 = vmatprep.subr.mxu0 0.0
        %1591 = vmatpush1.xpose.msra.mxu0 0.0
        %1592 = vmatprep.subr.mxu0 0.0
        %1593 = vmatpush1.xpose.msra.mxu0 0.0
        %1594 = vmatprep.subr.mxu0 0.0
        %1595 = vmatpush1.xpose.msra.mxu0 0.0
        %1596 = vmatprep.subr.mxu0 0.0
        %1597 = vmatpush1.xpose.msra.mxu0 0.0
        %1598 = vmatprep.subr.mxu0 0.0
        %1599 = vmatpush1.xpose.msra.mxu0 0.0
        %1600 = vmatprep.subr.mxu0 0.0
        %1601 = vmatpush1.xpose.msra.mxu0 0.0
        %1602 = vmatprep.subr.mxu0 0.0
        %1603 = vmatpush1.xpose.msra.mxu0 0.0
        %1604 = vmatprep.subr.mxu0 0.0
        %1605 = vmatpush1.xpose.msra.mxu0 0.0
        %1606 = vmatprep.subr.mxu0 0.0
        %1607 = vmatpush1.xpose.msra.mxu0 0.0
        %1608 = vmatprep.subr.mxu0 0.0
        %1609 = vmatpush1.xpose.msra.mxu0 0.0
        %1610 = vmatprep.subr.mxu0 0.0
        %1611 = vmatpush1.xpose.msra.mxu0 0.0
        %1612 = vmatprep.subr.mxu0 0.0
        %1613 = vmatpush1.xpose.msra.mxu0 0.0
        %1614 = vmatprep.subr.mxu0 0.0
        %1615 = vmatpush1.xpose.msra.mxu0 0.0
        %1616 = vmatprep.subr.mxu0 0.0
        %1617 = vmatpush1.xpose.msra.mxu0 0.0
        %1618 = vmatprep.subr.mxu0 0.0
        %1619 = vmatpush1.xpose.msra.mxu0 0.0
        %1620 = vmatprep.mubr.f32.mxu0 0.0
        %1621 = vmatmul.mubr.f32.gmra.mrb[0].mxu0 %v1552
        %v1622 = vpop.f32.mrb[0].mxu0
        %v1623 = vadd.f32 0.0, %v1622
        %v1624 = vpop.f32.mrb[0].mxu0
        %1625 = vdwg.mxu0
        %v1626 = vmul.f32 %v1623, 0.35355338
        %v1627 = vlaneseq
        %v1628 = vshrl.u32 %v1627, 7
        %v1629 = vsub.s32 1, %v1628
        %v1630 = vrot.slane %v706, %v1629
        %v1631 = vadd.f32 %v1626, %v1630
        %v1632 = vsel %vm863, %v1631, -inf
        %1633 = vmax.xlane.f32.xlu0 %v1632
        %v1634 = vpop.xlane.xlu0 %1633
        %v1635 = vsub.f32 %v1631, %v1634
        %v1636 = vmul.f32 %v1635, 1.442695
        %v1637 = vpow.pop %v1636
        %v1638 = vsel %vm863, %v1637, 0.0
        %1639 = vadd.xlane.f32.xlu0 %v1638
        %v1640 = vpop.xlane.xlu0 %1639
        %v1641 = vrcp.pop %v1640
        %v1642 = vmul.f32 %v1637, %v1641
        %1643 = vrot.lane.b32.xlu0 %v857, 64
        %v1644 = vpop.permute.xlu0 %1643
        %v1647 = vsel %vm863, %v1642, 0
        %1649 = vmatprep.subr.mxu0 0.0
        %1650 = vmatpush1.msra.mxu0 %v1644
        %1651 = vmatprep.subr.mxu0 0.0
        %1652 = vmatpush1.msra.mxu0 0.0
        %1653 = vmatprep.subr.mxu0 0.0
        %1654 = vmatpush1.msra.mxu0 0.0
        %1655 = vmatprep.subr.mxu0 0.0
        %1656 = vmatpush1.msra.mxu0 0.0
        %1657 = vmatprep.subr.mxu0 0.0
        %1658 = vmatpush1.msra.mxu0 0.0
        %1659 = vmatprep.subr.mxu0 0.0
        %1660 = vmatpush1.msra.mxu0 0.0
        %1661 = vmatprep.subr.mxu0 0.0
        %1662 = vmatpush1.msra.mxu0 0.0
        %1663 = vmatprep.subr.mxu0 0.0
        %1664 = vmatpush1.msra.mxu0 0.0
        %1665 = vmatprep.subr.mxu0 0.0
        %1666 = vmatpush1.msra.mxu0 0.0
        %1667 = vmatprep.subr.mxu0 0.0
        %1668 = vmatpush1.msra.mxu0 0.0
        %1669 = vmatprep.subr.mxu0 0.0
        %1670 = vmatpush1.msra.mxu0 0.0
        %1671 = vmatprep.subr.mxu0 0.0
        %1672 = vmatpush1.msra.mxu0 0.0
        %1673 = vmatprep.subr.mxu0 0.0
        %1674 = vmatpush1.msra.mxu0 0.0
        %1675 = vmatprep.subr.mxu0 0.0
        %1676 = vmatpush1.msra.mxu0 0.0
        %1677 = vmatprep.subr.mxu0 0.0
        %1678 = vmatpush1.msra.mxu0 0.0
        %1679 = vmatprep.subr.mxu0 0.0
        %1680 = vmatpush1.msra.mxu0 0.0
        %1681 = vmatprep.subr.mxu0 0.0
        %1682 = vmatpush1.msra.mxu0 0.0
        %1683 = vmatprep.subr.mxu0 0.0
        %1684 = vmatpush1.msra.mxu0 0.0
        %1685 = vmatprep.subr.mxu0 0.0
        %1686 = vmatpush1.msra.mxu0 0.0
        %1687 = vmatprep.subr.mxu0 0.0
        %1688 = vmatpush1.msra.mxu0 0.0
        %1689 = vmatprep.subr.mxu0 0.0
        %1690 = vmatpush1.msra.mxu0 0.0
        %1691 = vmatprep.subr.mxu0 0.0
        %1692 = vmatpush1.msra.mxu0 0.0
        %1693 = vmatprep.subr.mxu0 0.0
        %1694 = vmatpush1.msra.mxu0 0.0
        %1695 = vmatprep.subr.mxu0 0.0
        %1696 = vmatpush1.msra.mxu0 0.0
        %1697 = vmatprep.subr.mxu0 0.0
        %1698 = vmatpush1.msra.mxu0 0.0
        %1699 = vmatprep.subr.mxu0 0.0
        %1700 = vmatpush1.msra.mxu0 0.0
        %1701 = vmatprep.subr.mxu0 0.0
        %1702 = vmatpush1.msra.mxu0 0.0
        %1703 = vmatprep.subr.mxu0 0.0
        %1704 = vmatpush1.msra.mxu0 0.0
        %1705 = vmatprep.subr.mxu0 0.0
        %1706 = vmatpush1.msra.mxu0 0.0
        %1707 = vmatprep.subr.mxu0 0.0
        %1708 = vmatpush1.msra.mxu0 0.0
        %1709 = vmatprep.subr.mxu0 0.0
        %1710 = vmatpush1.msra.mxu0 0.0
        %1711 = vmatprep.subr.mxu0 0.0
        %1712 = vmatpush1.msra.mxu0 0.0
        %1713 = vmatprep.mubr.f32.mxu0 0.0
        %1714 = vmatmul.mubr.f32.gmra.mrb[0].mxu0 %v1647
        %v1715 = vpop.f32.mrb[0].mxu0
        %v1716 = vadd.f32 0.0, %v1715
        %v1717 = vpop.f32.mrb[0].mxu0
        %1718 = vdwg.mxu0
        %1719 = vrot.lane.b32.xlu0 %v857, 120
        %v1720 = vpop.permute.xlu0 %1719
        %1721 = vrot.lane.b32.xlu0 %v857, 88
        %v1722 = vpop.permute.xlu0 %1721
        %v1723 = vsel %vm863, %v1720, 0
        %v1725 = vsel %vm863, %v1722, 0
        %1727 = vmatprep.subr.mxu0 0.0
        %1728 = vmatpush1.xpose.msra.mxu0 %v1725
        %1729 = vmatprep.subr.mxu0 0.0
        %1730 = vmatpush1.xpose.msra.mxu0 0.0
        %1731 = vmatprep.subr.mxu0 0.0
        %1732 = vmatpush1.xpose.msra.mxu0 0.0
        %1733 = vmatprep.subr.mxu0 0.0
        %1734 = vmatpush1.xpose.msra.mxu0 0.0
        %1735 = vmatprep.subr.mxu0 0.0
        %1736 = vmatpush1.xpose.msra.mxu0 0.0
        %1737 = vmatprep.subr.mxu0 0.0
        %1738 = vmatpush1.xpose.msra.mxu0 0.0
        %1739 = vmatprep.subr.mxu0 0.0
        %1740 = vmatpush1.xpose.msra.mxu0 0.0
        %1741 = vmatprep.subr.mxu0 0.0
        %1742 = vmatpush1.xpose.msra.mxu0 0.0
        %1743 = vmatprep.subr.mxu0 0.0
        %1744 = vmatpush1.xpose.msra.mxu0 0.0
        %1745 = vmatprep.subr.mxu0 0.0
        %1746 = vmatpush1.xpose.msra.mxu0 0.0
        %1747 = vmatprep.subr.mxu0 0.0
        %1748 = vmatpush1.xpose.msra.mxu0 0.0
        %1749 = vmatprep.subr.mxu0 0.0
        %1750 = vmatpush1.xpose.msra.mxu0 0.0
        %1751 = vmatprep.subr.mxu0 0.0
        %1752 = vmatpush1.xpose.msra.mxu0 0.0
        %1753 = vmatprep.subr.mxu0 0.0
        %1754 = vmatpush1.xpose.msra.mxu0 0.0
        %1755 = vmatprep.subr.mxu0 0.0
        %1756 = vmatpush1.xpose.msra.mxu0 0.0
        %1757 = vmatprep.subr.mxu0 0.0
        %1758 = vmatpush1.xpose.msra.mxu0 0.0
        %1759 = vmatprep.subr.mxu0 0.0
        %1760 = vmatpush1.xpose.msra.mxu0 0.0
        %1761 = vmatprep.subr.mxu0 0.0
        %1762 = vmatpush1.xpose.msra.mxu0 0.0
        %1763 = vmatprep.subr.mxu0 0.0
        %1764 = vmatpush1.xpose.msra.mxu0 0.0
        %1765 = vmatprep.subr.mxu0 0.0
        %1766 = vmatpush1.xpose.msra.mxu0 0.0
        %1767 = vmatprep.subr.mxu0 0.0
        %1768 = vmatpush1.xpose.msra.mxu0 0.0
        %1769 = vmatprep.subr.mxu0 0.0
        %1770 = vmatpush1.xpose.msra.mxu0 0.0
        %1771 = vmatprep.subr.mxu0 0.0
        %1772 = vmatpush1.xpose.msra.mxu0 0.0
        %1773 = vmatprep.subr.mxu0 0.0
        %1774 = vmatpush1.xpose.msra.mxu0 0.0
        %1775 = vmatprep.subr.mxu0 0.0
        %1776 = vmatpush1.xpose.msra.mxu0 0.0
        %1777 = vmatprep.subr.mxu0 0.0
        %1778 = vmatpush1.xpose.msra.mxu0 0.0
        %1779 = vmatprep.subr.mxu0 0.0
        %1780 = vmatpush1.xpose.msra.mxu0 0.0
        %1781 = vmatprep.subr.mxu0 0.0
        %1782 = vmatpush1.xpose.msra.mxu0 0.0
        %1783 = vmatprep.subr.mxu0 0.0
        %1784 = vmatpush1.xpose.msra.mxu0 0.0
        %1785 = vmatprep.subr.mxu0 0.0
        %1786 = vmatpush1.xpose.msra.mxu0 0.0
        %1787 = vmatprep.subr.mxu0 0.0
        %1788 = vmatpush1.xpose.msra.mxu0 0.0
        %1789 = vmatprep.subr.mxu0 0.0
        %1790 = vmatpush1.xpose.msra.mxu0 0.0
        %1791 = vmatprep.mubr.f32.mxu0 0.0
        %1792 = vmatmul.mubr.f32.gmra.mrb[0].mxu0 %v1723
        %v1793 = vpop.f32.mrb[0].mxu0
        %v1794 = vadd.f32 0.0, %v1793
        %v1795 = vpop.f32.mrb[0].mxu0
        %1796 = vdwg.mxu0
        %v1797 = vmul.f32 %v1794, 0.35355338
        %v1798 = vadd.f32 %v1797, %v1630
        %v1799 = vsel %vm863, %v1798, -inf
        %1800 = vmax.xlane.f32.xlu0 %v1799
        %v1801 = vpop.xlane.xlu0 %1800
        %v1802 = vsub.f32 %v1798, %v1801
        %v1803 = vmul.f32 %v1802, 1.442695
        %v1804 = vpow.pop %v1803
        %v1805 = vsel %vm863, %v1804, 0.0
        %1806 = vadd.xlane.f32.xlu0 %v1805
        %v1807 = vpop.xlane.xlu0 %1806
        %v1808 = vrcp.pop %v1807
        %v1809 = vmul.f32 %v1804, %v1808
        %1810 = vrot.lane.b32.xlu0 %v857, 56
        %v1811 = vpop.permute.xlu0 %1810
        %v1814 = vsel %vm863, %v1809, 0
        %1816 = vmatprep.subr.mxu0 0.0
        %1817 = vmatpush1.msra.mxu0 %v1811
        %1818 = vmatprep.subr.mxu0 0.0
        %1819 = vmatpush1.msra.mxu0 0.0
        %1820 = vmatprep.subr.mxu0 0.0
        %1821 = vmatpush1.msra.mxu0 0.0
        %1822 = vmatprep.subr.mxu0 0.0
        %1823 = vmatpush1.msra.mxu0 0.0
        %1824 = vmatprep.subr.mxu0 0.0
        %1825 = vmatpush1.msra.mxu0 0.0
        %1826 = vmatprep.subr.mxu0 0.0
        %1827 = vmatpush1.msra.mxu0 0.0
        %1828 = vmatprep.subr.mxu0 0.0
        %1829 = vmatpush1.msra.mxu0 0.0
        %1830 = vmatprep.subr.mxu0 0.0
        %1831 = vmatpush1.msra.mxu0 0.0
        %1832 = vmatprep.subr.mxu0 0.0
        %1833 = vmatpush1.msra.mxu0 0.0
        %1834 = vmatprep.subr.mxu0 0.0
        %1835 = vmatpush1.msra.mxu0 0.0
        %1836 = vmatprep.subr.mxu0 0.0
        %1837 = vmatpush1.msra.mxu0 0.0
        %1838 = vmatprep.subr.mxu0 0.0
        %1839 = vmatpush1.msra.mxu0 0.0
        %1840 = vmatprep.subr.mxu0 0.0
        %1841 = vmatpush1.msra.mxu0 0.0
        %1842 = vmatprep.subr.mxu0 0.0
        %1843 = vmatpush1.msra.mxu0 0.0
        %1844 = vmatprep.subr.mxu0 0.0
        %1845 = vmatpush1.msra.mxu0 0.0
        %1846 = vmatprep.subr.mxu0 0.0
        %1847 = vmatpush1.msra.mxu0 0.0
        %1848 = vmatprep.subr.mxu0 0.0
        %1849 = vmatpush1.msra.mxu0 0.0
        %1850 = vmatprep.subr.mxu0 0.0
        %1851 = vmatpush1.msra.mxu0 0.0
        %1852 = vmatprep.subr.mxu0 0.0
        %1853 = vmatpush1.msra.mxu0 0.0
        %1854 = vmatprep.subr.mxu0 0.0
        %1855 = vmatpush1.msra.mxu0 0.0
        %1856 = vmatprep.subr.mxu0 0.0
        %1857 = vmatpush1.msra.mxu0 0.0
        %1858 = vmatprep.subr.mxu0 0.0
        %1859 = vmatpush1.msra.mxu0 0.0
        %1860 = vmatprep.subr.mxu0 0.0
        %1861 = vmatpush1.msra.mxu0 0.0
        %1862 = vmatprep.subr.mxu0 0.0
        %1863 = vmatpush1.msra.mxu0 0.0
        %1864 = vmatprep.subr.mxu0 0.0
        %1865 = vmatpush1.msra.mxu0 0.0
        %1866 = vmatprep.subr.mxu0 0.0
        %1867 = vmatpush1.msra.mxu0 0.0
        %1868 = vmatprep.subr.mxu0 0.0
        %1869 = vmatpush1.msra.mxu0 0.0
        %1870 = vmatprep.subr.mxu0 0.0
        %1871 = vmatpush1.msra.mxu0 0.0
        %1872 = vmatprep.subr.mxu0 0.0
        %1873 = vmatpush1.msra.mxu0 0.0
        %1874 = vmatprep.subr.mxu0 0.0
        %1875 = vmatpush1.msra.mxu0 0.0
        %1876 = vmatprep.subr.mxu0 0.0
        %1877 = vmatpush1.msra.mxu0 0.0
        %1878 = vmatprep.subr.mxu0 0.0
        %1879 = vmatpush1.msra.mxu0 0.0
        %1880 = vmatprep.mubr.f32.mxu0 0.0
        %1881 = vmatmul.mubr.f32.gmra.mrb[0].mxu0 %v1814
        %v1882 = vpop.f32.mrb[0].mxu0
        %v1883 = vadd.f32 0.0, %v1882
        %v1884 = vpop.f32.mrb[0].mxu0
        %1885 = vdwg.mxu0
        %1886 = vrot.lane.b32.xlu0 %v857, 112
        %v1887 = vpop.permute.xlu0 %1886
        %1888 = vrot.lane.b32.xlu0 %v857, 80
        %v1889 = vpop.permute.xlu0 %1888
        %v1890 = vsel %vm863, %v1887, 0
        %v1892 = vsel %vm863, %v1889, 0
        %1894 = vmatprep.subr.mxu0 0.0
        %1895 = vmatpush1.xpose.msra.mxu0 %v1892
        %1896 = vmatprep.subr.mxu0 0.0
        %1897 = vmatpush1.xpose.msra.mxu0 0.0
        %1898 = vmatprep.subr.mxu0 0.0
        %1899 = vmatpush1.xpose.msra.mxu0 0.0
        %1900 = vmatprep.subr.mxu0 0.0
        %1901 = vmatpush1.xpose.msra.mxu0 0.0
        %1902 = vmatprep.subr.mxu0 0.0
        %1903 = vmatpush1.xpose.msra.mxu0 0.0
        %1904 = vmatprep.subr.mxu0 0.0
        %1905 = vmatpush1.xpose.msra.mxu0 0.0
        %1906 = vmatprep.subr.mxu0 0.0
        %1907 = vmatpush1.xpose.msra.mxu0 0.0
        %1908 = vmatprep.subr.mxu0 0.0
        %1909 = vmatpush1.xpose.msra.mxu0 0.0
        %1910 = vmatprep.subr.mxu0 0.0
        %1911 = vmatpush1.xpose.msra.mxu0 0.0
        %1912 = vmatprep.subr.mxu0 0.0
        %1913 = vmatpush1.xpose.msra.mxu0 0.0
        %1914 = vmatprep.subr.mxu0 0.0
        %1915 = vmatpush1.xpose.msra.mxu0 0.0
        %1916 = vmatprep.subr.mxu0 0.0
        %1917 = vmatpush1.xpose.msra.mxu0 0.0
        %1918 = vmatprep.subr.mxu0 0.0
        %1919 = vmatpush1.xpose.msra.mxu0 0.0
        %1920 = vmatprep.subr.mxu0 0.0
        %1921 = vmatpush1.xpose.msra.mxu0 0.0
        %1922 = vmatprep.subr.mxu0 0.0
        %1923 = vmatpush1.xpose.msra.mxu0 0.0
        %1924 = vmatprep.subr.mxu0 0.0
        %1925 = vmatpush1.xpose.msra.mxu0 0.0
        %1926 = vmatprep.subr.mxu0 0.0
        %1927 = vmatpush1.xpose.msra.mxu0 0.0
        %1928 = vmatprep.subr.mxu0 0.0
        %1929 = vmatpush1.xpose.msra.mxu0 0.0
        %1930 = vmatprep.subr.mxu0 0.0
        %1931 = vmatpush1.xpose.msra.mxu0 0.0
        %1932 = vmatprep.subr.mxu0 0.0
        %1933 = vmatpush1.xpose.msra.mxu0 0.0
        %1934 = vmatprep.subr.mxu0 0.0
        %1935 = vmatpush1.xpose.msra.mxu0 0.0
        %1936 = vmatprep.subr.mxu0 0.0
        %1937 = vmatpush1.xpose.msra.mxu0 0.0
        %1938 = vmatprep.subr.mxu0 0.0
        %1939 = vmatpush1.xpose.msra.mxu0 0.0
        %1940 = vmatprep.subr.mxu0 0.0
        %1941 = vmatpush1.xpose.msra.mxu0 0.0
        %1942 = vmatprep.subr.mxu0 0.0
        %1943 = vmatpush1.xpose.msra.mxu0 0.0
        %1944 = vmatprep.subr.mxu0 0.0
        %1945 = vmatpush1.xpose.msra.mxu0 0.0
        %1946 = vmatprep.subr.mxu0 0.0
        %1947 = vmatpush1.xpose.msra.mxu0 0.0
        %1948 = vmatprep.subr.mxu0 0.0
        %1949 = vmatpush1.xpose.msra.mxu0 0.0
        %1950 = vmatprep.subr.mxu0 0.0
        %1951 = vmatpush1.xpose.msra.mxu0 0.0
        %1952 = vmatprep.subr.mxu0 0.0
        %1953 = vmatpush1.xpose.msra.mxu0 0.0
        %1954 = vmatprep.subr.mxu0 0.0
        %1955 = vmatpush1.xpose.msra.mxu0 0.0
        %1956 = vmatprep.subr.mxu0 0.0
        %1957 = vmatpush1.xpose.msra.mxu0 0.0
        %1958 = vmatprep.mubr.f32.mxu0 0.0
        %1959 = vmatmul.mubr.f32.gmra.mrb[0].mxu0 %v1890
        %v1960 = vpop.f32.mrb[0].mxu0
        %v1961 = vadd.f32 0.0, %v1960
        %v1962 = vpop.f32.mrb[0].mxu0
        %1963 = vdwg.mxu0
        %v1964 = vmul.f32 %v1961, 0.35355338
        %v1965 = vadd.f32 %v1964, %v1630
        %v1966 = vsel %vm863, %v1965, -inf
        %1967 = vmax.xlane.f32.xlu0 %v1966
        %v1968 = vpop.xlane.xlu0 %1967
        %v1969 = vsub.f32 %v1965, %v1968
        %v1970 = vmul.f32 %v1969, 1.442695
        %v1971 = vpow.pop %v1970
        %v1972 = vsel %vm863, %v1971, 0.0
        %1973 = vadd.xlane.f32.xlu0 %v1972
        %v1974 = vpop.xlane.xlu0 %1973
        %v1975 = vrcp.pop %v1974
        %v1976 = vmul.f32 %v1971, %v1975
        %1977 = vrot.lane.b32.xlu0 %v857, 48
        %v1978 = vpop.permute.xlu0 %1977
        %v1981 = vsel %vm863, %v1976, 0
        %1983 = vmatprep.subr.mxu0 0.0
        %1984 = vmatpush1.msra.mxu0 %v1978
        %1985 = vmatprep.subr.mxu0 0.0
        %1986 = vmatpush1.msra.mxu0 0.0
        %1987 = vmatprep.subr.mxu0 0.0
        %1988 = vmatpush1.msra.mxu0 0.0
        %1989 = vmatprep.subr.mxu0 0.0
        %1990 = vmatpush1.msra.mxu0 0.0
        %1991 = vmatprep.subr.mxu0 0.0
        %1992 = vmatpush1.msra.mxu0 0.0
        %1993 = vmatprep.subr.mxu0 0.0
        %1994 = vmatpush1.msra.mxu0 0.0
        %1995 = vmatprep.subr.mxu0 0.0
        %1996 = vmatpush1.msra.mxu0 0.0
        %1997 = vmatprep.subr.mxu0 0.0
        %1998 = vmatpush1.msra.mxu0 0.0
        %1999 = vmatprep.subr.mxu0 0.0
        %2000 = vmatpush1.msra.mxu0 0.0
        %2001 = vmatprep.subr.mxu0 0.0
        %2002 = vmatpush1.msra.mxu0 0.0
        %2003 = vmatprep.subr.mxu0 0.0
        %2004 = vmatpush1.msra.mxu0 0.0
        %2005 = vmatprep.subr.mxu0 0.0
        %2006 = vmatpush1.msra.mxu0 0.0
        %2007 = vmatprep.subr.mxu0 0.0
        %2008 = vmatpush1.msra.mxu0 0.0
        %2009 = vmatprep.subr.mxu0 0.0
        %2010 = vmatpush1.msra.mxu0 0.0
        %2011 = vmatprep.subr.mxu0 0.0
        %2012 = vmatpush1.msra.mxu0 0.0
        %2013 = vmatprep.subr.mxu0 0.0
        %2014 = vmatpush1.msra.mxu0 0.0
        %2015 = vmatprep.subr.mxu0 0.0
        %2016 = vmatpush1.msra.mxu0 0.0
        %2017 = vmatprep.subr.mxu0 0.0
        %2018 = vmatpush1.msra.mxu0 0.0
        %2019 = vmatprep.subr.mxu0 0.0
        %2020 = vmatpush1.msra.mxu0 0.0
        %2021 = vmatprep.subr.mxu0 0.0
        %2022 = vmatpush1.msra.mxu0 0.0
        %2023 = vmatprep.subr.mxu0 0.0
        %2024 = vmatpush1.msra.mxu0 0.0
        %2025 = vmatprep.subr.mxu0 0.0
        %2026 = vmatpush1.msra.mxu0 0.0
        %2027 = vmatprep.subr.mxu0 0.0
        %2028 = vmatpush1.msra.mxu0 0.0
        %2029 = vmatprep.subr.mxu0 0.0
        %2030 = vmatpush1.msra.mxu0 0.0
        %2031 = vmatprep.subr.mxu0 0.0
        %2032 = vmatpush1.msra.mxu0 0.0
        %2033 = vmatprep.subr.mxu0 0.0
        %2034 = vmatpush1.msra.mxu0 0.0
        %2035 = vmatprep.subr.mxu0 0.0
        %2036 = vmatpush1.msra.mxu0 0.0
        %2037 = vmatprep.subr.mxu0 0.0
        %2038 = vmatpush1.msra.mxu0 0.0
        %2039 = vmatprep.subr.mxu0 0.0
        %2040 = vmatpush1.msra.mxu0 0.0
        %2041 = vmatprep.subr.mxu0 0.0
        %2042 = vmatpush1.msra.mxu0 0.0
        %2043 = vmatprep.subr.mxu0 0.0
        %2044 = vmatpush1.msra.mxu0 0.0
        %2045 = vmatprep.subr.mxu0 0.0
        %2046 = vmatpush1.msra.mxu0 0.0
        %2047 = vmatprep.mubr.f32.mxu0 0.0
        %2048 = vmatmul.mubr.f32.gmra.mrb[0].mxu0 %v1981
        %v2049 = vpop.f32.mrb[0].mxu0
        %v2050 = vadd.f32 0.0, %v2049
        %v2051 = vpop.f32.mrb[0].mxu0
        %2052 = vdwg.mxu0
        %2053 = vrot.lane.b32.xlu0 %v857, 104
        %v2054 = vpop.permute.xlu0 %2053
        %2055 = vrot.lane.b32.xlu0 %v857, 72
        %v2056 = vpop.permute.xlu0 %2055
        %v2057 = vsel %vm863, %v2054, 0
        %v2059 = vsel %vm863, %v2056, 0
        %2061 = vmatprep.subr.mxu0 0.0
        %2062 = vmatpush1.xpose.msra.mxu0 %v2059
        %2063 = vmatprep.subr.mxu0 0.0
        %2064 = vmatpush1.xpose.msra.mxu0 0.0
        %2065 = vmatprep.subr.mxu0 0.0
        %2066 = vmatpush1.xpose.msra.mxu0 0.0
        %2067 = vmatprep.subr.mxu0 0.0
        %2068 = vmatpush1.xpose.msra.mxu0 0.0
        %2069 = vmatprep.subr.mxu0 0.0
        %2070 = vmatpush1.xpose.msra.mxu0 0.0
        %2071 = vmatprep.subr.mxu0 0.0
        %2072 = vmatpush1.xpose.msra.mxu0 0.0
        %2073 = vmatprep.subr.mxu0 0.0
        %2074 = vmatpush1.xpose.msra.mxu0 0.0
        %2075 = vmatprep.subr.mxu0 0.0
        %2076 = vmatpush1.xpose.msra.mxu0 0.0
        %2077 = vmatprep.subr.mxu0 0.0
        %2078 = vmatpush1.xpose.msra.mxu0 0.0
        %2079 = vmatprep.subr.mxu0 0.0
        %2080 = vmatpush1.xpose.msra.mxu0 0.0
        %2081 = vmatprep.subr.mxu0 0.0
        %2082 = vmatpush1.xpose.msra.mxu0 0.0
        %2083 = vmatprep.subr.mxu0 0.0
        %2084 = vmatpush1.xpose.msra.mxu0 0.0
        %2085 = vmatprep.subr.mxu0 0.0
        %2086 = vmatpush1.xpose.msra.mxu0 0.0
        %2087 = vmatprep.subr.mxu0 0.0
        %2088 = vmatpush1.xpose.msra.mxu0 0.0
        %2089 = vmatprep.subr.mxu0 0.0
        %2090 = vmatpush1.xpose.msra.mxu0 0.0
        %2091 = vmatprep.subr.mxu0 0.0
        %2092 = vmatpush1.xpose.msra.mxu0 0.0
        %2093 = vmatprep.subr.mxu0 0.0
        %2094 = vmatpush1.xpose.msra.mxu0 0.0
        %2095 = vmatprep.subr.mxu0 0.0
        %2096 = vmatpush1.xpose.msra.mxu0 0.0
        %2097 = vmatprep.subr.mxu0 0.0
        %2098 = vmatpush1.xpose.msra.mxu0 0.0
        %2099 = vmatprep.subr.mxu0 0.0
        %2100 = vmatpush1.xpose.msra.mxu0 0.0
        %2101 = vmatprep.subr.mxu0 0.0
        %2102 = vmatpush1.xpose.msra.mxu0 0.0
        %2103 = vmatprep.subr.mxu0 0.0
        %2104 = vmatpush1.xpose.msra.mxu0 0.0
        %2105 = vmatprep.subr.mxu0 0.0
        %2106 = vmatpush1.xpose.msra.mxu0 0.0
        %2107 = vmatprep.subr.mxu0 0.0
        %2108 = vmatpush1.xpose.msra.mxu0 0.0
        %2109 = vmatprep.subr.mxu0 0.0
        %2110 = vmatpush1.xpose.msra.mxu0 0.0
        %2111 = vmatprep.subr.mxu0 0.0
        %2112 = vmatpush1.xpose.msra.mxu0 0.0
        %2113 = vmatprep.subr.mxu0 0.0
        %2114 = vmatpush1.xpose.msra.mxu0 0.0
        %2115 = vmatprep.subr.mxu0 0.0
        %2116 = vmatpush1.xpose.msra.mxu0 0.0
        %2117 = vmatprep.subr.mxu0 0.0
        %2118 = vmatpush1.xpose.msra.mxu0 0.0
        %2119 = vmatprep.subr.mxu0 0.0
        %2120 = vmatpush1.xpose.msra.mxu0 0.0
        %2121 = vmatprep.subr.mxu0 0.0
        %2122 = vmatpush1.xpose.msra.mxu0 0.0
        %2123 = vmatprep.subr.mxu0 0.0
        %2124 = vmatpush1.xpose.msra.mxu0 0.0
        %2125 = vmatprep.mubr.f32.mxu0 0.0
        %2126 = vmatmul.mubr.f32.gmra.mrb[0].mxu0 %v2057
        %v2127 = vpop.f32.mrb[0].mxu0
        %v2128 = vadd.f32 0.0, %v2127
        %v2129 = vpop.f32.mrb[0].mxu0
        %2130 = vdwg.mxu0
        %v2131 = vmul.f32 %v2128, 0.35355338
        %v2132 = vadd.f32 %v2131, %v1630
        %v2133 = vsel %vm863, %v2132, -inf
        %2134 = vmax.xlane.f32.xlu0 %v2133
        %v2135 = vpop.xlane.xlu0 %2134
        %v2136 = vsub.f32 %v2132, %v2135
        %v2137 = vmul.f32 %v2136, 1.442695
        %v2138 = vpow.pop %v2137
        %v2139 = vsel %vm863, %v2138, 0.0
        %2140 = vadd.xlane.f32.xlu0 %v2139
        %v2141 = vpop.xlane.xlu0 %2140
        %v2142 = vrcp.pop %v2141
        %v2143 = vmul.f32 %v2138, %v2142
        %2144 = vrot.lane.b32.xlu0 %v857, 40
        %v2145 = vpop.permute.xlu0 %2144
        %v2148 = vsel %vm863, %v2143, 0
        %2150 = vmatprep.subr.mxu0 0.0
        %2151 = vmatpush1.msra.mxu0 %v2145
        %2152 = vmatprep.subr.mxu0 0.0
        %2153 = vmatpush1.msra.mxu0 0.0
        %2154 = vmatprep.subr.mxu0 0.0
        %2155 = vmatpush1.msra.mxu0 0.0
        %2156 = vmatprep.subr.mxu0 0.0
        %2157 = vmatpush1.msra.mxu0 0.0
        %2158 = vmatprep.subr.mxu0 0.0
        %2159 = vmatpush1.msra.mxu0 0.0
        %2160 = vmatprep.subr.mxu0 0.0
        %2161 = vmatpush1.msra.mxu0 0.0
        %2162 = vmatprep.subr.mxu0 0.0
        %2163 = vmatpush1.msra.mxu0 0.0
        %2164 = vmatprep.subr.mxu0 0.0
        %2165 = vmatpush1.msra.mxu0 0.0
        %2166 = vmatprep.subr.mxu0 0.0
        %2167 = vmatpush1.msra.mxu0 0.0
        %2168 = vmatprep.subr.mxu0 0.0
        %2169 = vmatpush1.msra.mxu0 0.0
        %2170 = vmatprep.subr.mxu0 0.0
        %2171 = vmatpush1.msra.mxu0 0.0
        %2172 = vmatprep.subr.mxu0 0.0
        %2173 = vmatpush1.msra.mxu0 0.0
        %2174 = vmatprep.subr.mxu0 0.0
        %2175 = vmatpush1.msra.mxu0 0.0
        %2176 = vmatprep.subr.mxu0 0.0
        %2177 = vmatpush1.msra.mxu0 0.0
        %2178 = vmatprep.subr.mxu0 0.0
        %2179 = vmatpush1.msra.mxu0 0.0
        %2180 = vmatprep.subr.mxu0 0.0
        %2181 = vmatpush1.msra.mxu0 0.0
        %2182 = vmatprep.subr.mxu0 0.0
        %2183 = vmatpush1.msra.mxu0 0.0
        %2184 = vmatprep.subr.mxu0 0.0
        %2185 = vmatpush1.msra.mxu0 0.0
        %2186 = vmatprep.subr.mxu0 0.0
        %2187 = vmatpush1.msra.mxu0 0.0
        %2188 = vmatprep.subr.mxu0 0.0
        %2189 = vmatpush1.msra.mxu0 0.0
        %2190 = vmatprep.subr.mxu0 0.0
        %2191 = vmatpush1.msra.mxu0 0.0
        %2192 = vmatprep.subr.mxu0 0.0
        %2193 = vmatpush1.msra.mxu0 0.0
        %2194 = vmatprep.subr.mxu0 0.0
        %2195 = vmatpush1.msra.mxu0 0.0
        %2196 = vmatprep.subr.mxu0 0.0
        %2197 = vmatpush1.msra.mxu0 0.0
        %2198 = vmatprep.subr.mxu0 0.0
        %2199 = vmatpush1.msra.mxu0 0.0
        %2200 = vmatprep.subr.mxu0 0.0
        %2201 = vmatpush1.msra.mxu0 0.0
        %2202 = vmatprep.subr.mxu0 0.0
        %2203 = vmatpush1.msra.mxu0 0.0
        %2204 = vmatprep.subr.mxu0 0.0
        %2205 = vmatpush1.msra.mxu0 0.0
        %2206 = vmatprep.subr.mxu0 0.0
        %2207 = vmatpush1.msra.mxu0 0.0
        %2208 = vmatprep.subr.mxu0 0.0
        %2209 = vmatpush1.msra.mxu0 0.0
        %2210 = vmatprep.subr.mxu0 0.0
        %2211 = vmatpush1.msra.mxu0 0.0
        %2212 = vmatprep.subr.mxu0 0.0
        %2213 = vmatpush1.msra.mxu0 0.0
        %2214 = vmatprep.mubr.f32.mxu0 0.0
        %2215 = vmatmul.mubr.f32.gmra.mrb[0].mxu0 %v2148
        %v2216 = vpop.f32.mrb[0].mxu0
        %v2217 = vadd.f32 0.0, %v2216
        %v2218 = vpop.f32.mrb[0].mxu0
        %2219 = vdwg.mxu0
        %2221 = vrot.lane.b32.xlu0 %v1883, 8
        %v2222 = vpop.permute.xlu0 %2221
        %2225 = vrot.lane.b32.xlu0 %v2050, 16
        %v2226 = vpop.permute.xlu0 %2225
        %2229 = vrot.lane.b32.xlu0 %v2217, 24
        %v2230 = vpop.permute.xlu0 %2229
        %v2232 = vsel %vm863, %v1716, %v2222
        %v2233 = vsel %vm1545, %v2232, %v2226
        %v2234 = vsel %vm1547, %v2233, %v2230
        %v2235 = vld [vmem:[%s663] sm:$0xff]
        %v2236 = vld [vmem:[%s663 + $0x8] sm:$0xff]
        %v2237 = vld [vmem:[%s663 + $0x10] sm:$0xff]
        %v2238 = vld [vmem:[%s663 + $0x18] sm:$0xff]
        %v2239 = vld [vmem:[%s666] sm:$0x1]
        %v2241 = vlaneseq
        %v2242 = vshrl.u32 %v2241, 7
        %v2243 = vsub.s32 0, %v2242
        %v2244 = vrot.slane %v2239, %v2243
        %v2247 = vsel %vm709, %v1548, 0
        %v2250 = vsel %vm709, %v2234, 0
        %2252 = vmatprep.subr.mxu0 0.0
        %2253 = vmatpush1.msra.mxu0 %v2235
        %2254 = vmatprep.subr.mxu0 0.0
        %2255 = vmatpush1.msra.mxu0 %v2236
        %2256 = vmatprep.subr.mxu0 0.0
        %2257 = vmatpush1.msra.mxu0 %v2237
        %2258 = vmatprep.subr.mxu0 0.0
        %2259 = vmatpush1.msra.mxu0 %v2238
        %2260 = vmatprep.subr.mxu0 0.0
        %2261 = vmatpush1.msra.mxu0 0.0
        %2262 = vmatprep.subr.mxu0 0.0
        %2263 = vmatpush1.msra.mxu0 0.0
        %2264 = vmatprep.subr.mxu0 0.0
        %2265 = vmatpush1.msra.mxu0 0.0
        %2266 = vmatprep.subr.mxu0 0.0
        %2267 = vmatpush1.msra.mxu0 0.0
        %2268 = vmatprep.subr.mxu0 0.0
        %2269 = vmatpush1.msra.mxu0 0.0
        %2270 = vmatprep.subr.mxu0 0.0
        %2271 = vmatpush1.msra.mxu0 0.0
        %2272 = vmatprep.subr.mxu0 0.0
        %2273 = vmatpush1.msra.mxu0 0.0
        %2274 = vmatprep.subr.mxu0 0.0
        %2275 = vmatpush1.msra.mxu0 0.0
        %2276 = vmatprep.subr.mxu0 0.0
        %2277 = vmatpush1.msra.mxu0 0.0
        %2278 = vmatprep.subr.mxu0 0.0
        %2279 = vmatpush1.msra.mxu0 0.0
        %2280 = vmatprep.subr.mxu0 0.0
        %2281 = vmatpush1.msra.mxu0 0.0
        %2282 = vmatprep.subr.mxu0 0.0
        %2283 = vmatpush1.msra.mxu0 0.0
        %2284 = vmatprep.subr.mxu0 0.0
        %2285 = vmatpush1.msra.mxu0 0.0
        %2286 = vmatprep.subr.mxu0 0.0
        %2287 = vmatpush1.msra.mxu0 0.0
        %2288 = vmatprep.subr.mxu0 0.0
        %2289 = vmatpush1.msra.mxu0 0.0
        %2290 = vmatprep.subr.mxu0 0.0
        %2291 = vmatpush1.msra.mxu0 0.0
        %2292 = vmatprep.subr.mxu0 0.0
        %2293 = vmatpush1.msra.mxu0 0.0
        %2294 = vmatprep.subr.mxu0 0.0
        %2295 = vmatpush1.msra.mxu0 0.0
        %2296 = vmatprep.subr.mxu0 0.0
        %2297 = vmatpush1.msra.mxu0 0.0
        %2298 = vmatprep.subr.mxu0 0.0
        %2299 = vmatpush1.msra.mxu0 0.0
        %2300 = vmatprep.subr.mxu0 0.0
        %2301 = vmatpush1.msra.mxu0 0.0
        %2302 = vmatprep.subr.mxu0 0.0
        %2303 = vmatpush1.msra.mxu0 0.0
        %2304 = vmatprep.subr.mxu0 0.0
        %2305 = vmatpush1.msra.mxu0 0.0
        %2306 = vmatprep.subr.mxu0 0.0
        %2307 = vmatpush1.msra.mxu0 0.0
        %2308 = vmatprep.subr.mxu0 0.0
        %2309 = vmatpush1.msra.mxu0 0.0
        %2310 = vmatprep.subr.mxu0 0.0
        %2311 = vmatpush1.msra.mxu0 0.0
        %2312 = vmatprep.subr.mxu0 0.0
        %2313 = vmatpush1.msra.mxu0 0.0
        %2314 = vmatprep.subr.mxu0 0.0
        %2315 = vmatpush1.msra.mxu0 0.0
        %2316 = vmatprep.mubr.f32.mxu0 0.0
        %2317 = vmatmul.mubr.f32.gmra.mrb[0].mxu0 %v2247
        %v2318 = vpop.f32.mrb[0].mxu0
        %v2319 = vadd.f32 %v2244, %v2318
        %v2320 = vpop.f32.mrb[0].mxu0
        %2321 = vmatprep.mubr.f32.mxu0 0.0
        %2322 = vmatmul.mubr.f32.gmra.mrb[0].mxu0 %v2250
        %v2323 = vpop.f32.mrb[0].mxu0
        %v2324 = vadd.f32 %v2244, %v2323
        %v2325 = vpop.f32.mrb[0].mxu0
        %2326 = vdwg.mxu0
        %v2327 = vadd.f32 %v704, %v2319
        %v2328 = vadd.f32 %v705, %v2324
        %v2329 = vld [vmem:[%s691] sm:$0x1]
        %v2330 = vld [vmem:[%s694] sm:$0x1]
        %v2331 = vsel %vm709, %v2327, 0.0
        %2332 = vadd.xlane.f32.xlu0 %v2331
        %v2333 = vpop.xlane.xlu0 %2332
        %v2334 = vsel %vm709, %v2328, 0.0
        %2335 = vadd.xlane.f32.xlu0 %v2334
        %v2336 = vpop.xlane.xlu0 %2335
        %v2337 = vmul.f32 %v2333, %v716
        %v2338 = vmul.f32 %v2336, %v716
        %v2339 = vsub.f32 %v2327, %v2337
        %v2340 = vsub.f32 %v2328, %v2338
        %v2341 = vmul.f32 %v2339, %v2339
        %v2342 = vmul.f32 %v2340, %v2340
        %v2343 = vsel %vm709, %v2341, 0.0
        %2344 = vadd.xlane.f32.xlu0 %v2343
        %v2345 = vpop.xlane.xlu0 %2344
        %v2346 = vsel %vm709, %v2342, 0.0
        %2347 = vadd.xlane.f32.xlu0 %v2346
        %v2348 = vpop.xlane.xlu0 %2347
        %v2349 = vmul.f32 %v2345, %v729
        %v2350 = vmul.f32 %v2348, %v729
        %v2351 = vrsqrt.pop %v2349
        %v2352 = vmul.f32 %v2349, %v2351
        %vm2353 = vcmp.eq.f32.partialorder %v2349, inf
        %v2354 = vsel %vm2353, %v2349, %v2352
        %vm2355 = vcmp.eq.f32.partialorder %v2349, 0.0
        %v2356 = vand.u32 %v2349, 2147483648
        %v2357 = vsel %vm2355, %v2356, %v2354
        %v2358 = vrsqrt.pop %v2350
        %v2359 = vmul.f32 %v2350, %v2358
        %vm2360 = vcmp.eq.f32.partialorder %v2350, inf
        %v2361 = vsel %vm2360, %v2350, %v2359
        %vm2362 = vcmp.eq.f32.partialorder %v2350, 0.0
        %v2363 = vand.u32 %v2350, 2147483648
        %v2364 = vsel %vm2362, %v2363, %v2361
        %v2366 = vlaneseq
        %v2367 = vshrl.u32 %v2366, 7
        %v2368 = vsub.s32 0, %v2367
        %v2369 = vrot.slane %v2329, %v2368
        %v2371 = vmul.f32 %v2369, %v2339
        %v2372 = vmul.f32 %v2369, %v2340
        %v2373 = vadd.f32 %v2357, 1e-06
        %v2374 = vadd.f32 %v2364, 1e-06
        %v2375 = vrcp.pop %v2373
        %v2376 = vmul.f32 %v2371, %v2375
        %v2377 = vrcp.pop %v2374
        %v2378 = vmul.f32 %v2372, %v2377
        %v2380 = vlaneseq
        %v2381 = vshrl.u32 %v2380, 7
        %v2382 = vsub.s32 0, %v2381
        %v2383 = vrot.slane %v2330, %v2382
        %v2385 = vadd.f32 %v2376, %v2383
        %v2386 = vadd.f32 %v2378, %v2383
        %v2387 = vld [vmem:[%s677] sm:$0xff]
        %v2388 = vld [vmem:[%s677 + $0x8] sm:$0xff]
        %v2389 = vld [vmem:[%s677 + $0x10] sm:$0xff]
        %v2390 = vld [vmem:[%s677 + $0x18] sm:$0xff]
        %v2391 = vld [vmem:[%s680] sm:$0x1]
        %v2393 = vlaneseq
        %v2394 = vshrl.u32 %v2393, 7
        %v2395 = vsub.s32 0, %v2394
        %v2396 = vrot.slane %v2391, %v2395
        %v2399 = vsel %vm709, %v2385, 0
        %v2402 = vsel %vm709, %v2386, 0
        %2404 = vmatprep.subr.mxu0 0.0
        %2405 = vmatpush1.msra.mxu0 %v2387
        %2406 = vmatprep.subr.mxu0 0.0
        %2407 = vmatpush1.msra.mxu0 %v2388
        %2408 = vmatprep.subr.mxu0 0.0
        %2409 = vmatpush1.msra.mxu0 %v2389
        %2410 = vmatprep.subr.mxu0 0.0
        %2411 = vmatpush1.msra.mxu0 %v2390
        %2412 = vmatprep.subr.mxu0 0.0
        %2413 = vmatpush1.msra.mxu0 0.0
        %2414 = vmatprep.subr.mxu0 0.0
        %2415 = vmatpush1.msra.mxu0 0.0
        %2416 = vmatprep.subr.mxu0 0.0
        %2417 = vmatpush1.msra.mxu0 0.0
        %2418 = vmatprep.subr.mxu0 0.0
        %2419 = vmatpush1.msra.mxu0 0.0
        %2420 = vmatprep.subr.mxu0 0.0
        %2421 = vmatpush1.msra.mxu0 0.0
        %2422 = vmatprep.subr.mxu0 0.0
        %2423 = vmatpush1.msra.mxu0 0.0
        %2424 = vmatprep.subr.mxu0 0.0
        %2425 = vmatpush1.msra.mxu0 0.0
        %2426 = vmatprep.subr.mxu0 0.0
        %2427 = vmatpush1.msra.mxu0 0.0
        %2428 = vmatprep.subr.mxu0 0.0
        %2429 = vmatpush1.msra.mxu0 0.0
        %2430 = vmatprep.subr.mxu0 0.0
        %2431 = vmatpush1.msra.mxu0 0.0
        %2432 = vmatprep.subr.mxu0 0.0
        %2433 = vmatpush1.msra.mxu0 0.0
        %2434 = vmatprep.subr.mxu0 0.0
        %2435 = vmatpush1.msra.mxu0 0.0
        %2436 = vmatprep.subr.mxu0 0.0
        %2437 = vmatpush1.msra.mxu0 0.0
        %2438 = vmatprep.subr.mxu0 0.0
        %2439 = vmatpush1.msra.mxu0 0.0
        %2440 = vmatprep.subr.mxu0 0.0
        %2441 = vmatpush1.msra.mxu0 0.0
        %2442 = vmatprep.subr.mxu0 0.0
        %2443 = vmatpush1.msra.mxu0 0.0
        %2444 = vmatprep.subr.mxu0 0.0
        %2445 = vmatpush1.msra.mxu0 0.0
        %2446 = vmatprep.subr.mxu0 0.0
        %2447 = vmatpush1.msra.mxu0 0.0
        %2448 = vmatprep.subr.mxu0 0.0
        %2449 = vmatpush1.msra.mxu0 0.0
        %2450 = vmatprep.subr.mxu0 0.0
        %2451 = vmatpush1.msra.mxu0 0.0
        %2452 = vmatprep.subr.mxu0 0.0
        %2453 = vmatpush1.msra.mxu0 0.0
        %2454 = vmatprep.subr.mxu0 0.0
        %2455 = vmatpush1.msra.mxu0 0.0
        %2456 = vmatprep.subr.mxu0 0.0
        %2457 = vmatpush1.msra.mxu0 0.0
        %2458 = vmatprep.subr.mxu0 0.0
        %2459 = vmatpush1.msra.mxu0 0.0
        %2460 = vmatprep.subr.mxu0 0.0
        %2461 = vmatpush1.msra.mxu0 0.0
        %2462 = vmatprep.subr.mxu0 0.0
        %2463 = vmatpush1.msra.mxu0 0.0
        %2464 = vmatprep.subr.mxu0 0.0
        %2465 = vmatpush1.msra.mxu0 0.0
        %2466 = vmatprep.subr.mxu0 0.0
        %2467 = vmatpush1.msra.mxu0 0.0
        %2468 = vmatprep.mubr.f32.mxu0 0.0
        %2469 = vmatmul.mubr.f32.gmra.mrb[0].mxu0 %v2399
        %v2470 = vpop.f32.mrb[0].mxu0
        %v2471 = vadd.f32 %v2396, %v2470
        %v2472 = vpop.f32.mrb[0].mxu0
        %2473 = vmatprep.mubr.f32.mxu0 0.0
        %2474 = vmatmul.mubr.f32.gmra.mrb[0].mxu0 %v2402
        %v2475 = vpop.f32.mrb[0].mxu0
        %v2476 = vadd.f32 %v2396, %v2475
        %v2477 = vpop.f32.mrb[0].mxu0
        %2478 = vdwg.mxu0
        %v2479 = vmax.f32 %v2471, 0.0
        %v2480 = vmax.f32 %v2476, 0.0
        %v2481 = vld [vmem:[%s685] sm:$0xff]
        %v2482 = vld [vmem:[%s685 + $0x8] sm:$0xff]
        %v2483 = vld [vmem:[%s685 + $0x10] sm:$0xff]
        %v2484 = vld [vmem:[%s685 + $0x18] sm:$0xff]
        %v2485 = vld [vmem:[%s685 + $0x20] sm:$0xff]
        %v2486 = vld [vmem:[%s685 + $0x28] sm:$0xff]
        %v2487 = vld [vmem:[%s685 + $0x30] sm:$0xff]
        %v2488 = vld [vmem:[%s685 + $0x38] sm:$0xff]
        %vm2489 = vcmask 523264
        %v2491 = vsel %vm2489, %v2479, 0
        %v2494 = vsel %vm2489, %v2480, 0
        %2496 = vmatprep.subr.mxu0 0.0
        %2497 = vmatpush1.msra.mxu0 %v2481
        %2498 = vmatprep.subr.mxu0 0.0
        %2499 = vmatpush1.msra.mxu0 %v2482
        %2500 = vmatprep.subr.mxu0 0.0
        %2501 = vmatpush1.msra.mxu0 %v2483
        %2502 = vmatprep.subr.mxu0 0.0
        %2503 = vmatpush1.msra.mxu0 %v2484
        %2504 = vmatprep.subr.mxu0 0.0
        %2505 = vmatpush1.msra.mxu0 %v2485
        %2506 = vmatprep.subr.mxu0 0.0
        %2507 = vmatpush1.msra.mxu0 %v2486
        %2508 = vmatprep.subr.mxu0 0.0
        %2509 = vmatpush1.msra.mxu0 %v2487
        %2510 = vmatprep.subr.mxu0 0.0
        %2511 = vmatpush1.msra.mxu0 %v2488
        %2512 = vmatprep.subr.mxu0 0.0
        %2513 = vmatpush1.msra.mxu0 0.0
        %2514 = vmatprep.subr.mxu0 0.0
        %2515 = vmatpush1.msra.mxu0 0.0
        %2516 = vmatprep.subr.mxu0 0.0
        %2517 = vmatpush1.msra.mxu0 0.0
        %2518 = vmatprep.subr.mxu0 0.0
        %2519 = vmatpush1.msra.mxu0 0.0
        %2520 = vmatprep.subr.mxu0 0.0
        %2521 = vmatpush1.msra.mxu0 0.0
        %2522 = vmatprep.subr.mxu0 0.0
        %2523 = vmatpush1.msra.mxu0 0.0
        %2524 = vmatprep.subr.mxu0 0.0
        %2525 = vmatpush1.msra.mxu0 0.0
        %2526 = vmatprep.subr.mxu0 0.0
        %2527 = vmatpush1.msra.mxu0 0.0
        %2528 = vmatprep.subr.mxu0 0.0
        %2529 = vmatpush1.msra.mxu0 0.0
        %2530 = vmatprep.subr.mxu0 0.0
        %2531 = vmatpush1.msra.mxu0 0.0
        %2532 = vmatprep.subr.mxu0 0.0
        %2533 = vmatpush1.msra.mxu0 0.0
        %2534 = vmatprep.subr.mxu0 0.0
        %2535 = vmatpush1.msra.mxu0 0.0
        %2536 = vmatprep.subr.mxu0 0.0
        %2537 = vmatpush1.msra.mxu0 0.0
        %2538 = vmatprep.subr.mxu0 0.0
        %2539 = vmatpush1.msra.mxu0 0.0
        %2540 = vmatprep.subr.mxu0 0.0
        %2541 = vmatpush1.msra.mxu0 0.0
        %2542 = vmatprep.subr.mxu0 0.0
        %2543 = vmatpush1.msra.mxu0 0.0
        %2544 = vmatprep.subr.mxu0 0.0
        %2545 = vmatpush1.msra.mxu0 0.0
        %2546 = vmatprep.subr.mxu0 0.0
        %2547 = vmatpush1.msra.mxu0 0.0
        %2548 = vmatprep.subr.mxu0 0.0
        %2549 = vmatpush1.msra.mxu0 0.0
        %2550 = vmatprep.subr.mxu0 0.0
        %2551 = vmatpush1.msra.mxu0 0.0
        %2552 = vmatprep.subr.mxu0 0.0
        %2553 = vmatpush1.msra.mxu0 0.0
        %2554 = vmatprep.subr.mxu0 0.0
        %2555 = vmatpush1.msra.mxu0 0.0
        %2556 = vmatprep.subr.mxu0 0.0
        %2557 = vmatpush1.msra.mxu0 0.0
        %2558 = vmatprep.subr.mxu0 0.0
        %2559 = vmatpush1.msra.mxu0 0.0
        %2560 = vmatprep.mubr.f32.mxu0 0.0
        %2561 = vmatmul.mubr.f32.gmra.mrb[0].mxu0 %v2491
        %v2562 = vpop.f32.mrb[0].mxu0
        %v2563 = vadd.f32 0.0, %v2562
        %v2564 = vpop.f32.mrb[0].mxu0
        %2565 = vmatprep.mubr.f32.mxu0 0.0
        %2566 = vmatmul.mubr.f32.gmra.mrb[0].mxu0 %v2494
        %v2567 = vpop.f32.mrb[0].mxu0
        %v2568 = vadd.f32 0.0, %v2567
        %v2569 = vpop.f32.mrb[0].mxu0
        %2570 = vdwg.mxu0
        %v2571 = vadd.f32 %v2327, %v2563
        %v2572 = vadd.f32 %v2328, %v2568
        %v2573 = vld [vmem:[%s688] sm:$0x1]
        %v2575 = vlaneseq
        %v2576 = vshrl.u32 %v2575, 7
        %v2577 = vsub.s32 0, %v2576
        %v2578 = vrot.slane %v2573, %v2577
        %v2580 = vadd.f32 %v2571, %v2578
        %v2581 = vadd.f32 %v2572, %v2578
        %2582 = vst.msk [vmem:[#allocation2] sm:$0xff] %vm709, %v2580
        %2583 = vst.msk [vmem:[#allocation2 + $0x8] sm:$0xff] %vm709, %v2581
        %p2584 = scmp.eq.s32.totalorder %s29, 1
        // Predicated region
        $region93: #{tpu_custom_call.1} parent=83 // pred_check
          %p2585 = pneg %p2584
        $region94: #{tpu_custom_call.1} parent=83 // pred_check_branch
          %2587 = sbr.rel (%p2585) target = $region96
        $region95: #{tpu_custom_call.1} parent=83 // pred_region
          %v2588 = vld [vmem:[%s14] sm:$0x1]
          %v2589 = vld [vmem:[%s15] sm:$0x1]
          %v2590 = vsel %vm709, %v2580, 0.0
          %2591 = vadd.xlane.f32.xlu0 %v2590
          %v2592 = vpop.xlane.xlu0 %2591
          %v2593 = vsel %vm709, %v2581, 0.0
          %2594 = vadd.xlane.f32.xlu0 %v2593
          %v2595 = vpop.xlane.xlu0 %2594
          %v2596 = vmul.f32 %v2592, %v716
          %v2597 = vmul.f32 %v2595, %v716
          %v2598 = vsub.f32 %v2580, %v2596
          %v2599 = vsub.f32 %v2581, %v2597
          %v2600 = vmul.f32 %v2598, %v2598
          %v2601 = vmul.f32 %v2599, %v2599
          %v2602 = vsel %vm709, %v2600, 0.0
          %2603 = vadd.xlane.f32.xlu0 %v2602
          %v2604 = vpop.xlane.xlu0 %2603
          %v2605 = vsel %vm709, %v2601, 0.0
          %2606 = vadd.xlane.f32.xlu0 %v2605
          %v2607 = vpop.xlane.xlu0 %2606
          %v2608 = vmul.f32 %v2604, %v729
          %v2609 = vmul.f32 %v2607, %v729
          %v2610 = vrsqrt.pop %v2608
          %v2611 = vmul.f32 %v2608, %v2610
          %vm2612 = vcmp.eq.f32.partialorder %v2608, inf
          %v2613 = vsel %vm2612, %v2608, %v2611
          %vm2614 = vcmp.eq.f32.partialorder %v2608, 0.0
          %v2615 = vand.u32 %v2608, 2147483648
          %v2616 = vsel %vm2614, %v2615, %v2613
          %v2617 = vrsqrt.pop %v2609
          %v2618 = vmul.f32 %v2609, %v2617
          %vm2619 = vcmp.eq.f32.partialorder %v2609, inf
          %v2620 = vsel %vm2619, %v2609, %v2618
          %vm2621 = vcmp.eq.f32.partialorder %v2609, 0.0
          %v2622 = vand.u32 %v2609, 2147483648
          %v2623 = vsel %vm2621, %v2622, %v2620
          %v2625 = vlaneseq
          %v2626 = vshrl.u32 %v2625, 7
          %v2627 = vsub.s32 0, %v2626
          %v2628 = vrot.slane %v2588, %v2627
          %v2630 = vmul.f32 %v2628, %v2598
          %v2631 = vmul.f32 %v2628, %v2599
          %v2632 = vadd.f32 %v2616, 1e-06
          %v2633 = vadd.f32 %v2623, 1e-06
          %v2634 = vrcp.pop %v2632
          %v2635 = vmul.f32 %v2630, %v2634
          %v2636 = vrcp.pop %v2633
          %v2637 = vmul.f32 %v2631, %v2636
          %v2639 = vlaneseq
          %v2640 = vshrl.u32 %v2639, 7
          %v2641 = vsub.s32 0, %v2640
          %v2642 = vrot.slane %v2589, %v2641
          %v2644 = vadd.f32 %v2635, %v2642
          %v2645 = vadd.f32 %v2637, %v2642
          %2646 = vst.msk [vmem:[#allocation6] sm:$0xff] %vm709, %v2644
          %2647 = vst.msk [vmem:[#allocation6 + $0x8] sm:$0xff] %vm709, %v2645
        $region96: #{tpu_custom_call.1} parent=83 // pred_fallthru
          _
        // Predicated region
        $region97: #{tpu_custom_call.1} parent=83 // pred_check
          %p2648 = pneg %p438
        $region98: #{tpu_custom_call.1} parent=83 // pred_check_branch
          %2650 = sbr.rel (%p2648) target = $region100
        $region99: #{tpu_custom_call.1} parent=83 // pred_region
          %s2652 = ssub.s32 256, 256
          %2653 = vsyncadd [#allocation5], %s2652
          %s2654 = sshll.u32 [#allocation6], 4
          %s2655 = int_to_ptr.vmem [resolvable:$true] %s2654
          %2660 = dma.vmem_to_hbm [thread:$0]  %s2655, 256, %s16, [#allocation5], 128, 128, 8
        $region100: #{tpu_custom_call.1} parent=83 // pred_fallthru
          _
        // Predicated region
        $region101: #{tpu_custom_call.1} parent=83 // pred_check
          %p2661 = pneg %p438
        $region102: #{tpu_custom_call.1} parent=83 // pred_check_branch
          %2663 = sbr.rel (%p2661) target = $region104
        $region103: #{tpu_custom_call.1} parent=83 // pred_region
          %2664 = dma.done [#allocation5], 256
        $region104: #{tpu_custom_call.1} parent=83 // pred_fallthru
          _
      $region84: #{tpu_custom_call.1} parent=5 // pred_fallthru
        _
      %p2665 = scmp.le.s32.totalorder 2, %s24
      // Predicated region
      $region105: #{tpu_custom_call.1} parent=5 // pred_check
        %p2666 = pneg %p2665
      $region106: #{tpu_custom_call.1} parent=5 // pred_check_branch
        %2668 = sbr.rel (%p2666) target = $region108
      $region107: #{tpu_custom_call.1} parent=5 // pred_region
        %s2669 = ssub.s32 %s24, 2
      $region108: #{tpu_custom_call.1} parent=5 // pred_fallthru
        _
    $region6: #{tpu_custom_call.1} parent=1 // loop_footer
      %s28 = sadd.s32 1, %s24
    $region7: #{tpu_custom_call.1} parent=1 // loop_footer_branch
      %23 = sbr.rel target = $region3
    $region8: #{tpu_custom_call.1} parent=1 // loop_exit
      _
    %2670 = vsyncpa [#allocation4], 1
    %s2671 = scalar_lea.sflag [#allocation4], 1
    %2672 = vsyncpa %s2671, 1
    %2673 = vsyncpa [#allocation5], 1
    %s2674 = scalar_lea.sflag [#allocation5], 1
    %2675 = vsyncpa %s2674, 1

</llo_original>
